<compile_context>
chip_gen: v6e
topology: v6e:2x2x1
jax: 0.10.0
libtpu: 0.0.40
codegen_flags: <defaults>
</compile_context>

<pallas_src>
import jax
import jax.numpy as jnp
from jax.experimental import pallas as pl
from jax.experimental.pallas import tpu as pltpu

INPUT_SIZE = 16
D_MODEL = 128                 # multiple of 128 -> lane-dense activations/stores
D_FF = 512                    # keeps the module's 4x ratio, multiple of 128
N_HEAD = 2
HEAD_DIM = D_MODEL // N_HEAD
N_LAYERS = 3
MAX_SEQ = 8                   # seq_size == max_seq_length
LN_EPS = 1e-6
NEG_INF = -1e30               # stand-in for -inf in the additive key-padding mask


# ---------------------------------------------------------------- helpers ---
def _rep_spec(shape):         # grid-invariant block (weights), never re-DMA'd
    nd = len(shape)
    return pl.BlockSpec(shape, lambda b, en, nd=nd: (0,) * nd)


def _batch_spec(shape):       # per-batch block, leading dim indexed by grid axis b
    nd = len(shape)
    return pl.BlockSpec(shape, lambda b, en, nd=nd: (b,) + (0,) * (nd - 1))


def _bf16(x):
    return x.astype(jnp.bfloat16)


def _mm(a, w):                # bf16 MXU matmul, f32 accumulate; w already bf16 (K, N)
    return jnp.dot(_bf16(a), w, preferred_element_type=jnp.float32)


def _layernorm(x, g, b):      # f32 elementwise
    mu = jnp.mean(x, axis=-1, keepdims=True)
    var = jnp.mean(jnp.square(x - mu), axis=-1, keepdims=True)
    return (x - mu) * jax.lax.rsqrt(var + LN_EPS) * g + b


# --------------------------------------------------------- fused kernel -----
def _fused_kernel(en_ref,                                   # SMEM: entity_num (B,)
                  x_ref, add_ref,                           # per-batch activations
                  we_ref, be_ref,
                  wqkv_ref, bqkv_ref, wo_ref, bo_ref,
                  w1_ref, b1_ref, w2_ref, b2_ref,
                  g1_ref, be1_ref, g2_ref, be2_ref,
                  wc_ref, bc_ref,
                  out_ref):
    b = pl.program_id(0)
    n = en_ref[b]
    # Build both masks in-kernel from the SMEM scalar (no tiny 1-lane DMAs).
    key_valid = jax.lax.broadcasted_iota(jnp.int32, (1, MAX_SEQ), 1) < n   # (1, S)
    row_valid = jax.lax.broadcasted_iota(jnp.int32, (MAX_SEQ, 1), 0) < n   # (S, 1)
    # Source-faithful: *valid* keys get the additive -inf (src_key_padding_mask).
    madd = jnp.where(key_valid, jnp.float32(NEG_INF), jnp.float32(0.0))
    mask_mult = row_valid.astype(jnp.float32)

    # ---- embed: Linear(input_size, d_model) + group_id emb + spatial ----
    h = _mm(x_ref[0], we_ref[...]) + be_ref[...] + add_ref[0]              # (S, D)

    scale = 1.0 / (HEAD_DIM ** 0.5)
    for layer in range(N_LAYERS):
        # Fused QKV projection: one (S,D)@(D,3D) matmul.
        qkv = _mm(h, wqkv_ref[layer]) + bqkv_ref[layer]                    # (S, 3D)
        q = qkv[:, :D_MODEL] * scale                                       # fold scale into q
        k = qkv[:, D_MODEL:2 * D_MODEL]
        v = qkv[:, 2 * D_MODEL:]

        wol = wo_ref[layer]                                                # (D, D) bf16
        attn = None
        for hh in range(N_HEAD):                                           # unrolled, no concat
            sl = slice(hh * HEAD_DIM, (hh + 1) * HEAD_DIM)
            s = jax.lax.dot_general(_bf16(q[:, sl]), _bf16(k[:, sl]),
                                    (((1,), (1,)), ((), ())),
                                    preferred_element_type=jnp.float32)    # (S, S)
            s = s + madd                                                   # key-padding mask
            s = s - jnp.max(s, axis=-1, keepdims=True)
            p = jnp.exp(s)
            p = p * pl.reciprocal(jnp.sum(p, axis=-1, keepdims=True), approx=True)
            ctx = _mm(p, _bf16(v[:, sl]))                                  # (S, hd)
            proj = _mm(ctx, wol[sl, :])                                    # accumulate into out-proj
            attn = proj if attn is None else attn + proj
        attn = attn + bo_ref[layer]

        # post-norm layer (norm_first=False): x = norm1(x + sa(x)); x = norm2(x + ff(x))
        x1 = _layernorm(h + attn, g1_ref[layer], be1_ref[layer])
        f = jnp.maximum(_mm(x1, w1_ref[layer]) + b1_ref[layer], 0.0)       # relu activation
        f2 = _mm(f, w2_ref[layer]) + b2_ref[layer]
        h = _layernorm(x1 + f2, g2_ref[layer], be2_ref[layer])

    # ---- head: relu -> Conv1d(d, d, k=1) (== Linear) -> relu -> mask ----
    y = _mm(jnp.maximum(h, 0.0), wc_ref[...]) + bc_ref[...]
    out_ref[0] = jnp.maximum(y, 0.0) * mask_mult


# ----------------------------------------------------------- full forward ---
def entity_encoder_forward(params, x, group_id, spatial_embedd, entity_num):
    B, S, F = x.shape
    # Embedding-table gather is glue (plain XLA); the add happens in-kernel.
    add = params["group_emb"][group_id] + spatial_embedd                   # (B, S, D) f32

    tensor_args = (x, add, params["we"], params["be"],
                   params["wqkv"], params["bqkv"], params["wo"], params["bo"],
                   params["w1"], params["b1"], params["w2"], params["b2"],
                   params["g1"], params["be1"], params["g2"], params["be2"],
                   params["wc"], params["bc"])
    in_specs = ([_batch_spec((1, S, F)), _batch_spec((1, S, D_MODEL))]
                + [_rep_spec(a.shape) for a in tensor_args[2:]])

    return pl.pallas_call(
        _fused_kernel,
        grid_spec=pltpu.PrefetchScalarGridSpec(
            num_scalar_prefetch=1,                 # entity_num -> SMEM
            grid=(B,),
            in_specs=in_specs,
            out_specs=_batch_spec((1, S, D_MODEL)),
        ),
        out_shape=jax.ShapeDtypeStruct((B, S, D_MODEL), jnp.float32),
        compiler_params=pltpu.CompilerParams(
            dimension_semantics=("parallel",),     # v7x: 2 TCs split the batch
            vmem_limit_bytes=32 * 1024 * 1024,
        ),
    )(entity_num.astype(jnp.int32), *tensor_args)


# ----------------------------------------------------------- param init -----
def init_params(key):
    ks = jax.random.split(key, 16)
    L = N_LAYERS

    def nrm(k, shape, scale=0.05, dtype=jnp.bfloat16):
        return (scale * jax.random.normal(k, shape, jnp.float32)).astype(dtype)

    return {
        # all matmul weights pre-transposed to (in_features, out_features), bf16
        "we":   nrm(ks[0], (INPUT_SIZE, D_MODEL)),           # nn.Linear(input_size, d_model)
        "be":   nrm(ks[1], (1, D_MODEL), dtype=jnp.float32),
        "group_emb": (0.001 * jax.random.normal(ks[2], (17, D_MODEL), jnp.float32)),
        "wqkv": nrm(ks[3], (L, D_MODEL, 3 * D_MODEL)),       # fused in_proj per layer
        "bqkv": nrm(ks[4], (L, 1, 3 * D_MODEL), dtype=jnp.float32),
        "wo":   nrm(ks[5], (L, D_MODEL, D_MODEL)),           # out_proj (in, out)
        "bo":   nrm(ks[6], (L, 1, D_MODEL), dtype=jnp.float32),
        "w1":   nrm(ks[7], (L, D_MODEL, D_FF)),              # FFN linear1
        "b1":   nrm(ks[8], (L, 1, D_FF), dtype=jnp.float32),
        "w2":   nrm(ks[9], (L, D_FF, D_MODEL)),              # FFN linear2
        "b2":   nrm(ks[10], (L, 1, D_MODEL), dtype=jnp.float32),
        "g1":   jnp.ones((L, 1, D_MODEL), jnp.float32),
        "be1":  jnp.zeros((L, 1, D_MODEL), jnp.float32),
        "g2":   jnp.ones((L, 1, D_MODEL), jnp.float32),
        "be2":  jnp.zeros((L, 1, D_MODEL), jnp.float32),
        "wc":   nrm(ks[11], (D_MODEL, D_MODEL)),             # Conv1d(d, d, k=1) squeezed
        "bc":   nrm(ks[12], (1, D_MODEL), dtype=jnp.float32),
    }


if __name__ == "__main__":
    key = jax.random.PRNGKey(0)
    kx, kg, ks, kp = jax.random.split(key, 4)
    B = 2
    x = jax.random.normal(kx, (B, MAX_SEQ, INPUT_SIZE), jnp.float32)
    group_id = jax.random.randint(kg, (B, MAX_SEQ), 0, 17)
    spatial = 0.1 * jax.random.normal(ks, (B, MAX_SEQ, D_MODEL), jnp.float32)
    # entity_num < MAX_SEQ so at least one attention key stays unmasked
    # (the module masks *valid* keys; all-valid would NaN in PyTorch too).
    entity_num = jnp.array([3, 5], dtype=jnp.int32)

    params = init_params(kp)
    fwd = jax.jit(entity_encoder_forward)
    out = jax.block_until_ready(fwd(params, x, group_id, spatial, entity_num))
    assert out.shape == (B, MAX_SEQ, D_MODEL) and out.dtype == jnp.float32
    assert bool(jnp.all(jnp.isfinite(out)))
    print("KERNEL_OK")
</pallas_src>

<mosaic_0001>
module attributes {stable_mosaic.version = 11 : i64} {
  func.func @_fused_kernel(%arg0: i32, %arg1: memref<2xi32, #tpu.memory_space<smem>>, %arg2: memref<1x8x16xf32, #tpu.memory_space<vmem>>, %arg3: memref<1x8x128xf32, #tpu.memory_space<vmem>>, %arg4: memref<16x128xbf16, #tpu.memory_space<vmem>>, %arg5: memref<1x128xf32, #tpu.memory_space<vmem>>, %arg6: memref<3x128x384xbf16, #tpu.memory_space<vmem>>, %arg7: memref<3x1x384xf32, #tpu.memory_space<vmem>>, %arg8: memref<3x128x128xbf16, #tpu.memory_space<vmem>>, %arg9: memref<3x1x128xf32, #tpu.memory_space<vmem>>, %arg10: memref<3x128x512xbf16, #tpu.memory_space<vmem>>, %arg11: memref<3x1x512xf32, #tpu.memory_space<vmem>>, %arg12: memref<3x512x128xbf16, #tpu.memory_space<vmem>>, %arg13: memref<3x1x128xf32, #tpu.memory_space<vmem>>, %arg14: memref<3x1x128xf32, #tpu.memory_space<vmem>>, %arg15: memref<3x1x128xf32, #tpu.memory_space<vmem>>, %arg16: memref<3x1x128xf32, #tpu.memory_space<vmem>>, %arg17: memref<3x1x128xf32, #tpu.memory_space<vmem>>, %arg18: memref<128x128xbf16, #tpu.memory_space<vmem>>, %arg19: memref<1x128xf32, #tpu.memory_space<vmem>>, %arg20: memref<1x8x128xf32, #tpu.memory_space<vmem>>) attributes {dimension_semantics = [#tpu.dimension_semantics<parallel>], iteration_bounds = array<i64: 2>, scalar_prefetch = 1 : i64, scratch_operands = 0 : i64, tpu.core_type = #tpu.core_type<tc>, window_params = [{transform_indices = @transform_0, window_bounds = array<i64: 1, 8, 16>}, {transform_indices = @transform_1, window_bounds = array<i64: 1, 8, 128>}, {pipeline_mode = #tpu.pipeline_mode<synchronous>, transform_indices = @transform_2, window_bounds = array<i64: 16, 128>}, {pipeline_mode = #tpu.pipeline_mode<synchronous>, transform_indices = @transform_3, window_bounds = array<i64: 1, 128>}, {pipeline_mode = #tpu.pipeline_mode<synchronous>, transform_indices = @transform_4, window_bounds = array<i64: 3, 128, 384>}, {pipeline_mode = #tpu.pipeline_mode<synchronous>, transform_indices = @transform_5, window_bounds = array<i64: 3, 1, 384>}, {pipeline_mode = #tpu.pipeline_mode<synchronous>, transform_indices = @transform_6, window_bounds = array<i64: 3, 128, 128>}, {pipeline_mode = #tpu.pipeline_mode<synchronous>, transform_indices = @transform_7, window_bounds = array<i64: 3, 1, 128>}, {pipeline_mode = #tpu.pipeline_mode<synchronous>, transform_indices = @transform_8, window_bounds = array<i64: 3, 128, 512>}, {pipeline_mode = #tpu.pipeline_mode<synchronous>, transform_indices = @transform_9, window_bounds = array<i64: 3, 1, 512>}, {pipeline_mode = #tpu.pipeline_mode<synchronous>, transform_indices = @transform_10, window_bounds = array<i64: 3, 512, 128>}, {pipeline_mode = #tpu.pipeline_mode<synchronous>, transform_indices = @transform_11, window_bounds = array<i64: 3, 1, 128>}, {pipeline_mode = #tpu.pipeline_mode<synchronous>, transform_indices = @transform_12, window_bounds = array<i64: 3, 1, 128>}, {pipeline_mode = #tpu.pipeline_mode<synchronous>, transform_indices = @transform_13, window_bounds = array<i64: 3, 1, 128>}, {pipeline_mode = #tpu.pipeline_mode<synchronous>, transform_indices = @transform_14, window_bounds = array<i64: 3, 1, 128>}, {pipeline_mode = #tpu.pipeline_mode<synchronous>, transform_indices = @transform_15, window_bounds = array<i64: 3, 1, 128>}, {pipeline_mode = #tpu.pipeline_mode<synchronous>, transform_indices = @transform_16, window_bounds = array<i64: 128, 128>}, {pipeline_mode = #tpu.pipeline_mode<synchronous>, transform_indices = @transform_17, window_bounds = array<i64: 1, 128>}, {transform_indices = @transform_18, window_bounds = array<i64: 1, 8, 128>}]} {
    %0 = arith.index_cast %arg0 : i32 to index
    %1 = memref.load %arg1[%0] : memref<2xi32, #tpu.memory_space<smem>>
    %2 = tpu.iota {dimensions = array<i32: 1>} : vector<1x8xi32>
    %3 = vector.broadcast %1 : i32 to vector<1x8xi32>
    %4 = arith.cmpi slt, %2, %3 : vector<1x8xi32>
    %5 = tpu.iota {dimensions = array<i32: 0>} : vector<8x1xi32>
    %6 = vector.broadcast %1 : i32 to vector<8x1xi32>
    %7 = arith.cmpi slt, %5, %6 : vector<8x1xi32>
    %cst = arith.constant -1.000000e+30 : f32
    %cst_0 = arith.constant 0.000000e+00 : f32
    %8 = vector.broadcast %cst : f32 to vector<1x8xf32>
    %9 = vector.broadcast %cst_0 : f32 to vector<1x8xf32>
    %10 = arith.select %4, %8, %9 : vector<1x8xi1>, vector<1x8xf32>
    %11 = arith.extui %7 : vector<8x1xi1> to vector<8x1xi32>
    %12 = arith.sitofp %11 : vector<8x1xi32> to vector<8x1xf32>
    %c0 = arith.constant 0 : index
    %c0_1 = arith.constant 0 : index
    %c0_2 = arith.constant 0 : index
    %13 = vector.load %arg2[%c0, %c0_1, %c0_2] : memref<1x8x16xf32, #tpu.memory_space<vmem>>, vector<1x8x16xf32>
    %14 = vector.shape_cast %13 : vector<1x8x16xf32> to vector<8x16xf32>
    %c0_3 = arith.constant 0 : index
    %c0_4 = arith.constant 0 : index
    %15 = vector.load %arg4[%c0_3, %c0_4] : memref<16x128xbf16, #tpu.memory_space<vmem>>, vector<16x128xbf16>
    %16 = arith.truncf %14 : vector<8x16xf32> to vector<8x16xbf16>
    %cst_5 = arith.constant dense<0.000000e+00> : vector<8x128xf32>
    %17 = tpu.matmul %16, %15, %cst_5 {dimension_numbers = #tpu.dot_dimension_numbers<[1], [0], [0], [1], [0, 0, 1, 1], [], []>} : vector<8x16xbf16>, vector<16x128xbf16>, vector<8x128xf32> -> vector<8x128xf32>
    %c0_6 = arith.constant 0 : index
    %c0_7 = arith.constant 0 : index
    %18 = vector.load %arg5[%c0_6, %c0_7] : memref<1x128xf32, #tpu.memory_space<vmem>>, vector<1x128xf32>
    %19 = vector.broadcast %18 : vector<1x128xf32> to vector<8x128xf32>
    %20 = arith.addf %17, %19 : vector<8x128xf32>
    %c0_8 = arith.constant 0 : index
    %c0_9 = arith.constant 0 : index
    %c0_10 = arith.constant 0 : index
    %21 = vector.load %arg3[%c0_8, %c0_9, %c0_10] : memref<1x8x128xf32, #tpu.memory_space<vmem>>, vector<1x8x128xf32>
    %22 = vector.shape_cast %21 : vector<1x8x128xf32> to vector<8x128xf32>
    %23 = arith.addf %20, %22 : vector<8x128xf32>
    %c0_11 = arith.constant 0 : index
    %c0_12 = arith.constant 0 : index
    %c0_13 = arith.constant 0 : index
    %24 = vector.load %arg6[%c0_11, %c0_12, %c0_13] : memref<3x128x384xbf16, #tpu.memory_space<vmem>>, vector<1x128x384xbf16>
    %25 = vector.shape_cast %24 : vector<1x128x384xbf16> to vector<128x384xbf16>
    %26 = arith.truncf %23 : vector<8x128xf32> to vector<8x128xbf16>
    %cst_14 = arith.constant dense<0.000000e+00> : vector<8x384xf32>
    %27 = tpu.matmul %26, %25, %cst_14 {dimension_numbers = #tpu.dot_dimension_numbers<[1], [0], [0], [1], [0, 0, 1, 1], [], []>} : vector<8x128xbf16>, vector<128x384xbf16>, vector<8x384xf32> -> vector<8x384xf32>
    %c0_15 = arith.constant 0 : index
    %c0_16 = arith.constant 0 : index
    %c0_17 = arith.constant 0 : index
    %28 = vector.load %arg7[%c0_15, %c0_16, %c0_17] : memref<3x1x384xf32, #tpu.memory_space<vmem>>, vector<1x1x384xf32>
    %29 = vector.shape_cast %28 : vector<1x1x384xf32> to vector<1x384xf32>
    %30 = vector.broadcast %29 : vector<1x384xf32> to vector<8x384xf32>
    %31 = arith.addf %27, %30 : vector<8x384xf32>
    %32 = vector.extract_strided_slice %31 {offsets = [0, 0], sizes = [8, 128], strides = [1, 1]} : vector<8x384xf32> to vector<8x128xf32>
    %cst_18 = arith.constant 1.250000e-01 : f32
    %33 = vector.broadcast %cst_18 : f32 to vector<8x128xf32>
    %34 = arith.mulf %32, %33 : vector<8x128xf32>
    %35 = vector.extract_strided_slice %31 {offsets = [0, 128], sizes = [8, 128], strides = [1, 1]} : vector<8x384xf32> to vector<8x128xf32>
    %36 = vector.extract_strided_slice %31 {offsets = [0, 256], sizes = [8, 128], strides = [1, 1]} : vector<8x384xf32> to vector<8x128xf32>
    %c0_19 = arith.constant 0 : index
    %c0_20 = arith.constant 0 : index
    %c0_21 = arith.constant 0 : index
    %37 = vector.load %arg8[%c0_19, %c0_20, %c0_21] : memref<3x128x128xbf16, #tpu.memory_space<vmem>>, vector<1x128x128xbf16>
    %38 = vector.shape_cast %37 : vector<1x128x128xbf16> to vector<128x128xbf16>
    %39 = vector.extract_strided_slice %34 {offsets = [0, 0], sizes = [8, 64], strides = [1, 1]} : vector<8x128xf32> to vector<8x64xf32>
    %40 = arith.truncf %39 : vector<8x64xf32> to vector<8x64xbf16>
    %41 = vector.extract_strided_slice %35 {offsets = [0, 0], sizes = [8, 64], strides = [1, 1]} : vector<8x128xf32> to vector<8x64xf32>
    %42 = arith.truncf %41 : vector<8x64xf32> to vector<8x64xbf16>
    %cst_22 = arith.constant dense<0.000000e+00> : vector<8x8xf32>
    %43 = tpu.matmul %40, %42, %cst_22 {dimension_numbers = #tpu.dot_dimension_numbers<[1], [1], [0], [0], [0, 0, 1, 0], [], []>} : vector<8x64xbf16>, vector<8x64xbf16>, vector<8x8xf32> -> vector<8x8xf32>
    %44 = vector.broadcast %10 : vector<1x8xf32> to vector<8x8xf32>
    %45 = arith.addf %43, %44 : vector<8x8xf32>
    %cst_23 = arith.constant dense<0xFF800000> : vector<8xf32>
    %46 = vector.multi_reduction <maximumf>, %45, %cst_23 [1] : vector<8x8xf32> to vector<8xf32>
    %47 = vector.shape_cast %46 : vector<8xf32> to vector<8x1xf32>
    %48 = vector.broadcast %47 : vector<8x1xf32> to vector<8x8xf32>
    %49 = arith.subf %45, %48 : vector<8x8xf32>
    %50 = math.exp %49 : vector<8x8xf32>
    %cst_24 = arith.constant dense<0.000000e+00> : vector<8xf32>
    %51 = vector.multi_reduction <add>, %50, %cst_24 [1] : vector<8x8xf32> to vector<8xf32>
    %52 = vector.shape_cast %51 : vector<8xf32> to vector<8x1xf32>
    %53 = tpu.reciprocal %52 {approx = true} : vector<8x1xf32> -> vector<8x1xf32>
    %54 = vector.broadcast %53 : vector<8x1xf32> to vector<8x8xf32>
    %55 = arith.mulf %50, %54 : vector<8x8xf32>
    %56 = vector.extract_strided_slice %36 {offsets = [0, 0], sizes = [8, 64], strides = [1, 1]} : vector<8x128xf32> to vector<8x64xf32>
    %57 = arith.truncf %56 : vector<8x64xf32> to vector<8x64xbf16>
    %58 = arith.truncf %55 : vector<8x8xf32> to vector<8x8xbf16>
    %cst_25 = arith.constant dense<0.000000e+00> : vector<8x64xf32>
    %59 = tpu.matmul %58, %57, %cst_25 {dimension_numbers = #tpu.dot_dimension_numbers<[1], [0], [0], [1], [0, 0, 1, 1], [], []>} : vector<8x8xbf16>, vector<8x64xbf16>, vector<8x64xf32> -> vector<8x64xf32>
    %60 = vector.extract_strided_slice %38 {offsets = [0, 0], sizes = [64, 128], strides = [1, 1]} : vector<128x128xbf16> to vector<64x128xbf16>
    %61 = arith.truncf %59 : vector<8x64xf32> to vector<8x64xbf16>
    %cst_26 = arith.constant dense<0.000000e+00> : vector<8x128xf32>
    %62 = tpu.matmul %61, %60, %cst_26 {dimension_numbers = #tpu.dot_dimension_numbers<[1], [0], [0], [1], [0, 0, 1, 1], [], []>} : vector<8x64xbf16>, vector<64x128xbf16>, vector<8x128xf32> -> vector<8x128xf32>
    %63 = vector.extract_strided_slice %34 {offsets = [0, 64], sizes = [8, 64], strides = [1, 1]} : vector<8x128xf32> to vector<8x64xf32>
    %64 = arith.truncf %63 : vector<8x64xf32> to vector<8x64xbf16>
    %65 = vector.extract_strided_slice %35 {offsets = [0, 64], sizes = [8, 64], strides = [1, 1]} : vector<8x128xf32> to vector<8x64xf32>
    %66 = arith.truncf %65 : vector<8x64xf32> to vector<8x64xbf16>
    %cst_27 = arith.constant dense<0.000000e+00> : vector<8x8xf32>
    %67 = tpu.matmul %64, %66, %cst_27 {dimension_numbers = #tpu.dot_dimension_numbers<[1], [1], [0], [0], [0, 0, 1, 0], [], []>} : vector<8x64xbf16>, vector<8x64xbf16>, vector<8x8xf32> -> vector<8x8xf32>
    %68 = vector.broadcast %10 : vector<1x8xf32> to vector<8x8xf32>
    %69 = arith.addf %67, %68 : vector<8x8xf32>
    %cst_28 = arith.constant dense<0xFF800000> : vector<8xf32>
    %70 = vector.multi_reduction <maximumf>, %69, %cst_28 [1] : vector<8x8xf32> to vector<8xf32>
    %71 = vector.shape_cast %70 : vector<8xf32> to vector<8x1xf32>
    %72 = vector.broadcast %71 : vector<8x1xf32> to vector<8x8xf32>
    %73 = arith.subf %69, %72 : vector<8x8xf32>
    %74 = math.exp %73 : vector<8x8xf32>
    %cst_29 = arith.constant dense<0.000000e+00> : vector<8xf32>
    %75 = vector.multi_reduction <add>, %74, %cst_29 [1] : vector<8x8xf32> to vector<8xf32>
    %76 = vector.shape_cast %75 : vector<8xf32> to vector<8x1xf32>
    %77 = tpu.reciprocal %76 {approx = true} : vector<8x1xf32> -> vector<8x1xf32>
    %78 = vector.broadcast %77 : vector<8x1xf32> to vector<8x8xf32>
    %79 = arith.mulf %74, %78 : vector<8x8xf32>
    %80 = vector.extract_strided_slice %36 {offsets = [0, 64], sizes = [8, 64], strides = [1, 1]} : vector<8x128xf32> to vector<8x64xf32>
    %81 = arith.truncf %80 : vector<8x64xf32> to vector<8x64xbf16>
    %82 = arith.truncf %79 : vector<8x8xf32> to vector<8x8xbf16>
    %cst_30 = arith.constant dense<0.000000e+00> : vector<8x64xf32>
    %83 = tpu.matmul %82, %81, %cst_30 {dimension_numbers = #tpu.dot_dimension_numbers<[1], [0], [0], [1], [0, 0, 1, 1], [], []>} : vector<8x8xbf16>, vector<8x64xbf16>, vector<8x64xf32> -> vector<8x64xf32>
    %84 = vector.extract_strided_slice %38 {offsets = [64, 0], sizes = [64, 128], strides = [1, 1]} : vector<128x128xbf16> to vector<64x128xbf16>
    %85 = arith.truncf %83 : vector<8x64xf32> to vector<8x64xbf16>
    %cst_31 = arith.constant dense<0.000000e+00> : vector<8x128xf32>
    %86 = tpu.matmul %85, %84, %cst_31 {dimension_numbers = #tpu.dot_dimension_numbers<[1], [0], [0], [1], [0, 0, 1, 1], [], []>} : vector<8x64xbf16>, vector<64x128xbf16>, vector<8x128xf32> -> vector<8x128xf32>
    %87 = arith.addf %62, %86 : vector<8x128xf32>
    %c0_32 = arith.constant 0 : index
    %c0_33 = arith.constant 0 : index
    %c0_34 = arith.constant 0 : index
    %88 = vector.load %arg9[%c0_32, %c0_33, %c0_34] : memref<3x1x128xf32, #tpu.memory_space<vmem>>, vector<1x1x128xf32>
    %89 = vector.shape_cast %88 : vector<1x1x128xf32> to vector<1x128xf32>
    %90 = vector.broadcast %89 : vector<1x128xf32> to vector<8x128xf32>
    %91 = arith.addf %87, %90 : vector<8x128xf32>
    %92 = arith.addf %23, %91 : vector<8x128xf32>
    %c0_35 = arith.constant 0 : index
    %c0_36 = arith.constant 0 : index
    %c0_37 = arith.constant 0 : index
    %93 = vector.load %arg14[%c0_35, %c0_36, %c0_37] : memref<3x1x128xf32, #tpu.memory_space<vmem>>, vector<1x1x128xf32>
    %94 = vector.shape_cast %93 : vector<1x1x128xf32> to vector<1x128xf32>
    %c0_38 = arith.constant 0 : index
    %c0_39 = arith.constant 0 : index
    %c0_40 = arith.constant 0 : index
    %95 = vector.load %arg15[%c0_38, %c0_39, %c0_40] : memref<3x1x128xf32, #tpu.memory_space<vmem>>, vector<1x1x128xf32>
    %96 = vector.shape_cast %95 : vector<1x1x128xf32> to vector<1x128xf32>
    %cst_41 = arith.constant dense<0.000000e+00> : vector<8xf32>
    %97 = vector.multi_reduction <add>, %92, %cst_41 [1] : vector<8x128xf32> to vector<8xf32>
    %98 = vector.shape_cast %97 : vector<8xf32> to vector<8x1xf32>
    %cst_42 = arith.constant 1.280000e+02 : f32
    %99 = vector.broadcast %cst_42 : f32 to vector<8x1xf32>
    %100 = arith.divf %98, %99 : vector<8x1xf32>
    %101 = vector.broadcast %100 : vector<8x1xf32> to vector<8x128xf32>
    %102 = arith.subf %92, %101 : vector<8x128xf32>
    %103 = arith.mulf %102, %102 : vector<8x128xf32>
    %cst_43 = arith.constant dense<0.000000e+00> : vector<8xf32>
    %104 = vector.multi_reduction <add>, %103, %cst_43 [1] : vector<8x128xf32> to vector<8xf32>
    %105 = vector.shape_cast %104 : vector<8xf32> to vector<8x1xf32>
    %cst_44 = arith.constant 1.280000e+02 : f32
    %106 = vector.broadcast %cst_44 : f32 to vector<8x1xf32>
    %107 = arith.divf %105, %106 : vector<8x1xf32>
    %108 = vector.broadcast %100 : vector<8x1xf32> to vector<8x128xf32>
    %109 = arith.subf %92, %108 : vector<8x128xf32>
    %cst_45 = arith.constant 9.99999997E-7 : f32
    %110 = vector.broadcast %cst_45 : f32 to vector<8x1xf32>
    %111 = arith.addf %107, %110 : vector<8x1xf32>
    %112 = math.rsqrt %111 : vector<8x1xf32>
    %113 = vector.broadcast %112 : vector<8x1xf32> to vector<8x128xf32>
    %114 = arith.mulf %109, %113 : vector<8x128xf32>
    %115 = vector.broadcast %94 : vector<1x128xf32> to vector<8x128xf32>
    %116 = arith.mulf %114, %115 : vector<8x128xf32>
    %117 = vector.broadcast %96 : vector<1x128xf32> to vector<8x128xf32>
    %118 = arith.addf %116, %117 : vector<8x128xf32>
    %c0_46 = arith.constant 0 : index
    %c0_47 = arith.constant 0 : index
    %c0_48 = arith.constant 0 : index
    %119 = vector.load %arg10[%c0_46, %c0_47, %c0_48] : memref<3x128x512xbf16, #tpu.memory_space<vmem>>, vector<1x128x512xbf16>
    %120 = vector.shape_cast %119 : vector<1x128x512xbf16> to vector<128x512xbf16>
    %121 = arith.truncf %118 : vector<8x128xf32> to vector<8x128xbf16>
    %cst_49 = arith.constant dense<0.000000e+00> : vector<8x512xf32>
    %122 = tpu.matmul %121, %120, %cst_49 {dimension_numbers = #tpu.dot_dimension_numbers<[1], [0], [0], [1], [0, 0, 1, 1], [], []>} : vector<8x128xbf16>, vector<128x512xbf16>, vector<8x512xf32> -> vector<8x512xf32>
    %c0_50 = arith.constant 0 : index
    %c0_51 = arith.constant 0 : index
    %c0_52 = arith.constant 0 : index
    %123 = vector.load %arg11[%c0_50, %c0_51, %c0_52] : memref<3x1x512xf32, #tpu.memory_space<vmem>>, vector<1x1x512xf32>
    %124 = vector.shape_cast %123 : vector<1x1x512xf32> to vector<1x512xf32>
    %125 = vector.broadcast %124 : vector<1x512xf32> to vector<8x512xf32>
    %126 = arith.addf %122, %125 : vector<8x512xf32>
    %cst_53 = arith.constant 0.000000e+00 : f32
    %127 = vector.broadcast %cst_53 : f32 to vector<8x512xf32>
    %128 = arith.maximumf %126, %127 : vector<8x512xf32>
    %c0_54 = arith.constant 0 : index
    %c0_55 = arith.constant 0 : index
    %c0_56 = arith.constant 0 : index
    %129 = vector.load %arg12[%c0_54, %c0_55, %c0_56] : memref<3x512x128xbf16, #tpu.memory_space<vmem>>, vector<1x512x128xbf16>
    %130 = vector.shape_cast %129 : vector<1x512x128xbf16> to vector<512x128xbf16>
    %131 = arith.truncf %128 : vector<8x512xf32> to vector<8x512xbf16>
    %cst_57 = arith.constant dense<0.000000e+00> : vector<8x128xf32>
    %132 = tpu.matmul %131, %130, %cst_57 {dimension_numbers = #tpu.dot_dimension_numbers<[1], [0], [0], [1], [0, 0, 1, 1], [], []>} : vector<8x512xbf16>, vector<512x128xbf16>, vector<8x128xf32> -> vector<8x128xf32>
    %c0_58 = arith.constant 0 : index
    %c0_59 = arith.constant 0 : index
    %c0_60 = arith.constant 0 : index
    %133 = vector.load %arg13[%c0_58, %c0_59, %c0_60] : memref<3x1x128xf32, #tpu.memory_space<vmem>>, vector<1x1x128xf32>
    %134 = vector.shape_cast %133 : vector<1x1x128xf32> to vector<1x128xf32>
    %135 = vector.broadcast %134 : vector<1x128xf32> to vector<8x128xf32>
    %136 = arith.addf %132, %135 : vector<8x128xf32>
    %137 = arith.addf %118, %136 : vector<8x128xf32>
    %c0_61 = arith.constant 0 : index
    %c0_62 = arith.constant 0 : index
    %c0_63 = arith.constant 0 : index
    %138 = vector.load %arg16[%c0_61, %c0_62, %c0_63] : memref<3x1x128xf32, #tpu.memory_space<vmem>>, vector<1x1x128xf32>
    %139 = vector.shape_cast %138 : vector<1x1x128xf32> to vector<1x128xf32>
    %c0_64 = arith.constant 0 : index
    %c0_65 = arith.constant 0 : index
    %c0_66 = arith.constant 0 : index
    %140 = vector.load %arg17[%c0_64, %c0_65, %c0_66] : memref<3x1x128xf32, #tpu.memory_space<vmem>>, vector<1x1x128xf32>
    %141 = vector.shape_cast %140 : vector<1x1x128xf32> to vector<1x128xf32>
    %cst_67 = arith.constant dense<0.000000e+00> : vector<8xf32>
    %142 = vector.multi_reduction <add>, %137, %cst_67 [1] : vector<8x128xf32> to vector<8xf32>
    %143 = vector.shape_cast %142 : vector<8xf32> to vector<8x1xf32>
    %cst_68 = arith.constant 1.280000e+02 : f32
    %144 = vector.broadcast %cst_68 : f32 to vector<8x1xf32>
    %145 = arith.divf %143, %144 : vector<8x1xf32>
    %146 = vector.broadcast %145 : vector<8x1xf32> to vector<8x128xf32>
    %147 = arith.subf %137, %146 : vector<8x128xf32>
    %148 = arith.mulf %147, %147 : vector<8x128xf32>
    %cst_69 = arith.constant dense<0.000000e+00> : vector<8xf32>
    %149 = vector.multi_reduction <add>, %148, %cst_69 [1] : vector<8x128xf32> to vector<8xf32>
    %150 = vector.shape_cast %149 : vector<8xf32> to vector<8x1xf32>
    %cst_70 = arith.constant 1.280000e+02 : f32
    %151 = vector.broadcast %cst_70 : f32 to vector<8x1xf32>
    %152 = arith.divf %150, %151 : vector<8x1xf32>
    %153 = vector.broadcast %145 : vector<8x1xf32> to vector<8x128xf32>
    %154 = arith.subf %137, %153 : vector<8x128xf32>
    %cst_71 = arith.constant 9.99999997E-7 : f32
    %155 = vector.broadcast %cst_71 : f32 to vector<8x1xf32>
    %156 = arith.addf %152, %155 : vector<8x1xf32>
    %157 = math.rsqrt %156 : vector<8x1xf32>
    %158 = vector.broadcast %157 : vector<8x1xf32> to vector<8x128xf32>
    %159 = arith.mulf %154, %158 : vector<8x128xf32>
    %160 = vector.broadcast %139 : vector<1x128xf32> to vector<8x128xf32>
    %161 = arith.mulf %159, %160 : vector<8x128xf32>
    %162 = vector.broadcast %141 : vector<1x128xf32> to vector<8x128xf32>
    %163 = arith.addf %161, %162 : vector<8x128xf32>
    %c1 = arith.constant 1 : index
    %c0_72 = arith.constant 0 : index
    %c0_73 = arith.constant 0 : index
    %164 = vector.load %arg6[%c1, %c0_72, %c0_73] : memref<3x128x384xbf16, #tpu.memory_space<vmem>>, vector<1x128x384xbf16>
    %165 = vector.shape_cast %164 : vector<1x128x384xbf16> to vector<128x384xbf16>
    %166 = arith.truncf %163 : vector<8x128xf32> to vector<8x128xbf16>
    %cst_74 = arith.constant dense<0.000000e+00> : vector<8x384xf32>
    %167 = tpu.matmul %166, %165, %cst_74 {dimension_numbers = #tpu.dot_dimension_numbers<[1], [0], [0], [1], [0, 0, 1, 1], [], []>} : vector<8x128xbf16>, vector<128x384xbf16>, vector<8x384xf32> -> vector<8x384xf32>
    %c1_75 = arith.constant 1 : index
    %c0_76 = arith.constant 0 : index
    %c0_77 = arith.constant 0 : index
    %168 = vector.load %arg7[%c1_75, %c0_76, %c0_77] : memref<3x1x384xf32, #tpu.memory_space<vmem>>, vector<1x1x384xf32>
    %169 = vector.shape_cast %168 : vector<1x1x384xf32> to vector<1x384xf32>
    %170 = vector.broadcast %169 : vector<1x384xf32> to vector<8x384xf32>
    %171 = arith.addf %167, %170 : vector<8x384xf32>
    %172 = vector.extract_strided_slice %171 {offsets = [0, 0], sizes = [8, 128], strides = [1, 1]} : vector<8x384xf32> to vector<8x128xf32>
    %cst_78 = arith.constant 1.250000e-01 : f32
    %173 = vector.broadcast %cst_78 : f32 to vector<8x128xf32>
    %174 = arith.mulf %172, %173 : vector<8x128xf32>
    %175 = vector.extract_strided_slice %171 {offsets = [0, 128], sizes = [8, 128], strides = [1, 1]} : vector<8x384xf32> to vector<8x128xf32>
    %176 = vector.extract_strided_slice %171 {offsets = [0, 256], sizes = [8, 128], strides = [1, 1]} : vector<8x384xf32> to vector<8x128xf32>
    %c1_79 = arith.constant 1 : index
    %c0_80 = arith.constant 0 : index
    %c0_81 = arith.constant 0 : index
    %177 = vector.load %arg8[%c1_79, %c0_80, %c0_81] : memref<3x128x128xbf16, #tpu.memory_space<vmem>>, vector<1x128x128xbf16>
    %178 = vector.shape_cast %177 : vector<1x128x128xbf16> to vector<128x128xbf16>
    %179 = vector.extract_strided_slice %174 {offsets = [0, 0], sizes = [8, 64], strides = [1, 1]} : vector<8x128xf32> to vector<8x64xf32>
    %180 = arith.truncf %179 : vector<8x64xf32> to vector<8x64xbf16>
    %181 = vector.extract_strided_slice %175 {offsets = [0, 0], sizes = [8, 64], strides = [1, 1]} : vector<8x128xf32> to vector<8x64xf32>
    %182 = arith.truncf %181 : vector<8x64xf32> to vector<8x64xbf16>
    %cst_82 = arith.constant dense<0.000000e+00> : vector<8x8xf32>
    %183 = tpu.matmul %180, %182, %cst_82 {dimension_numbers = #tpu.dot_dimension_numbers<[1], [1], [0], [0], [0, 0, 1, 0], [], []>} : vector<8x64xbf16>, vector<8x64xbf16>, vector<8x8xf32> -> vector<8x8xf32>
    %184 = vector.broadcast %10 : vector<1x8xf32> to vector<8x8xf32>
    %185 = arith.addf %183, %184 : vector<8x8xf32>
    %cst_83 = arith.constant dense<0xFF800000> : vector<8xf32>
    %186 = vector.multi_reduction <maximumf>, %185, %cst_83 [1] : vector<8x8xf32> to vector<8xf32>
    %187 = vector.shape_cast %186 : vector<8xf32> to vector<8x1xf32>
    %188 = vector.broadcast %187 : vector<8x1xf32> to vector<8x8xf32>
    %189 = arith.subf %185, %188 : vector<8x8xf32>
    %190 = math.exp %189 : vector<8x8xf32>
    %cst_84 = arith.constant dense<0.000000e+00> : vector<8xf32>
    %191 = vector.multi_reduction <add>, %190, %cst_84 [1] : vector<8x8xf32> to vector<8xf32>
    %192 = vector.shape_cast %191 : vector<8xf32> to vector<8x1xf32>
    %193 = tpu.reciprocal %192 {approx = true} : vector<8x1xf32> -> vector<8x1xf32>
    %194 = vector.broadcast %193 : vector<8x1xf32> to vector<8x8xf32>
    %195 = arith.mulf %190, %194 : vector<8x8xf32>
    %196 = vector.extract_strided_slice %176 {offsets = [0, 0], sizes = [8, 64], strides = [1, 1]} : vector<8x128xf32> to vector<8x64xf32>
    %197 = arith.truncf %196 : vector<8x64xf32> to vector<8x64xbf16>
    %198 = arith.truncf %195 : vector<8x8xf32> to vector<8x8xbf16>
    %cst_85 = arith.constant dense<0.000000e+00> : vector<8x64xf32>
    %199 = tpu.matmul %198, %197, %cst_85 {dimension_numbers = #tpu.dot_dimension_numbers<[1], [0], [0], [1], [0, 0, 1, 1], [], []>} : vector<8x8xbf16>, vector<8x64xbf16>, vector<8x64xf32> -> vector<8x64xf32>
    %200 = vector.extract_strided_slice %178 {offsets = [0, 0], sizes = [64, 128], strides = [1, 1]} : vector<128x128xbf16> to vector<64x128xbf16>
    %201 = arith.truncf %199 : vector<8x64xf32> to vector<8x64xbf16>
    %cst_86 = arith.constant dense<0.000000e+00> : vector<8x128xf32>
    %202 = tpu.matmul %201, %200, %cst_86 {dimension_numbers = #tpu.dot_dimension_numbers<[1], [0], [0], [1], [0, 0, 1, 1], [], []>} : vector<8x64xbf16>, vector<64x128xbf16>, vector<8x128xf32> -> vector<8x128xf32>
    %203 = vector.extract_strided_slice %174 {offsets = [0, 64], sizes = [8, 64], strides = [1, 1]} : vector<8x128xf32> to vector<8x64xf32>
    %204 = arith.truncf %203 : vector<8x64xf32> to vector<8x64xbf16>
    %205 = vector.extract_strided_slice %175 {offsets = [0, 64], sizes = [8, 64], strides = [1, 1]} : vector<8x128xf32> to vector<8x64xf32>
    %206 = arith.truncf %205 : vector<8x64xf32> to vector<8x64xbf16>
    %cst_87 = arith.constant dense<0.000000e+00> : vector<8x8xf32>
    %207 = tpu.matmul %204, %206, %cst_87 {dimension_numbers = #tpu.dot_dimension_numbers<[1], [1], [0], [0], [0, 0, 1, 0], [], []>} : vector<8x64xbf16>, vector<8x64xbf16>, vector<8x8xf32> -> vector<8x8xf32>
    %208 = vector.broadcast %10 : vector<1x8xf32> to vector<8x8xf32>
    %209 = arith.addf %207, %208 : vector<8x8xf32>
    %cst_88 = arith.constant dense<0xFF800000> : vector<8xf32>
    %210 = vector.multi_reduction <maximumf>, %209, %cst_88 [1] : vector<8x8xf32> to vector<8xf32>
    %211 = vector.shape_cast %210 : vector<8xf32> to vector<8x1xf32>
    %212 = vector.broadcast %211 : vector<8x1xf32> to vector<8x8xf32>
    %213 = arith.subf %209, %212 : vector<8x8xf32>
    %214 = math.exp %213 : vector<8x8xf32>
    %cst_89 = arith.constant dense<0.000000e+00> : vector<8xf32>
    %215 = vector.multi_reduction <add>, %214, %cst_89 [1] : vector<8x8xf32> to vector<8xf32>
    %216 = vector.shape_cast %215 : vector<8xf32> to vector<8x1xf32>
    %217 = tpu.reciprocal %216 {approx = true} : vector<8x1xf32> -> vector<8x1xf32>
    %218 = vector.broadcast %217 : vector<8x1xf32> to vector<8x8xf32>
    %219 = arith.mulf %214, %218 : vector<8x8xf32>
    %220 = vector.extract_strided_slice %176 {offsets = [0, 64], sizes = [8, 64], strides = [1, 1]} : vector<8x128xf32> to vector<8x64xf32>
    %221 = arith.truncf %220 : vector<8x64xf32> to vector<8x64xbf16>
    %222 = arith.truncf %219 : vector<8x8xf32> to vector<8x8xbf16>
    %cst_90 = arith.constant dense<0.000000e+00> : vector<8x64xf32>
    %223 = tpu.matmul %222, %221, %cst_90 {dimension_numbers = #tpu.dot_dimension_numbers<[1], [0], [0], [1], [0, 0, 1, 1], [], []>} : vector<8x8xbf16>, vector<8x64xbf16>, vector<8x64xf32> -> vector<8x64xf32>
    %224 = vector.extract_strided_slice %178 {offsets = [64, 0], sizes = [64, 128], strides = [1, 1]} : vector<128x128xbf16> to vector<64x128xbf16>
    %225 = arith.truncf %223 : vector<8x64xf32> to vector<8x64xbf16>
    %cst_91 = arith.constant dense<0.000000e+00> : vector<8x128xf32>
    %226 = tpu.matmul %225, %224, %cst_91 {dimension_numbers = #tpu.dot_dimension_numbers<[1], [0], [0], [1], [0, 0, 1, 1], [], []>} : vector<8x64xbf16>, vector<64x128xbf16>, vector<8x128xf32> -> vector<8x128xf32>
    %227 = arith.addf %202, %226 : vector<8x128xf32>
    %c1_92 = arith.constant 1 : index
    %c0_93 = arith.constant 0 : index
    %c0_94 = arith.constant 0 : index
    %228 = vector.load %arg9[%c1_92, %c0_93, %c0_94] : memref<3x1x128xf32, #tpu.memory_space<vmem>>, vector<1x1x128xf32>
    %229 = vector.shape_cast %228 : vector<1x1x128xf32> to vector<1x128xf32>
    %230 = vector.broadcast %229 : vector<1x128xf32> to vector<8x128xf32>
    %231 = arith.addf %227, %230 : vector<8x128xf32>
    %232 = arith.addf %163, %231 : vector<8x128xf32>
    %c1_95 = arith.constant 1 : index
    %c0_96 = arith.constant 0 : index
    %c0_97 = arith.constant 0 : index
    %233 = vector.load %arg14[%c1_95, %c0_96, %c0_97] : memref<3x1x128xf32, #tpu.memory_space<vmem>>, vector<1x1x128xf32>
    %234 = vector.shape_cast %233 : vector<1x1x128xf32> to vector<1x128xf32>
    %c1_98 = arith.constant 1 : index
    %c0_99 = arith.constant 0 : index
    %c0_100 = arith.constant 0 : index
    %235 = vector.load %arg15[%c1_98, %c0_99, %c0_100] : memref<3x1x128xf32, #tpu.memory_space<vmem>>, vector<1x1x128xf32>
    %236 = vector.shape_cast %235 : vector<1x1x128xf32> to vector<1x128xf32>
    %cst_101 = arith.constant dense<0.000000e+00> : vector<8xf32>
    %237 = vector.multi_reduction <add>, %232, %cst_101 [1] : vector<8x128xf32> to vector<8xf32>
    %238 = vector.shape_cast %237 : vector<8xf32> to vector<8x1xf32>
    %cst_102 = arith.constant 1.280000e+02 : f32
    %239 = vector.broadcast %cst_102 : f32 to vector<8x1xf32>
    %240 = arith.divf %238, %239 : vector<8x1xf32>
    %241 = vector.broadcast %240 : vector<8x1xf32> to vector<8x128xf32>
    %242 = arith.subf %232, %241 : vector<8x128xf32>
    %243 = arith.mulf %242, %242 : vector<8x128xf32>
    %cst_103 = arith.constant dense<0.000000e+00> : vector<8xf32>
    %244 = vector.multi_reduction <add>, %243, %cst_103 [1] : vector<8x128xf32> to vector<8xf32>
    %245 = vector.shape_cast %244 : vector<8xf32> to vector<8x1xf32>
    %cst_104 = arith.constant 1.280000e+02 : f32
    %246 = vector.broadcast %cst_104 : f32 to vector<8x1xf32>
    %247 = arith.divf %245, %246 : vector<8x1xf32>
    %248 = vector.broadcast %240 : vector<8x1xf32> to vector<8x128xf32>
    %249 = arith.subf %232, %248 : vector<8x128xf32>
    %cst_105 = arith.constant 9.99999997E-7 : f32
    %250 = vector.broadcast %cst_105 : f32 to vector<8x1xf32>
    %251 = arith.addf %247, %250 : vector<8x1xf32>
    %252 = math.rsqrt %251 : vector<8x1xf32>
    %253 = vector.broadcast %252 : vector<8x1xf32> to vector<8x128xf32>
    %254 = arith.mulf %249, %253 : vector<8x128xf32>
    %255 = vector.broadcast %234 : vector<1x128xf32> to vector<8x128xf32>
    %256 = arith.mulf %254, %255 : vector<8x128xf32>
    %257 = vector.broadcast %236 : vector<1x128xf32> to vector<8x128xf32>
    %258 = arith.addf %256, %257 : vector<8x128xf32>
    %c1_106 = arith.constant 1 : index
    %c0_107 = arith.constant 0 : index
    %c0_108 = arith.constant 0 : index
    %259 = vector.load %arg10[%c1_106, %c0_107, %c0_108] : memref<3x128x512xbf16, #tpu.memory_space<vmem>>, vector<1x128x512xbf16>
    %260 = vector.shape_cast %259 : vector<1x128x512xbf16> to vector<128x512xbf16>
    %261 = arith.truncf %258 : vector<8x128xf32> to vector<8x128xbf16>
    %cst_109 = arith.constant dense<0.000000e+00> : vector<8x512xf32>
    %262 = tpu.matmul %261, %260, %cst_109 {dimension_numbers = #tpu.dot_dimension_numbers<[1], [0], [0], [1], [0, 0, 1, 1], [], []>} : vector<8x128xbf16>, vector<128x512xbf16>, vector<8x512xf32> -> vector<8x512xf32>
    %c1_110 = arith.constant 1 : index
    %c0_111 = arith.constant 0 : index
    %c0_112 = arith.constant 0 : index
    %263 = vector.load %arg11[%c1_110, %c0_111, %c0_112] : memref<3x1x512xf32, #tpu.memory_space<vmem>>, vector<1x1x512xf32>
    %264 = vector.shape_cast %263 : vector<1x1x512xf32> to vector<1x512xf32>
    %265 = vector.broadcast %264 : vector<1x512xf32> to vector<8x512xf32>
    %266 = arith.addf %262, %265 : vector<8x512xf32>
    %cst_113 = arith.constant 0.000000e+00 : f32
    %267 = vector.broadcast %cst_113 : f32 to vector<8x512xf32>
    %268 = arith.maximumf %266, %267 : vector<8x512xf32>
    %c1_114 = arith.constant 1 : index
    %c0_115 = arith.constant 0 : index
    %c0_116 = arith.constant 0 : index
    %269 = vector.load %arg12[%c1_114, %c0_115, %c0_116] : memref<3x512x128xbf16, #tpu.memory_space<vmem>>, vector<1x512x128xbf16>
    %270 = vector.shape_cast %269 : vector<1x512x128xbf16> to vector<512x128xbf16>
    %271 = arith.truncf %268 : vector<8x512xf32> to vector<8x512xbf16>
    %cst_117 = arith.constant dense<0.000000e+00> : vector<8x128xf32>
    %272 = tpu.matmul %271, %270, %cst_117 {dimension_numbers = #tpu.dot_dimension_numbers<[1], [0], [0], [1], [0, 0, 1, 1], [], []>} : vector<8x512xbf16>, vector<512x128xbf16>, vector<8x128xf32> -> vector<8x128xf32>
    %c1_118 = arith.constant 1 : index
    %c0_119 = arith.constant 0 : index
    %c0_120 = arith.constant 0 : index
    %273 = vector.load %arg13[%c1_118, %c0_119, %c0_120] : memref<3x1x128xf32, #tpu.memory_space<vmem>>, vector<1x1x128xf32>
    %274 = vector.shape_cast %273 : vector<1x1x128xf32> to vector<1x128xf32>
    %275 = vector.broadcast %274 : vector<1x128xf32> to vector<8x128xf32>
    %276 = arith.addf %272, %275 : vector<8x128xf32>
    %277 = arith.addf %258, %276 : vector<8x128xf32>
    %c1_121 = arith.constant 1 : index
    %c0_122 = arith.constant 0 : index
    %c0_123 = arith.constant 0 : index
    %278 = vector.load %arg16[%c1_121, %c0_122, %c0_123] : memref<3x1x128xf32, #tpu.memory_space<vmem>>, vector<1x1x128xf32>
    %279 = vector.shape_cast %278 : vector<1x1x128xf32> to vector<1x128xf32>
    %c1_124 = arith.constant 1 : index
    %c0_125 = arith.constant 0 : index
    %c0_126 = arith.constant 0 : index
    %280 = vector.load %arg17[%c1_124, %c0_125, %c0_126] : memref<3x1x128xf32, #tpu.memory_space<vmem>>, vector<1x1x128xf32>
    %281 = vector.shape_cast %280 : vector<1x1x128xf32> to vector<1x128xf32>
    %cst_127 = arith.constant dense<0.000000e+00> : vector<8xf32>
    %282 = vector.multi_reduction <add>, %277, %cst_127 [1] : vector<8x128xf32> to vector<8xf32>
    %283 = vector.shape_cast %282 : vector<8xf32> to vector<8x1xf32>
    %cst_128 = arith.constant 1.280000e+02 : f32
    %284 = vector.broadcast %cst_128 : f32 to vector<8x1xf32>
    %285 = arith.divf %283, %284 : vector<8x1xf32>
    %286 = vector.broadcast %285 : vector<8x1xf32> to vector<8x128xf32>
    %287 = arith.subf %277, %286 : vector<8x128xf32>
    %288 = arith.mulf %287, %287 : vector<8x128xf32>
    %cst_129 = arith.constant dense<0.000000e+00> : vector<8xf32>
    %289 = vector.multi_reduction <add>, %288, %cst_129 [1] : vector<8x128xf32> to vector<8xf32>
    %290 = vector.shape_cast %289 : vector<8xf32> to vector<8x1xf32>
    %cst_130 = arith.constant 1.280000e+02 : f32
    %291 = vector.broadcast %cst_130 : f32 to vector<8x1xf32>
    %292 = arith.divf %290, %291 : vector<8x1xf32>
    %293 = vector.broadcast %285 : vector<8x1xf32> to vector<8x128xf32>
    %294 = arith.subf %277, %293 : vector<8x128xf32>
    %cst_131 = arith.constant 9.99999997E-7 : f32
    %295 = vector.broadcast %cst_131 : f32 to vector<8x1xf32>
    %296 = arith.addf %292, %295 : vector<8x1xf32>
    %297 = math.rsqrt %296 : vector<8x1xf32>
    %298 = vector.broadcast %297 : vector<8x1xf32> to vector<8x128xf32>
    %299 = arith.mulf %294, %298 : vector<8x128xf32>
    %300 = vector.broadcast %279 : vector<1x128xf32> to vector<8x128xf32>
    %301 = arith.mulf %299, %300 : vector<8x128xf32>
    %302 = vector.broadcast %281 : vector<1x128xf32> to vector<8x128xf32>
    %303 = arith.addf %301, %302 : vector<8x128xf32>
    %c2 = arith.constant 2 : index
    %c0_132 = arith.constant 0 : index
    %c0_133 = arith.constant 0 : index
    %304 = vector.load %arg6[%c2, %c0_132, %c0_133] : memref<3x128x384xbf16, #tpu.memory_space<vmem>>, vector<1x128x384xbf16>
    %305 = vector.shape_cast %304 : vector<1x128x384xbf16> to vector<128x384xbf16>
    %306 = arith.truncf %303 : vector<8x128xf32> to vector<8x128xbf16>
    %cst_134 = arith.constant dense<0.000000e+00> : vector<8x384xf32>
    %307 = tpu.matmul %306, %305, %cst_134 {dimension_numbers = #tpu.dot_dimension_numbers<[1], [0], [0], [1], [0, 0, 1, 1], [], []>} : vector<8x128xbf16>, vector<128x384xbf16>, vector<8x384xf32> -> vector<8x384xf32>
    %c2_135 = arith.constant 2 : index
    %c0_136 = arith.constant 0 : index
    %c0_137 = arith.constant 0 : index
    %308 = vector.load %arg7[%c2_135, %c0_136, %c0_137] : memref<3x1x384xf32, #tpu.memory_space<vmem>>, vector<1x1x384xf32>
    %309 = vector.shape_cast %308 : vector<1x1x384xf32> to vector<1x384xf32>
    %310 = vector.broadcast %309 : vector<1x384xf32> to vector<8x384xf32>
    %311 = arith.addf %307, %310 : vector<8x384xf32>
    %312 = vector.extract_strided_slice %311 {offsets = [0, 0], sizes = [8, 128], strides = [1, 1]} : vector<8x384xf32> to vector<8x128xf32>
    %cst_138 = arith.constant 1.250000e-01 : f32
    %313 = vector.broadcast %cst_138 : f32 to vector<8x128xf32>
    %314 = arith.mulf %312, %313 : vector<8x128xf32>
    %315 = vector.extract_strided_slice %311 {offsets = [0, 128], sizes = [8, 128], strides = [1, 1]} : vector<8x384xf32> to vector<8x128xf32>
    %316 = vector.extract_strided_slice %311 {offsets = [0, 256], sizes = [8, 128], strides = [1, 1]} : vector<8x384xf32> to vector<8x128xf32>
    %c2_139 = arith.constant 2 : index
    %c0_140 = arith.constant 0 : index
    %c0_141 = arith.constant 0 : index
    %317 = vector.load %arg8[%c2_139, %c0_140, %c0_141] : memref<3x128x128xbf16, #tpu.memory_space<vmem>>, vector<1x128x128xbf16>
    %318 = vector.shape_cast %317 : vector<1x128x128xbf16> to vector<128x128xbf16>
    %319 = vector.extract_strided_slice %314 {offsets = [0, 0], sizes = [8, 64], strides = [1, 1]} : vector<8x128xf32> to vector<8x64xf32>
    %320 = arith.truncf %319 : vector<8x64xf32> to vector<8x64xbf16>
    %321 = vector.extract_strided_slice %315 {offsets = [0, 0], sizes = [8, 64], strides = [1, 1]} : vector<8x128xf32> to vector<8x64xf32>
    %322 = arith.truncf %321 : vector<8x64xf32> to vector<8x64xbf16>
    %cst_142 = arith.constant dense<0.000000e+00> : vector<8x8xf32>
    %323 = tpu.matmul %320, %322, %cst_142 {dimension_numbers = #tpu.dot_dimension_numbers<[1], [1], [0], [0], [0, 0, 1, 0], [], []>} : vector<8x64xbf16>, vector<8x64xbf16>, vector<8x8xf32> -> vector<8x8xf32>
    %324 = vector.broadcast %10 : vector<1x8xf32> to vector<8x8xf32>
    %325 = arith.addf %323, %324 : vector<8x8xf32>
    %cst_143 = arith.constant dense<0xFF800000> : vector<8xf32>
    %326 = vector.multi_reduction <maximumf>, %325, %cst_143 [1] : vector<8x8xf32> to vector<8xf32>
    %327 = vector.shape_cast %326 : vector<8xf32> to vector<8x1xf32>
    %328 = vector.broadcast %327 : vector<8x1xf32> to vector<8x8xf32>
    %329 = arith.subf %325, %328 : vector<8x8xf32>
    %330 = math.exp %329 : vector<8x8xf32>
    %cst_144 = arith.constant dense<0.000000e+00> : vector<8xf32>
    %331 = vector.multi_reduction <add>, %330, %cst_144 [1] : vector<8x8xf32> to vector<8xf32>
    %332 = vector.shape_cast %331 : vector<8xf32> to vector<8x1xf32>
    %333 = tpu.reciprocal %332 {approx = true} : vector<8x1xf32> -> vector<8x1xf32>
    %334 = vector.broadcast %333 : vector<8x1xf32> to vector<8x8xf32>
    %335 = arith.mulf %330, %334 : vector<8x8xf32>
    %336 = vector.extract_strided_slice %316 {offsets = [0, 0], sizes = [8, 64], strides = [1, 1]} : vector<8x128xf32> to vector<8x64xf32>
    %337 = arith.truncf %336 : vector<8x64xf32> to vector<8x64xbf16>
    %338 = arith.truncf %335 : vector<8x8xf32> to vector<8x8xbf16>
    %cst_145 = arith.constant dense<0.000000e+00> : vector<8x64xf32>
    %339 = tpu.matmul %338, %337, %cst_145 {dimension_numbers = #tpu.dot_dimension_numbers<[1], [0], [0], [1], [0, 0, 1, 1], [], []>} : vector<8x8xbf16>, vector<8x64xbf16>, vector<8x64xf32> -> vector<8x64xf32>
    %340 = vector.extract_strided_slice %318 {offsets = [0, 0], sizes = [64, 128], strides = [1, 1]} : vector<128x128xbf16> to vector<64x128xbf16>
    %341 = arith.truncf %339 : vector<8x64xf32> to vector<8x64xbf16>
    %cst_146 = arith.constant dense<0.000000e+00> : vector<8x128xf32>
    %342 = tpu.matmul %341, %340, %cst_146 {dimension_numbers = #tpu.dot_dimension_numbers<[1], [0], [0], [1], [0, 0, 1, 1], [], []>} : vector<8x64xbf16>, vector<64x128xbf16>, vector<8x128xf32> -> vector<8x128xf32>
    %343 = vector.extract_strided_slice %314 {offsets = [0, 64], sizes = [8, 64], strides = [1, 1]} : vector<8x128xf32> to vector<8x64xf32>
    %344 = arith.truncf %343 : vector<8x64xf32> to vector<8x64xbf16>
    %345 = vector.extract_strided_slice %315 {offsets = [0, 64], sizes = [8, 64], strides = [1, 1]} : vector<8x128xf32> to vector<8x64xf32>
    %346 = arith.truncf %345 : vector<8x64xf32> to vector<8x64xbf16>
    %cst_147 = arith.constant dense<0.000000e+00> : vector<8x8xf32>
    %347 = tpu.matmul %344, %346, %cst_147 {dimension_numbers = #tpu.dot_dimension_numbers<[1], [1], [0], [0], [0, 0, 1, 0], [], []>} : vector<8x64xbf16>, vector<8x64xbf16>, vector<8x8xf32> -> vector<8x8xf32>
    %348 = vector.broadcast %10 : vector<1x8xf32> to vector<8x8xf32>
    %349 = arith.addf %347, %348 : vector<8x8xf32>
    %cst_148 = arith.constant dense<0xFF800000> : vector<8xf32>
    %350 = vector.multi_reduction <maximumf>, %349, %cst_148 [1] : vector<8x8xf32> to vector<8xf32>
    %351 = vector.shape_cast %350 : vector<8xf32> to vector<8x1xf32>
    %352 = vector.broadcast %351 : vector<8x1xf32> to vector<8x8xf32>
    %353 = arith.subf %349, %352 : vector<8x8xf32>
    %354 = math.exp %353 : vector<8x8xf32>
    %cst_149 = arith.constant dense<0.000000e+00> : vector<8xf32>
    %355 = vector.multi_reduction <add>, %354, %cst_149 [1] : vector<8x8xf32> to vector<8xf32>
    %356 = vector.shape_cast %355 : vector<8xf32> to vector<8x1xf32>
    %357 = tpu.reciprocal %356 {approx = true} : vector<8x1xf32> -> vector<8x1xf32>
    %358 = vector.broadcast %357 : vector<8x1xf32> to vector<8x8xf32>
    %359 = arith.mulf %354, %358 : vector<8x8xf32>
    %360 = vector.extract_strided_slice %316 {offsets = [0, 64], sizes = [8, 64], strides = [1, 1]} : vector<8x128xf32> to vector<8x64xf32>
    %361 = arith.truncf %360 : vector<8x64xf32> to vector<8x64xbf16>
    %362 = arith.truncf %359 : vector<8x8xf32> to vector<8x8xbf16>
    %cst_150 = arith.constant dense<0.000000e+00> : vector<8x64xf32>
    %363 = tpu.matmul %362, %361, %cst_150 {dimension_numbers = #tpu.dot_dimension_numbers<[1], [0], [0], [1], [0, 0, 1, 1], [], []>} : vector<8x8xbf16>, vector<8x64xbf16>, vector<8x64xf32> -> vector<8x64xf32>
    %364 = vector.extract_strided_slice %318 {offsets = [64, 0], sizes = [64, 128], strides = [1, 1]} : vector<128x128xbf16> to vector<64x128xbf16>
    %365 = arith.truncf %363 : vector<8x64xf32> to vector<8x64xbf16>
    %cst_151 = arith.constant dense<0.000000e+00> : vector<8x128xf32>
    %366 = tpu.matmul %365, %364, %cst_151 {dimension_numbers = #tpu.dot_dimension_numbers<[1], [0], [0], [1], [0, 0, 1, 1], [], []>} : vector<8x64xbf16>, vector<64x128xbf16>, vector<8x128xf32> -> vector<8x128xf32>
    %367 = arith.addf %342, %366 : vector<8x128xf32>
    %c2_152 = arith.constant 2 : index
    %c0_153 = arith.constant 0 : index
    %c0_154 = arith.constant 0 : index
    %368 = vector.load %arg9[%c2_152, %c0_153, %c0_154] : memref<3x1x128xf32, #tpu.memory_space<vmem>>, vector<1x1x128xf32>
    %369 = vector.shape_cast %368 : vector<1x1x128xf32> to vector<1x128xf32>
    %370 = vector.broadcast %369 : vector<1x128xf32> to vector<8x128xf32>
    %371 = arith.addf %367, %370 : vector<8x128xf32>
    %372 = arith.addf %303, %371 : vector<8x128xf32>
    %c2_155 = arith.constant 2 : index
    %c0_156 = arith.constant 0 : index
    %c0_157 = arith.constant 0 : index
    %373 = vector.load %arg14[%c2_155, %c0_156, %c0_157] : memref<3x1x128xf32, #tpu.memory_space<vmem>>, vector<1x1x128xf32>
    %374 = vector.shape_cast %373 : vector<1x1x128xf32> to vector<1x128xf32>
    %c2_158 = arith.constant 2 : index
    %c0_159 = arith.constant 0 : index
    %c0_160 = arith.constant 0 : index
    %375 = vector.load %arg15[%c2_158, %c0_159, %c0_160] : memref<3x1x128xf32, #tpu.memory_space<vmem>>, vector<1x1x128xf32>
    %376 = vector.shape_cast %375 : vector<1x1x128xf32> to vector<1x128xf32>
    %cst_161 = arith.constant dense<0.000000e+00> : vector<8xf32>
    %377 = vector.multi_reduction <add>, %372, %cst_161 [1] : vector<8x128xf32> to vector<8xf32>
    %378 = vector.shape_cast %377 : vector<8xf32> to vector<8x1xf32>
    %cst_162 = arith.constant 1.280000e+02 : f32
    %379 = vector.broadcast %cst_162 : f32 to vector<8x1xf32>
    %380 = arith.divf %378, %379 : vector<8x1xf32>
    %381 = vector.broadcast %380 : vector<8x1xf32> to vector<8x128xf32>
    %382 = arith.subf %372, %381 : vector<8x128xf32>
    %383 = arith.mulf %382, %382 : vector<8x128xf32>
    %cst_163 = arith.constant dense<0.000000e+00> : vector<8xf32>
    %384 = vector.multi_reduction <add>, %383, %cst_163 [1] : vector<8x128xf32> to vector<8xf32>
    %385 = vector.shape_cast %384 : vector<8xf32> to vector<8x1xf32>
    %cst_164 = arith.constant 1.280000e+02 : f32
    %386 = vector.broadcast %cst_164 : f32 to vector<8x1xf32>
    %387 = arith.divf %385, %386 : vector<8x1xf32>
    %388 = vector.broadcast %380 : vector<8x1xf32> to vector<8x128xf32>
    %389 = arith.subf %372, %388 : vector<8x128xf32>
    %cst_165 = arith.constant 9.99999997E-7 : f32
    %390 = vector.broadcast %cst_165 : f32 to vector<8x1xf32>
    %391 = arith.addf %387, %390 : vector<8x1xf32>
    %392 = math.rsqrt %391 : vector<8x1xf32>
    %393 = vector.broadcast %392 : vector<8x1xf32> to vector<8x128xf32>
    %394 = arith.mulf %389, %393 : vector<8x128xf32>
    %395 = vector.broadcast %374 : vector<1x128xf32> to vector<8x128xf32>
    %396 = arith.mulf %394, %395 : vector<8x128xf32>
    %397 = vector.broadcast %376 : vector<1x128xf32> to vector<8x128xf32>
    %398 = arith.addf %396, %397 : vector<8x128xf32>
    %c2_166 = arith.constant 2 : index
    %c0_167 = arith.constant 0 : index
    %c0_168 = arith.constant 0 : index
    %399 = vector.load %arg10[%c2_166, %c0_167, %c0_168] : memref<3x128x512xbf16, #tpu.memory_space<vmem>>, vector<1x128x512xbf16>
    %400 = vector.shape_cast %399 : vector<1x128x512xbf16> to vector<128x512xbf16>
    %401 = arith.truncf %398 : vector<8x128xf32> to vector<8x128xbf16>
    %cst_169 = arith.constant dense<0.000000e+00> : vector<8x512xf32>
    %402 = tpu.matmul %401, %400, %cst_169 {dimension_numbers = #tpu.dot_dimension_numbers<[1], [0], [0], [1], [0, 0, 1, 1], [], []>} : vector<8x128xbf16>, vector<128x512xbf16>, vector<8x512xf32> -> vector<8x512xf32>
    %c2_170 = arith.constant 2 : index
    %c0_171 = arith.constant 0 : index
    %c0_172 = arith.constant 0 : index
    %403 = vector.load %arg11[%c2_170, %c0_171, %c0_172] : memref<3x1x512xf32, #tpu.memory_space<vmem>>, vector<1x1x512xf32>
    %404 = vector.shape_cast %403 : vector<1x1x512xf32> to vector<1x512xf32>
    %405 = vector.broadcast %404 : vector<1x512xf32> to vector<8x512xf32>
    %406 = arith.addf %402, %405 : vector<8x512xf32>
    %cst_173 = arith.constant 0.000000e+00 : f32
    %407 = vector.broadcast %cst_173 : f32 to vector<8x512xf32>
    %408 = arith.maximumf %406, %407 : vector<8x512xf32>
    %c2_174 = arith.constant 2 : index
    %c0_175 = arith.constant 0 : index
    %c0_176 = arith.constant 0 : index
    %409 = vector.load %arg12[%c2_174, %c0_175, %c0_176] : memref<3x512x128xbf16, #tpu.memory_space<vmem>>, vector<1x512x128xbf16>
    %410 = vector.shape_cast %409 : vector<1x512x128xbf16> to vector<512x128xbf16>
    %411 = arith.truncf %408 : vector<8x512xf32> to vector<8x512xbf16>
    %cst_177 = arith.constant dense<0.000000e+00> : vector<8x128xf32>
    %412 = tpu.matmul %411, %410, %cst_177 {dimension_numbers = #tpu.dot_dimension_numbers<[1], [0], [0], [1], [0, 0, 1, 1], [], []>} : vector<8x512xbf16>, vector<512x128xbf16>, vector<8x128xf32> -> vector<8x128xf32>
    %c2_178 = arith.constant 2 : index
    %c0_179 = arith.constant 0 : index
    %c0_180 = arith.constant 0 : index
    %413 = vector.load %arg13[%c2_178, %c0_179, %c0_180] : memref<3x1x128xf32, #tpu.memory_space<vmem>>, vector<1x1x128xf32>
    %414 = vector.shape_cast %413 : vector<1x1x128xf32> to vector<1x128xf32>
    %415 = vector.broadcast %414 : vector<1x128xf32> to vector<8x128xf32>
    %416 = arith.addf %412, %415 : vector<8x128xf32>
    %417 = arith.addf %398, %416 : vector<8x128xf32>
    %c2_181 = arith.constant 2 : index
    %c0_182 = arith.constant 0 : index
    %c0_183 = arith.constant 0 : index
    %418 = vector.load %arg16[%c2_181, %c0_182, %c0_183] : memref<3x1x128xf32, #tpu.memory_space<vmem>>, vector<1x1x128xf32>
    %419 = vector.shape_cast %418 : vector<1x1x128xf32> to vector<1x128xf32>
    %c2_184 = arith.constant 2 : index
    %c0_185 = arith.constant 0 : index
    %c0_186 = arith.constant 0 : index
    %420 = vector.load %arg17[%c2_184, %c0_185, %c0_186] : memref<3x1x128xf32, #tpu.memory_space<vmem>>, vector<1x1x128xf32>
    %421 = vector.shape_cast %420 : vector<1x1x128xf32> to vector<1x128xf32>
    %cst_187 = arith.constant dense<0.000000e+00> : vector<8xf32>
    %422 = vector.multi_reduction <add>, %417, %cst_187 [1] : vector<8x128xf32> to vector<8xf32>
    %423 = vector.shape_cast %422 : vector<8xf32> to vector<8x1xf32>
    %cst_188 = arith.constant 1.280000e+02 : f32
    %424 = vector.broadcast %cst_188 : f32 to vector<8x1xf32>
    %425 = arith.divf %423, %424 : vector<8x1xf32>
    %426 = vector.broadcast %425 : vector<8x1xf32> to vector<8x128xf32>
    %427 = arith.subf %417, %426 : vector<8x128xf32>
    %428 = arith.mulf %427, %427 : vector<8x128xf32>
    %cst_189 = arith.constant dense<0.000000e+00> : vector<8xf32>
    %429 = vector.multi_reduction <add>, %428, %cst_189 [1] : vector<8x128xf32> to vector<8xf32>
    %430 = vector.shape_cast %429 : vector<8xf32> to vector<8x1xf32>
    %cst_190 = arith.constant 1.280000e+02 : f32
    %431 = vector.broadcast %cst_190 : f32 to vector<8x1xf32>
    %432 = arith.divf %430, %431 : vector<8x1xf32>
    %433 = vector.broadcast %425 : vector<8x1xf32> to vector<8x128xf32>
    %434 = arith.subf %417, %433 : vector<8x128xf32>
    %cst_191 = arith.constant 9.99999997E-7 : f32
    %435 = vector.broadcast %cst_191 : f32 to vector<8x1xf32>
    %436 = arith.addf %432, %435 : vector<8x1xf32>
    %437 = math.rsqrt %436 : vector<8x1xf32>
    %438 = vector.broadcast %437 : vector<8x1xf32> to vector<8x128xf32>
    %439 = arith.mulf %434, %438 : vector<8x128xf32>
    %440 = vector.broadcast %419 : vector<1x128xf32> to vector<8x128xf32>
    %441 = arith.mulf %439, %440 : vector<8x128xf32>
    %442 = vector.broadcast %421 : vector<1x128xf32> to vector<8x128xf32>
    %443 = arith.addf %441, %442 : vector<8x128xf32>
    %cst_192 = arith.constant 0.000000e+00 : f32
    %444 = vector.broadcast %cst_192 : f32 to vector<8x128xf32>
    %445 = arith.maximumf %443, %444 : vector<8x128xf32>
    %c0_193 = arith.constant 0 : index
    %c0_194 = arith.constant 0 : index
    %446 = vector.load %arg18[%c0_193, %c0_194] : memref<128x128xbf16, #tpu.memory_space<vmem>>, vector<128x128xbf16>
    %447 = arith.truncf %445 : vector<8x128xf32> to vector<8x128xbf16>
    %cst_195 = arith.constant dense<0.000000e+00> : vector<8x128xf32>
    %448 = tpu.matmul %447, %446, %cst_195 {dimension_numbers = #tpu.dot_dimension_numbers<[1], [0], [0], [1], [0, 0, 1, 1], [], []>} : vector<8x128xbf16>, vector<128x128xbf16>, vector<8x128xf32> -> vector<8x128xf32>
    %c0_196 = arith.constant 0 : index
    %c0_197 = arith.constant 0 : index
    %449 = vector.load %arg19[%c0_196, %c0_197] : memref<1x128xf32, #tpu.memory_space<vmem>>, vector<1x128xf32>
    %450 = vector.broadcast %449 : vector<1x128xf32> to vector<8x128xf32>
    %451 = arith.addf %448, %450 : vector<8x128xf32>
    %cst_198 = arith.constant 0.000000e+00 : f32
    %452 = vector.broadcast %cst_198 : f32 to vector<8x128xf32>
    %453 = arith.maximumf %451, %452 : vector<8x128xf32>
    %454 = vector.broadcast %12 : vector<8x1xf32> to vector<8x128xf32>
    %455 = arith.mulf %453, %454 : vector<8x128xf32>
    %c0_199 = arith.constant 0 : index
    %c0_200 = arith.constant 0 : index
    %c0_201 = arith.constant 0 : index
    %456 = vector.load %arg20[%c0_199, %c0_200, %c0_201] : memref<1x8x128xf32, #tpu.memory_space<vmem>>, vector<1x8x128xf32>
    %457 = vector.shape_cast %456 : vector<1x8x128xf32> to vector<8x128xf32>
    %458 = vector.shape_cast %455 : vector<8x128xf32> to vector<1x8x128xf32>
    tpu.vector_store %arg20[%c0_199, %c0_200, %c0_201], %458 {strides = array<i32>} : memref<1x8x128xf32, #tpu.memory_space<vmem>>, vector<1x8x128xf32>,
    return
  }
  func.func @transform_0(%arg0: i32, %arg1: memref<2xi32, #tpu.memory_space<smem>>) -> (i32, i32, i32) {
    %c0_i32 = arith.constant 0 : i32
    %c0_i32_0 = arith.constant 0 : i32
    %c0_i32_1 = arith.constant 0 : i32
    return %arg0, %c0_i32, %c0_i32_0 : i32, i32, i32
  }
  func.func @transform_1(%arg0: i32, %arg1: memref<2xi32, #tpu.memory_space<smem>>) -> (i32, i32, i32) {
    %c0_i32 = arith.constant 0 : i32
    %c0_i32_0 = arith.constant 0 : i32
    %c0_i32_1 = arith.constant 0 : i32
    return %arg0, %c0_i32, %c0_i32_0 : i32, i32, i32
  }
  func.func @transform_2(%arg0: i32, %arg1: memref<2xi32, #tpu.memory_space<smem>>) -> (i32, i32) {
    %c0_i32 = arith.constant 0 : i32
    %c0_i32_0 = arith.constant 0 : i32
    %c0_i32_1 = arith.constant 0 : i32
    return %c0_i32, %c0_i32_0 : i32, i32
  }
  func.func @transform_3(%arg0: i32, %arg1: memref<2xi32, #tpu.memory_space<smem>>) -> (i32, i32) {
    %c0_i32 = arith.constant 0 : i32
    %c0_i32_0 = arith.constant 0 : i32
    %c0_i32_1 = arith.constant 0 : i32
    return %c0_i32, %c0_i32_0 : i32, i32
  }
  func.func @transform_4(%arg0: i32, %arg1: memref<2xi32, #tpu.memory_space<smem>>) -> (i32, i32, i32) {
    %c0_i32 = arith.constant 0 : i32
    %c0_i32_0 = arith.constant 0 : i32
    %c0_i32_1 = arith.constant 0 : i32
    %c0_i32_2 = arith.constant 0 : i32
    return %c0_i32, %c0_i32_0, %c0_i32_1 : i32, i32, i32
  }
  func.func @transform_5(%arg0: i32, %arg1: memref<2xi32, #tpu.memory_space<smem>>) -> (i32, i32, i32) {
    %c0_i32 = arith.constant 0 : i32
    %c0_i32_0 = arith.constant 0 : i32
    %c0_i32_1 = arith.constant 0 : i32
    %c0_i32_2 = arith.constant 0 : i32
    return %c0_i32, %c0_i32_0, %c0_i32_1 : i32, i32, i32
  }
  func.func @transform_6(%arg0: i32, %arg1: memref<2xi32, #tpu.memory_space<smem>>) -> (i32, i32, i32) {
    %c0_i32 = arith.constant 0 : i32
    %c0_i32_0 = arith.constant 0 : i32
    %c0_i32_1 = arith.constant 0 : i32
    %c0_i32_2 = arith.constant 0 : i32
    return %c0_i32, %c0_i32_0, %c0_i32_1 : i32, i32, i32
  }
  func.func @transform_7(%arg0: i32, %arg1: memref<2xi32, #tpu.memory_space<smem>>) -> (i32, i32, i32) {
    %c0_i32 = arith.constant 0 : i32
    %c0_i32_0 = arith.constant 0 : i32
    %c0_i32_1 = arith.constant 0 : i32
    %c0_i32_2 = arith.constant 0 : i32
    return %c0_i32, %c0_i32_0, %c0_i32_1 : i32, i32, i32
  }
  func.func @transform_8(%arg0: i32, %arg1: memref<2xi32, #tpu.memory_space<smem>>) -> (i32, i32, i32) {
    %c0_i32 = arith.constant 0 : i32
    %c0_i32_0 = arith.constant 0 : i32
    %c0_i32_1 = arith.constant 0 : i32
    %c0_i32_2 = arith.constant 0 : i32
    return %c0_i32, %c0_i32_0, %c0_i32_1 : i32, i32, i32
  }
  func.func @transform_9(%arg0: i32, %arg1: memref<2xi32, #tpu.memory_space<smem>>) -> (i32, i32, i32) {
    %c0_i32 = arith.constant 0 : i32
    %c0_i32_0 = arith.constant 0 : i32
    %c0_i32_1 = arith.constant 0 : i32
    %c0_i32_2 = arith.constant 0 : i32
    return %c0_i32, %c0_i32_0, %c0_i32_1 : i32, i32, i32
  }
  func.func @transform_10(%arg0: i32, %arg1: memref<2xi32, #tpu.memory_space<smem>>) -> (i32, i32, i32) {
    %c0_i32 = arith.constant 0 : i32
    %c0_i32_0 = arith.constant 0 : i32
    %c0_i32_1 = arith.constant 0 : i32
    %c0_i32_2 = arith.constant 0 : i32
    return %c0_i32, %c0_i32_0, %c0_i32_1 : i32, i32, i32
  }
  func.func @transform_11(%arg0: i32, %arg1: memref<2xi32, #tpu.memory_space<smem>>) -> (i32, i32, i32) {
    %c0_i32 = arith.constant 0 : i32
    %c0_i32_0 = arith.constant 0 : i32
    %c0_i32_1 = arith.constant 0 : i32
    %c0_i32_2 = arith.constant 0 : i32
    return %c0_i32, %c0_i32_0, %c0_i32_1 : i32, i32, i32
  }
  func.func @transform_12(%arg0: i32, %arg1: memref<2xi32, #tpu.memory_space<smem>>) -> (i32, i32, i32) {
    %c0_i32 = arith.constant 0 : i32
    %c0_i32_0 = arith.constant 0 : i32
    %c0_i32_1 = arith.constant 0 : i32
    %c0_i32_2 = arith.constant 0 : i32
    return %c0_i32, %c0_i32_0, %c0_i32_1 : i32, i32, i32
  }
  func.func @transform_13(%arg0: i32, %arg1: memref<2xi32, #tpu.memory_space<smem>>) -> (i32, i32, i32) {
    %c0_i32 = arith.constant 0 : i32
    %c0_i32_0 = arith.constant 0 : i32
    %c0_i32_1 = arith.constant 0 : i32
    %c0_i32_2 = arith.constant 0 : i32
    return %c0_i32, %c0_i32_0, %c0_i32_1 : i32, i32, i32
  }
  func.func @transform_14(%arg0: i32, %arg1: memref<2xi32, #tpu.memory_space<smem>>) -> (i32, i32, i32) {
    %c0_i32 = arith.constant 0 : i32
    %c0_i32_0 = arith.constant 0 : i32
    %c0_i32_1 = arith.constant 0 : i32
    %c0_i32_2 = arith.constant 0 : i32
    return %c0_i32, %c0_i32_0, %c0_i32_1 : i32, i32, i32
  }
  func.func @transform_15(%arg0: i32, %arg1: memref<2xi32, #tpu.memory_space<smem>>) -> (i32, i32, i32) {
    %c0_i32 = arith.constant 0 : i32
    %c0_i32_0 = arith.constant 0 : i32
    %c0_i32_1 = arith.constant 0 : i32
    %c0_i32_2 = arith.constant 0 : i32
    return %c0_i32, %c0_i32_0, %c0_i32_1 : i32, i32, i32
  }
  func.func @transform_16(%arg0: i32, %arg1: memref<2xi32, #tpu.memory_space<smem>>) -> (i32, i32) {
    %c0_i32 = arith.constant 0 : i32
    %c0_i32_0 = arith.constant 0 : i32
    %c0_i32_1 = arith.constant 0 : i32
    return %c0_i32, %c0_i32_0 : i32, i32
  }
  func.func @transform_17(%arg0: i32, %arg1: memref<2xi32, #tpu.memory_space<smem>>) -> (i32, i32) {
    %c0_i32 = arith.constant 0 : i32
    %c0_i32_0 = arith.constant 0 : i32
    %c0_i32_1 = arith.constant 0 : i32
    return %c0_i32, %c0_i32_0 : i32, i32
  }
  func.func @transform_18(%arg0: i32, %arg1: memref<2xi32, #tpu.memory_space<smem>>) -> (i32, i32, i32) {
    %c0_i32 = arith.constant 0 : i32
    %c0_i32_0 = arith.constant 0 : i32
    %c0_i32_1 = arith.constant 0 : i32
    return %arg0, %c0_i32, %c0_i32_0 : i32, i32, i32
  }
}

</mosaic_0001>

<llo_original>
// kernel: entity_encoder_forward.1
$region0: #{entity_encoder_forward.1}
  #allocation0 [shape = 'u32[]', space=smem, size = 0x4, offset = 0x4, fixed_abs, tag = 'smem constant byte address 0x4 - core index']
  #allocation1 [shape = 'u32[144,128]{1,0:T(1,128)}', space=vmem, size = 0x12000, scoped, tag = 'internal scratch']
  #allocation2 [shape = 's32[1]{0}', space=sflag, size = 0x4, scoped, tag = 'scoped memory for entity_encoder_forward.1']
  #allocation3 [shape = 'u8[512]{0}', space=smem, size = 0x200, scoped, tag = 'prefetched SMEM operand 0']
  %s0 = inlined_call_operand.vmem [shape: s32[2], index: 0, kind: input, shape index: {}]
  %s1 = inlined_call_operand.vmem [shape: f32[2,8,16], index: 1, kind: input, shape index: {}]
  %s2 = inlined_call_operand.vmem [shape: f32[2,8,128], index: 2, kind: input, shape index: {}]
  %s3 = inlined_call_operand.hbm [shape: bf16[16,128], index: 3, kind: input, shape index: {}]
  %s4 = inlined_call_operand.hbm [shape: f32[1,128], index: 4, kind: input, shape index: {}]
  %s5 = inlined_call_operand.hbm [shape: bf16[3,128,384], index: 5, kind: input, shape index: {}]
  %s6 = inlined_call_operand.hbm [shape: f32[3,1,384], index: 6, kind: input, shape index: {}]
  %s7 = inlined_call_operand.vmem [shape: bf16[3,128,128], index: 7, kind: input, shape index: {}]
  %s8 = inlined_call_operand.vmem [shape: f32[3,1,128], index: 8, kind: input, shape index: {}]
  %s9 = inlined_call_operand.hbm [shape: bf16[3,128,512], index: 9, kind: input, shape index: {}]
  %s10 = inlined_call_operand.vmem [shape: f32[3,1,512], index: 10, kind: input, shape index: {}]
  %s11 = inlined_call_operand.hbm [shape: bf16[3,512,128], index: 11, kind: input, shape index: {}]
  %s12 = inlined_call_operand.hbm [shape: f32[3,1,128], index: 12, kind: input, shape index: {}]
  %s13 = inlined_call_operand.hbm [shape: f32[3,1,128], index: 13, kind: input, shape index: {}]
  %s14 = inlined_call_operand.hbm [shape: f32[3,1,128], index: 14, kind: input, shape index: {}]
  %s15 = inlined_call_operand.hbm [shape: f32[3,1,128], index: 15, kind: input, shape index: {}]
  %s16 = inlined_call_operand.hbm [shape: f32[3,1,128], index: 16, kind: input, shape index: {}]
  %s17 = inlined_call_operand.hbm [shape: bf16[128,128], index: 17, kind: input, shape index: {}]
  %s18 = inlined_call_operand.hbm [shape: f32[1,128], index: 18, kind: input, shape index: {}]
  %s19 = inlined_call_operand.hbm [shape: f32[2,8,128], index: 19, kind: output, shape index: {}]
  %s20 = sld [smem:[#allocation0]]
  $region157: #{entity_encoder_forward.1} parent=0
    _
  %s22 = ssub.s32 1, %s20
  %s23 = scalar_select 0, %s22, %s20
  %s24 = sshll.u32 %s0, 4
  %s25 = int_to_ptr.vmem [resolvable:$true] %s24
  %27 = dma.vmem_to_smem %s25, 16, [#allocation3], [#allocation2]
  %28 = dma.done [#allocation2], 16
  %29 = sfence
  $region1: #{entity_encoder_forward.1} parent=0
    #allocation4 [shape = 'u8[4096]{0}', space=vmem, size = 0x1000, scoped, tag = 'input window, operand 3, single buffered']
    #allocation5 [shape = 's32[2]{0}', space=sflag, size = 0x8, scoped, tag = 'scoped memory for entity_encoder_forward.1']
    #allocation6 [shape = 's32[2]{0}', space=sflag, size = 0x8, scoped, tag = 'scoped memory for entity_encoder_forward.1']
    #allocation7 [shape = 'u8[512]{0}', space=vmem, size = 0x400, scoped, tag = 'input window, operand 4, single buffered']
    #allocation8 [shape = 's32[1]{0}', space=sflag, size = 0x4, scoped, tag = 'scoped memory for entity_encoder_forward.1']
    #allocation9 [shape = 'u8[294912]{0}', space=vmem, size = 0x48000, scoped, tag = 'input window, operand 5, single buffered']
    #allocation10 [shape = 'u8[4608]{0}', space=vmem, size = 0x1400, scoped, tag = 'input window, operand 6, single buffered']
    #allocation11 [shape = 's32[1]{0}', space=sflag, size = 0x4, scoped, tag = 'scoped memory for entity_encoder_forward.1']
    #allocation12 [shape = 'u8[393216]{0}', space=vmem, size = 0x60000, scoped, tag = 'input window, operand 9, single buffered']
    #allocation13 [shape = 'u8[393216]{0}', space=vmem, size = 0x60000, scoped, tag = 'input window, operand 11, single buffered']
    #allocation14 [shape = 's32[1]{0}', space=sflag, size = 0x4, scoped, tag = 'scoped memory for entity_encoder_forward.1']
    #allocation15 [shape = 'u8[1536]{0}', space=vmem, size = 0x800, scoped, tag = 'input window, operand 12, single buffered']
    #allocation16 [shape = 'u8[1536]{0}', space=vmem, size = 0x800, scoped, tag = 'input window, operand 13, single buffered']
    #allocation17 [shape = 's32[1]{0}', space=sflag, size = 0x4, scoped, tag = 'scoped memory for entity_encoder_forward.1']
    #allocation18 [shape = 'u8[1536]{0}', space=vmem, size = 0x800, scoped, tag = 'input window, operand 14, single buffered']
    #allocation19 [shape = 'u8[1536]{0}', space=vmem, size = 0x800, scoped, tag = 'input window, operand 15, single buffered']
    #allocation20 [shape = 's32[1]{0}', space=sflag, size = 0x4, scoped, tag = 'scoped memory for entity_encoder_forward.1']
    #allocation21 [shape = 'u8[1536]{0}', space=vmem, size = 0x800, scoped, tag = 'input window, operand 16, single buffered']
    #allocation22 [shape = 'u8[32768]{0}', space=vmem, size = 0x8000, scoped, tag = 'input window, operand 17, single buffered']
    #allocation23 [shape = 's32[1]{0}', space=sflag, size = 0x4, scoped, tag = 'scoped memory for entity_encoder_forward.1']
    #allocation24 [shape = 'u8[512]{0}', space=vmem, size = 0x400, scoped, tag = 'input window, operand 18, single buffered']
    #allocation25 [shape = 'u8[8192]{0}', space=vmem, size = 0x2000, scoped, tag = 'output window, operand 0']
    %30 = vsyncpa [#allocation5], 0
    %31 = vsyncpa [#allocation8], 0
    %32 = vsyncpa [#allocation11], 0
    %33 = vsyncpa [#allocation14], 0
    %34 = vsyncpa [#allocation17], 0
    %35 = vsyncpa [#allocation20], 0
    %36 = vsyncpa [#allocation23], 0
    %37 = vsyncpa [#allocation6], 0
    %s38 = scalar_lea.sflag [#allocation6], 1
    %39 = vsyncpa %s38, 0
    loop: start=0, step=1, limit=4
    $region2: #{entity_encoder_forward.1} parent=1 // loop_pre_header
      _
    $region3: #{entity_encoder_forward.1} parent=1 // loop_header
      %s41 = sphi 0, %s45
      %p42 = scmp.ge.s32.totalorder %s41, 4
      %s51 = sphi 0, %s53
      %s54 = sphi 0, %s51
      %s55 = sphi 0, %s54
      %s71 = sphi 0, %s55
      %s77 = sphi 0, %s79
      %s80 = sphi 0, %s77
      %s81 = sphi 0, %s80
      %s97 = sphi 0, %s81
      %s101 = sphi 0, %s101
      %s103 = sphi 0, %s101
      %s104 = sphi 0, %s103
      %s118 = sphi 0, %s104
      %s122 = sphi 0, %s122
      %s124 = sphi 0, %s122
      %s125 = sphi 0, %s124
      %s139 = sphi 0, %s125
      %s143 = sphi 0, %s143
      %s145 = sphi 0, %s143
      %s146 = sphi 0, %s145
      %s160 = sphi 0, %s146
      %s164 = sphi 0, %s164
      %s166 = sphi 0, %s164
      %s167 = sphi 0, %s166
      %s181 = sphi 0, %s167
      %s185 = sphi 0, %s185
      %s187 = sphi 0, %s185
      %s188 = sphi 0, %s187
      %s202 = sphi 0, %s188
      %s206 = sphi 0, %s206
      %s208 = sphi 0, %s206
      %s209 = sphi 0, %s208
      %s223 = sphi 0, %s209
      %s227 = sphi 0, %s227
      %s229 = sphi 0, %s227
      %s230 = sphi 0, %s229
      %s244 = sphi 0, %s230
      %s248 = sphi 0, %s248
      %s250 = sphi 0, %s248
      %s251 = sphi 0, %s250
      %s265 = sphi 0, %s251
      %s269 = sphi 0, %s269
      %s271 = sphi 0, %s269
      %s272 = sphi 0, %s271
      %s286 = sphi 0, %s272
      %s290 = sphi 0, %s290
      %s292 = sphi 0, %s290
      %s293 = sphi 0, %s292
      %s307 = sphi 0, %s293
      %s311 = sphi 0, %s311
      %s313 = sphi 0, %s311
      %s314 = sphi 0, %s313
      %s328 = sphi 0, %s314
      %s332 = sphi 0, %s332
      %s334 = sphi 0, %s332
      %s335 = sphi 0, %s334
      %s349 = sphi 0, %s335
      %s353 = sphi 0, %s353
      %s355 = sphi 0, %s353
      %s356 = sphi 0, %s355
      %s370 = sphi 0, %s356
      %s374 = sphi 0, %s374
      %s376 = sphi 0, %s374
      %s377 = sphi 0, %s376
      %s391 = sphi 0, %s377
      %s395 = sphi 0, %s395
      %s397 = sphi 0, %s395
      %s398 = sphi 0, %s397
      %s412 = sphi 0, %s398
      %s416 = sphi 0, %s416
      %s418 = sphi 0, %s416
      %s419 = sphi 0, %s418
      %s433 = sphi 0, %s419
      %s439 = sphi 0, %s441
      %s442 = sphi 0, %s439
      %s443 = sphi 0, %s442
      %s459 = sphi 0, %s443
    $region4: #{entity_encoder_forward.1} parent=1 // loop_header_branch
      %44 = sbr.rel (%p42) target = $region8
    $region5: #{entity_encoder_forward.1} parent=1 // loop_body
      %s46 = ssub.s32 %s41, 1
      %s47 = ssub.s32 %s41, 2
      %s48 = sadd.s32 %s41, 1
      %s49 = ssub.s32 %s41, %s48
      %p50 = scmp.eq.s32.totalorder %s49, 0
      %s52 = sadd.s32 %s51, 1
      %s53 = scalar_select %p50, %s51, %s52
      %p56 = pneg %p50
      %p57 = scmp.eq.s32.totalorder %s41, 1
      %p58 = por %p56, %p57
      %p59 = scmp.ne.s32.totalorder %s51, %s54
      %p60 = scmp.eq.s32.totalorder %s41, 0
      %p61 = por %p59, %p60
      %p62 = scmp.ne.s32.totalorder %s51, %s54
      %p63 = scmp.eq.s32.totalorder %s46, 1
      %p64 = por %p62, %p63
      %p65 = scmp.ne.s32.totalorder %s54, %s55
      %p66 = scmp.eq.s32.totalorder %s46, 0
      %p67 = por %p65, %p66
      %p68 = scmp.ne.s32.totalorder %s54, %s55
      %p69 = scmp.eq.s32.totalorder %s47, 1
      %p70 = por %p68, %p69
      %p72 = scmp.ne.s32.totalorder %s55, %s71
      %p73 = scmp.eq.s32.totalorder %s47, 0
      %p74 = por %p72, %p73
      %s75 = ssub.s32 %s41, %s48
      %p76 = scmp.eq.s32.totalorder %s75, 0
      %s78 = sadd.s32 %s77, 1
      %s79 = scalar_select %p76, %s77, %s78
      %p82 = pneg %p76
      %p83 = scmp.eq.s32.totalorder %s41, 1
      %p84 = por %p82, %p83
      %p85 = scmp.ne.s32.totalorder %s77, %s80
      %p86 = scmp.eq.s32.totalorder %s41, 0
      %p87 = por %p85, %p86
      %p88 = scmp.ne.s32.totalorder %s77, %s80
      %p89 = scmp.eq.s32.totalorder %s46, 1
      %p90 = por %p88, %p89
      %p91 = scmp.ne.s32.totalorder %s80, %s81
      %p92 = scmp.eq.s32.totalorder %s46, 0
      %p93 = por %p91, %p92
      %p94 = scmp.ne.s32.totalorder %s80, %s81
      %p95 = scmp.eq.s32.totalorder %s47, 1
      %p96 = por %p94, %p95
      %p98 = scmp.ne.s32.totalorder %s81, %s97
      %p99 = scmp.eq.s32.totalorder %s47, 0
      %p100 = por %p98, %p99
      %s102 = sadd.s32 %s101, 1
      %p105 = scmp.eq.s32.totalorder %s41, 1
      %p106 = scmp.ne.s32.totalorder %s101, %s103
      %p107 = scmp.eq.s32.totalorder %s41, 0
      %p108 = por %p106, %p107
      %p109 = scmp.ne.s32.totalorder %s101, %s103
      %p110 = scmp.eq.s32.totalorder %s46, 1
      %p111 = por %p109, %p110
      %p112 = scmp.ne.s32.totalorder %s103, %s104
      %p113 = scmp.eq.s32.totalorder %s46, 0
      %p114 = por %p112, %p113
      %p115 = scmp.ne.s32.totalorder %s103, %s104
      %p116 = scmp.eq.s32.totalorder %s47, 1
      %p117 = por %p115, %p116
      %p119 = scmp.ne.s32.totalorder %s104, %s118
      %p120 = scmp.eq.s32.totalorder %s47, 0
      %p121 = por %p119, %p120
      %s123 = sadd.s32 %s122, 1
      %p126 = scmp.eq.s32.totalorder %s41, 1
      %p127 = scmp.ne.s32.totalorder %s122, %s124
      %p128 = scmp.eq.s32.totalorder %s41, 0
      %p129 = por %p127, %p128
      %p130 = scmp.ne.s32.totalorder %s122, %s124
      %p131 = scmp.eq.s32.totalorder %s46, 1
      %p132 = por %p130, %p131
      %p133 = scmp.ne.s32.totalorder %s124, %s125
      %p134 = scmp.eq.s32.totalorder %s46, 0
      %p135 = por %p133, %p134
      %p136 = scmp.ne.s32.totalorder %s124, %s125
      %p137 = scmp.eq.s32.totalorder %s47, 1
      %p138 = por %p136, %p137
      %p140 = scmp.ne.s32.totalorder %s125, %s139
      %p141 = scmp.eq.s32.totalorder %s47, 0
      %p142 = por %p140, %p141
      %s144 = sadd.s32 %s143, 1
      %p147 = scmp.eq.s32.totalorder %s41, 1
      %p148 = scmp.ne.s32.totalorder %s143, %s145
      %p149 = scmp.eq.s32.totalorder %s41, 0
      %p150 = por %p148, %p149
      %p151 = scmp.ne.s32.totalorder %s143, %s145
      %p152 = scmp.eq.s32.totalorder %s46, 1
      %p153 = por %p151, %p152
      %p154 = scmp.ne.s32.totalorder %s145, %s146
      %p155 = scmp.eq.s32.totalorder %s46, 0
      %p156 = por %p154, %p155
      %p157 = scmp.ne.s32.totalorder %s145, %s146
      %p158 = scmp.eq.s32.totalorder %s47, 1
      %p159 = por %p157, %p158
      %p161 = scmp.ne.s32.totalorder %s146, %s160
      %p162 = scmp.eq.s32.totalorder %s47, 0
      %p163 = por %p161, %p162
      %s165 = sadd.s32 %s164, 1
      %p168 = scmp.eq.s32.totalorder %s41, 1
      %p169 = scmp.ne.s32.totalorder %s164, %s166
      %p170 = scmp.eq.s32.totalorder %s41, 0
      %p171 = por %p169, %p170
      %p172 = scmp.ne.s32.totalorder %s164, %s166
      %p173 = scmp.eq.s32.totalorder %s46, 1
      %p174 = por %p172, %p173
      %p175 = scmp.ne.s32.totalorder %s166, %s167
      %p176 = scmp.eq.s32.totalorder %s46, 0
      %p177 = por %p175, %p176
      %p178 = scmp.ne.s32.totalorder %s166, %s167
      %p179 = scmp.eq.s32.totalorder %s47, 1
      %p180 = por %p178, %p179
      %p182 = scmp.ne.s32.totalorder %s167, %s181
      %p183 = scmp.eq.s32.totalorder %s47, 0
      %p184 = por %p182, %p183
      %s186 = sadd.s32 %s185, 1
      %p189 = scmp.eq.s32.totalorder %s41, 1
      %p190 = scmp.ne.s32.totalorder %s185, %s187
      %p191 = scmp.eq.s32.totalorder %s41, 0
      %p192 = por %p190, %p191
      %p193 = scmp.ne.s32.totalorder %s185, %s187
      %p194 = scmp.eq.s32.totalorder %s46, 1
      %p195 = por %p193, %p194
      %p196 = scmp.ne.s32.totalorder %s187, %s188
      %p197 = scmp.eq.s32.totalorder %s46, 0
      %p198 = por %p196, %p197
      %p199 = scmp.ne.s32.totalorder %s187, %s188
      %p200 = scmp.eq.s32.totalorder %s47, 1
      %p201 = por %p199, %p200
      %p203 = scmp.ne.s32.totalorder %s188, %s202
      %p204 = scmp.eq.s32.totalorder %s47, 0
      %p205 = por %p203, %p204
      %s207 = sadd.s32 %s206, 1
      %p210 = scmp.eq.s32.totalorder %s41, 1
      %p211 = scmp.ne.s32.totalorder %s206, %s208
      %p212 = scmp.eq.s32.totalorder %s41, 0
      %p213 = por %p211, %p212
      %p214 = scmp.ne.s32.totalorder %s206, %s208
      %p215 = scmp.eq.s32.totalorder %s46, 1
      %p216 = por %p214, %p215
      %p217 = scmp.ne.s32.totalorder %s208, %s209
      %p218 = scmp.eq.s32.totalorder %s46, 0
      %p219 = por %p217, %p218
      %p220 = scmp.ne.s32.totalorder %s208, %s209
      %p221 = scmp.eq.s32.totalorder %s47, 1
      %p222 = por %p220, %p221
      %p224 = scmp.ne.s32.totalorder %s209, %s223
      %p225 = scmp.eq.s32.totalorder %s47, 0
      %p226 = por %p224, %p225
      %s228 = sadd.s32 %s227, 1
      %p231 = scmp.eq.s32.totalorder %s41, 1
      %p232 = scmp.ne.s32.totalorder %s227, %s229
      %p233 = scmp.eq.s32.totalorder %s41, 0
      %p234 = por %p232, %p233
      %p235 = scmp.ne.s32.totalorder %s227, %s229
      %p236 = scmp.eq.s32.totalorder %s46, 1
      %p237 = por %p235, %p236
      %p238 = scmp.ne.s32.totalorder %s229, %s230
      %p239 = scmp.eq.s32.totalorder %s46, 0
      %p240 = por %p238, %p239
      %p241 = scmp.ne.s32.totalorder %s229, %s230
      %p242 = scmp.eq.s32.totalorder %s47, 1
      %p243 = por %p241, %p242
      %p245 = scmp.ne.s32.totalorder %s230, %s244
      %p246 = scmp.eq.s32.totalorder %s47, 0
      %p247 = por %p245, %p246
      %s249 = sadd.s32 %s248, 1
      %p252 = scmp.eq.s32.totalorder %s41, 1
      %p253 = scmp.ne.s32.totalorder %s248, %s250
      %p254 = scmp.eq.s32.totalorder %s41, 0
      %p255 = por %p253, %p254
      %p256 = scmp.ne.s32.totalorder %s248, %s250
      %p257 = scmp.eq.s32.totalorder %s46, 1
      %p258 = por %p256, %p257
      %p259 = scmp.ne.s32.totalorder %s250, %s251
      %p260 = scmp.eq.s32.totalorder %s46, 0
      %p261 = por %p259, %p260
      %p262 = scmp.ne.s32.totalorder %s250, %s251
      %p263 = scmp.eq.s32.totalorder %s47, 1
      %p264 = por %p262, %p263
      %p266 = scmp.ne.s32.totalorder %s251, %s265
      %p267 = scmp.eq.s32.totalorder %s47, 0
      %p268 = por %p266, %p267
      %s270 = sadd.s32 %s269, 1
      %p273 = scmp.eq.s32.totalorder %s41, 1
      %p274 = scmp.ne.s32.totalorder %s269, %s271
      %p275 = scmp.eq.s32.totalorder %s41, 0
      %p276 = por %p274, %p275
      %p277 = scmp.ne.s32.totalorder %s269, %s271
      %p278 = scmp.eq.s32.totalorder %s46, 1
      %p279 = por %p277, %p278
      %p280 = scmp.ne.s32.totalorder %s271, %s272
      %p281 = scmp.eq.s32.totalorder %s46, 0
      %p282 = por %p280, %p281
      %p283 = scmp.ne.s32.totalorder %s271, %s272
      %p284 = scmp.eq.s32.totalorder %s47, 1
      %p285 = por %p283, %p284
      %p287 = scmp.ne.s32.totalorder %s272, %s286
      %p288 = scmp.eq.s32.totalorder %s47, 0
      %p289 = por %p287, %p288
      %s291 = sadd.s32 %s290, 1
      %p294 = scmp.eq.s32.totalorder %s41, 1
      %p295 = scmp.ne.s32.totalorder %s290, %s292
      %p296 = scmp.eq.s32.totalorder %s41, 0
      %p297 = por %p295, %p296
      %p298 = scmp.ne.s32.totalorder %s290, %s292
      %p299 = scmp.eq.s32.totalorder %s46, 1
      %p300 = por %p298, %p299
      %p301 = scmp.ne.s32.totalorder %s292, %s293
      %p302 = scmp.eq.s32.totalorder %s46, 0
      %p303 = por %p301, %p302
      %p304 = scmp.ne.s32.totalorder %s292, %s293
      %p305 = scmp.eq.s32.totalorder %s47, 1
      %p306 = por %p304, %p305
      %p308 = scmp.ne.s32.totalorder %s293, %s307
      %p309 = scmp.eq.s32.totalorder %s47, 0
      %p310 = por %p308, %p309
      %s312 = sadd.s32 %s311, 1
      %p315 = scmp.eq.s32.totalorder %s41, 1
      %p316 = scmp.ne.s32.totalorder %s311, %s313
      %p317 = scmp.eq.s32.totalorder %s41, 0
      %p318 = por %p316, %p317
      %p319 = scmp.ne.s32.totalorder %s311, %s313
      %p320 = scmp.eq.s32.totalorder %s46, 1
      %p321 = por %p319, %p320
      %p322 = scmp.ne.s32.totalorder %s313, %s314
      %p323 = scmp.eq.s32.totalorder %s46, 0
      %p324 = por %p322, %p323
      %p325 = scmp.ne.s32.totalorder %s313, %s314
      %p326 = scmp.eq.s32.totalorder %s47, 1
      %p327 = por %p325, %p326
      %p329 = scmp.ne.s32.totalorder %s314, %s328
      %p330 = scmp.eq.s32.totalorder %s47, 0
      %p331 = por %p329, %p330
      %s333 = sadd.s32 %s332, 1
      %p336 = scmp.eq.s32.totalorder %s41, 1
      %p337 = scmp.ne.s32.totalorder %s332, %s334
      %p338 = scmp.eq.s32.totalorder %s41, 0
      %p339 = por %p337, %p338
      %p340 = scmp.ne.s32.totalorder %s332, %s334
      %p341 = scmp.eq.s32.totalorder %s46, 1
      %p342 = por %p340, %p341
      %p343 = scmp.ne.s32.totalorder %s334, %s335
      %p344 = scmp.eq.s32.totalorder %s46, 0
      %p345 = por %p343, %p344
      %p346 = scmp.ne.s32.totalorder %s334, %s335
      %p347 = scmp.eq.s32.totalorder %s47, 1
      %p348 = por %p346, %p347
      %p350 = scmp.ne.s32.totalorder %s335, %s349
      %p351 = scmp.eq.s32.totalorder %s47, 0
      %p352 = por %p350, %p351
      %s354 = sadd.s32 %s353, 1
      %p357 = scmp.eq.s32.totalorder %s41, 1
      %p358 = scmp.ne.s32.totalorder %s353, %s355
      %p359 = scmp.eq.s32.totalorder %s41, 0
      %p360 = por %p358, %p359
      %p361 = scmp.ne.s32.totalorder %s353, %s355
      %p362 = scmp.eq.s32.totalorder %s46, 1
      %p363 = por %p361, %p362
      %p364 = scmp.ne.s32.totalorder %s355, %s356
      %p365 = scmp.eq.s32.totalorder %s46, 0
      %p366 = por %p364, %p365
      %p367 = scmp.ne.s32.totalorder %s355, %s356
      %p368 = scmp.eq.s32.totalorder %s47, 1
      %p369 = por %p367, %p368
      %p371 = scmp.ne.s32.totalorder %s356, %s370
      %p372 = scmp.eq.s32.totalorder %s47, 0
      %p373 = por %p371, %p372
      %s375 = sadd.s32 %s374, 1
      %p378 = scmp.eq.s32.totalorder %s41, 1
      %p379 = scmp.ne.s32.totalorder %s374, %s376
      %p380 = scmp.eq.s32.totalorder %s41, 0
      %p381 = por %p379, %p380
      %p382 = scmp.ne.s32.totalorder %s374, %s376
      %p383 = scmp.eq.s32.totalorder %s46, 1
      %p384 = por %p382, %p383
      %p385 = scmp.ne.s32.totalorder %s376, %s377
      %p386 = scmp.eq.s32.totalorder %s46, 0
      %p387 = por %p385, %p386
      %p388 = scmp.ne.s32.totalorder %s376, %s377
      %p389 = scmp.eq.s32.totalorder %s47, 1
      %p390 = por %p388, %p389
      %p392 = scmp.ne.s32.totalorder %s377, %s391
      %p393 = scmp.eq.s32.totalorder %s47, 0
      %p394 = por %p392, %p393
      %s396 = sadd.s32 %s395, 1
      %p399 = scmp.eq.s32.totalorder %s41, 1
      %p400 = scmp.ne.s32.totalorder %s395, %s397
      %p401 = scmp.eq.s32.totalorder %s41, 0
      %p402 = por %p400, %p401
      %p403 = scmp.ne.s32.totalorder %s395, %s397
      %p404 = scmp.eq.s32.totalorder %s46, 1
      %p405 = por %p403, %p404
      %p406 = scmp.ne.s32.totalorder %s397, %s398
      %p407 = scmp.eq.s32.totalorder %s46, 0
      %p408 = por %p406, %p407
      %p409 = scmp.ne.s32.totalorder %s397, %s398
      %p410 = scmp.eq.s32.totalorder %s47, 1
      %p411 = por %p409, %p410
      %p413 = scmp.ne.s32.totalorder %s398, %s412
      %p414 = scmp.eq.s32.totalorder %s47, 0
      %p415 = por %p413, %p414
      %s417 = sadd.s32 %s416, 1
      %p420 = scmp.eq.s32.totalorder %s41, 1
      %p421 = scmp.ne.s32.totalorder %s416, %s418
      %p422 = scmp.eq.s32.totalorder %s41, 0
      %p423 = por %p421, %p422
      %p424 = scmp.ne.s32.totalorder %s416, %s418
      %p425 = scmp.eq.s32.totalorder %s46, 1
      %p426 = por %p424, %p425
      %p427 = scmp.ne.s32.totalorder %s418, %s419
      %p428 = scmp.eq.s32.totalorder %s46, 0
      %p429 = por %p427, %p428
      %p430 = scmp.ne.s32.totalorder %s418, %s419
      %p431 = scmp.eq.s32.totalorder %s47, 1
      %p432 = por %p430, %p431
      %p434 = scmp.ne.s32.totalorder %s419, %s433
      %p435 = scmp.eq.s32.totalorder %s47, 0
      %p436 = por %p434, %p435
      %s437 = ssub.s32 %s41, %s48
      %p438 = scmp.eq.s32.totalorder %s437, 0
      %s440 = sadd.s32 %s439, 1
      %s441 = scalar_select %p438, %s439, %s440
      %p444 = pneg %p438
      %p445 = scmp.eq.s32.totalorder %s41, 1
      %p446 = por %p444, %p445
      %p447 = scmp.ne.s32.totalorder %s439, %s442
      %p448 = scmp.eq.s32.totalorder %s41, 0
      %p449 = por %p447, %p448
      %p450 = scmp.ne.s32.totalorder %s439, %s442
      %p451 = scmp.eq.s32.totalorder %s46, 1
      %p452 = por %p450, %p451
      %p453 = scmp.ne.s32.totalorder %s442, %s443
      %p454 = scmp.eq.s32.totalorder %s46, 0
      %p455 = por %p453, %p454
      %p456 = scmp.ne.s32.totalorder %s442, %s443
      %p457 = scmp.eq.s32.totalorder %s47, 1
      %p458 = por %p456, %p457
      %p460 = scmp.ne.s32.totalorder %s443, %s459
      %p461 = scmp.eq.s32.totalorder %s47, 0
      %p462 = por %p460, %p461
      %p463 = scmp.le.s32.totalorder 1, %s41
      %p464 = scmp.lt.s32.totalorder %s41, 3
      %p465 = pnand %p463, %p464
      %p466 = pneg %p465
      // Predicated region
      $region9: #{entity_encoder_forward.1} parent=5 // pred_check
        _
      $region10: #{entity_encoder_forward.1} parent=5 // pred_check_branch
        %468 = sbr.rel (%p465) target = $region12
      $region11: #{entity_encoder_forward.1} parent=5 // pred_region
        %s469 = ssub.s32 %s41, 1
        // Predicated region
        $region13: #{entity_encoder_forward.1} parent=11 // pred_check
          %p470 = pneg %p114
        $region14: #{entity_encoder_forward.1} parent=11 // pred_check_branch
          %472 = sbr.rel (%p470) target = $region16
        $region15: #{entity_encoder_forward.1} parent=11 // pred_region
          %s474 = ssub.s32 128, 128
          %475 = vsyncadd [#allocation5], %s474
          %s476 = sshll.u32 [#allocation4], 4
          %s477 = int_to_ptr.vmem [resolvable:$true] %s476
          %482 = dma.hbm_to_vmem [thread:$0]  %s3, 128, %s477, [#allocation5], 64, 64, 4
        $region16: #{entity_encoder_forward.1} parent=11 // pred_fallthru
          _
        // Predicated region
        $region17: #{entity_encoder_forward.1} parent=11 // pred_check
          %p483 = pneg %p135
        $region18: #{entity_encoder_forward.1} parent=11 // pred_check_branch
          %485 = sbr.rel (%p483) target = $region20
        $region19: #{entity_encoder_forward.1} parent=11 // pred_region
          %s487 = ssub.s32 16, 16
          %488 = vsyncadd [#allocation8], %s487
          %s490 = sshll.u32 [#allocation7], 4
          %s491 = int_to_ptr.vmem [resolvable:$true] %s490
          %493 = dma.hbm_to_vmem [thread:$0]  %s4, 16, %s491, [#allocation8]
        $region20: #{entity_encoder_forward.1} parent=11 // pred_fallthru
          _
        // Predicated region
        $region21: #{entity_encoder_forward.1} parent=11 // pred_check
          %p494 = pneg %p156
        $region22: #{entity_encoder_forward.1} parent=11 // pred_check_branch
          %496 = sbr.rel (%p494) target = $region24
        $region23: #{entity_encoder_forward.1} parent=11 // pred_region
          %s498 = ssub.s32 9216, 9216
          %499 = vsyncadd [#allocation8], %s498
          %s500 = sshll.u32 [#allocation9], 4
          %s501 = int_to_ptr.vmem [resolvable:$true] %s500
          %506 = dma.hbm_to_vmem [thread:$0]  %s5, 9216, %s501, [#allocation8], 192, 192, 12
        $region24: #{entity_encoder_forward.1} parent=11 // pred_fallthru
          _
        // Predicated region
        $region25: #{entity_encoder_forward.1} parent=11 // pred_check
          %p507 = pneg %p177
        $region26: #{entity_encoder_forward.1} parent=11 // pred_check_branch
          %509 = sbr.rel (%p507) target = $region28
        $region27: #{entity_encoder_forward.1} parent=11 // pred_region
          %s511 = ssub.s32 144, 144
          %512 = vsyncadd [#allocation11], %s511
          %s513 = sshll.u32 [#allocation10], 4
          %s514 = int_to_ptr.vmem [resolvable:$true] %s513
          %519 = dma.hbm_to_vmem [thread:$0]  %s6, 144, %s514, [#allocation11], 48, 48, 3
        $region28: #{entity_encoder_forward.1} parent=11 // pred_fallthru
          _
        // Predicated region
        $region29: #{entity_encoder_forward.1} parent=11 // pred_check
          %p520 = pneg %p198
        $region30: #{entity_encoder_forward.1} parent=11 // pred_check_branch
          %522 = sbr.rel (%p520) target = $region32
        $region31: #{entity_encoder_forward.1} parent=11 // pred_region
          _
        $region32: #{entity_encoder_forward.1} parent=11 // pred_fallthru
          _
        // Predicated region
        $region33: #{entity_encoder_forward.1} parent=11 // pred_check
          %p523 = pneg %p219
        $region34: #{entity_encoder_forward.1} parent=11 // pred_check_branch
          %525 = sbr.rel (%p523) target = $region36
        $region35: #{entity_encoder_forward.1} parent=11 // pred_region
          _
        $region36: #{entity_encoder_forward.1} parent=11 // pred_fallthru
          _
        // Predicated region
        $region37: #{entity_encoder_forward.1} parent=11 // pred_check
          %p526 = pneg %p240
        $region38: #{entity_encoder_forward.1} parent=11 // pred_check_branch
          %528 = sbr.rel (%p526) target = $region40
        $region39: #{entity_encoder_forward.1} parent=11 // pred_region
          %s530 = ssub.s32 12288, 12288
          %531 = vsyncadd [#allocation11], %s530
          %s532 = sshll.u32 [#allocation12], 4
          %s533 = int_to_ptr.vmem [resolvable:$true] %s532
          %538 = dma.hbm_to_vmem [thread:$0]  %s9, 12288, %s533, [#allocation11], 256, 256, 16
        $region40: #{entity_encoder_forward.1} parent=11 // pred_fallthru
          _
        // Predicated region
        $region41: #{entity_encoder_forward.1} parent=11 // pred_check
          %p539 = pneg %p261
        $region42: #{entity_encoder_forward.1} parent=11 // pred_check_branch
          %541 = sbr.rel (%p539) target = $region44
        $region43: #{entity_encoder_forward.1} parent=11 // pred_region
          _
        $region44: #{entity_encoder_forward.1} parent=11 // pred_fallthru
          _
        // Predicated region
        $region45: #{entity_encoder_forward.1} parent=11 // pred_check
          %p542 = pneg %p282
        $region46: #{entity_encoder_forward.1} parent=11 // pred_check_branch
          %544 = sbr.rel (%p542) target = $region48
        $region47: #{entity_encoder_forward.1} parent=11 // pred_region
          %s546 = ssub.s32 12288, 12288
          %547 = vsyncadd [#allocation14], %s546
          %s548 = sshll.u32 [#allocation13], 4
          %s549 = int_to_ptr.vmem [resolvable:$true] %s548
          %554 = dma.hbm_to_vmem [thread:$0]  %s11, 12288, %s549, [#allocation14], 64, 64, 4
        $region48: #{entity_encoder_forward.1} parent=11 // pred_fallthru
          _
        // Predicated region
        $region49: #{entity_encoder_forward.1} parent=11 // pred_check
          %p555 = pneg %p303
        $region50: #{entity_encoder_forward.1} parent=11 // pred_check_branch
          %557 = sbr.rel (%p555) target = $region52
        $region51: #{entity_encoder_forward.1} parent=11 // pred_region
          %s559 = ssub.s32 48, 48
          %560 = vsyncadd [#allocation14], %s559
          %s561 = sshll.u32 [#allocation15], 4
          %s562 = int_to_ptr.vmem [resolvable:$true] %s561
          %567 = dma.hbm_to_vmem [thread:$0]  %s12, 48, %s562, [#allocation14], 16, 16, 1
        $region52: #{entity_encoder_forward.1} parent=11 // pred_fallthru
          _
        // Predicated region
        $region53: #{entity_encoder_forward.1} parent=11 // pred_check
          %p568 = pneg %p324
        $region54: #{entity_encoder_forward.1} parent=11 // pred_check_branch
          %570 = sbr.rel (%p568) target = $region56
        $region55: #{entity_encoder_forward.1} parent=11 // pred_region
          %s572 = ssub.s32 48, 48
          %573 = vsyncadd [#allocation17], %s572
          %s574 = sshll.u32 [#allocation16], 4
          %s575 = int_to_ptr.vmem [resolvable:$true] %s574
          %580 = dma.hbm_to_vmem [thread:$0]  %s13, 48, %s575, [#allocation17], 16, 16, 1
        $region56: #{entity_encoder_forward.1} parent=11 // pred_fallthru
          _
        // Predicated region
        $region57: #{entity_encoder_forward.1} parent=11 // pred_check
          %p581 = pneg %p345
        $region58: #{entity_encoder_forward.1} parent=11 // pred_check_branch
          %583 = sbr.rel (%p581) target = $region60
        $region59: #{entity_encoder_forward.1} parent=11 // pred_region
          %s585 = ssub.s32 48, 48
          %586 = vsyncadd [#allocation17], %s585
          %s587 = sshll.u32 [#allocation18], 4
          %s588 = int_to_ptr.vmem [resolvable:$true] %s587
          %593 = dma.hbm_to_vmem [thread:$0]  %s14, 48, %s588, [#allocation17], 16, 16, 1
        $region60: #{entity_encoder_forward.1} parent=11 // pred_fallthru
          _
        // Predicated region
        $region61: #{entity_encoder_forward.1} parent=11 // pred_check
          %p594 = pneg %p366
        $region62: #{entity_encoder_forward.1} parent=11 // pred_check_branch
          %596 = sbr.rel (%p594) target = $region64
        $region63: #{entity_encoder_forward.1} parent=11 // pred_region
          %s598 = ssub.s32 48, 48
          %599 = vsyncadd [#allocation20], %s598
          %s600 = sshll.u32 [#allocation19], 4
          %s601 = int_to_ptr.vmem [resolvable:$true] %s600
          %606 = dma.hbm_to_vmem [thread:$0]  %s15, 48, %s601, [#allocation20], 16, 16, 1
        $region64: #{entity_encoder_forward.1} parent=11 // pred_fallthru
          _
        // Predicated region
        $region65: #{entity_encoder_forward.1} parent=11 // pred_check
          %p607 = pneg %p387
        $region66: #{entity_encoder_forward.1} parent=11 // pred_check_branch
          %609 = sbr.rel (%p607) target = $region68
        $region67: #{entity_encoder_forward.1} parent=11 // pred_region
          %s611 = ssub.s32 48, 48
          %612 = vsyncadd [#allocation20], %s611
          %s613 = sshll.u32 [#allocation21], 4
          %s614 = int_to_ptr.vmem [resolvable:$true] %s613
          %619 = dma.hbm_to_vmem [thread:$0]  %s16, 48, %s614, [#allocation20], 16, 16, 1
        $region68: #{entity_encoder_forward.1} parent=11 // pred_fallthru
          _
        // Predicated region
        $region69: #{entity_encoder_forward.1} parent=11 // pred_check
          %p620 = pneg %p408
        $region70: #{entity_encoder_forward.1} parent=11 // pred_check_branch
          %622 = sbr.rel (%p620) target = $region72
        $region71: #{entity_encoder_forward.1} parent=11 // pred_region
          %s624 = ssub.s32 1024, 1024
          %625 = vsyncadd [#allocation23], %s624
          %s626 = sshll.u32 [#allocation22], 4
          %s627 = int_to_ptr.vmem [resolvable:$true] %s626
          %632 = dma.hbm_to_vmem [thread:$0]  %s17, 1024, %s627, [#allocation23], 64, 64, 4
        $region72: #{entity_encoder_forward.1} parent=11 // pred_fallthru
          _
        // Predicated region
        $region73: #{entity_encoder_forward.1} parent=11 // pred_check
          %p633 = pneg %p429
        $region74: #{entity_encoder_forward.1} parent=11 // pred_check_branch
          %635 = sbr.rel (%p633) target = $region76
        $region75: #{entity_encoder_forward.1} parent=11 // pred_region
          %s637 = ssub.s32 16, 16
          %638 = vsyncadd [#allocation23], %s637
          %s640 = sshll.u32 [#allocation24], 4
          %s641 = int_to_ptr.vmem [resolvable:$true] %s640
          %643 = dma.hbm_to_vmem [thread:$0]  %s18, 16, %s641, [#allocation23]
        $region76: #{entity_encoder_forward.1} parent=11 // pred_fallthru
          _
      $region12: #{entity_encoder_forward.1} parent=5 // pred_fallthru
        _
      %p644 = scmp.lt.s32.totalorder %s41, 2
      // Predicated region
      $region77: #{entity_encoder_forward.1} parent=5 // pred_check
        %p645 = pneg %p644
      $region78: #{entity_encoder_forward.1} parent=5 // pred_check_branch
        %647 = sbr.rel (%p645) target = $region80
      $region79: #{entity_encoder_forward.1} parent=5 // pred_region
        // Predicated region
        $region81: #{entity_encoder_forward.1} parent=79 // pred_check
          %p648 = pneg %p61
        $region82: #{entity_encoder_forward.1} parent=79 // pred_check_branch
          %650 = sbr.rel (%p648) target = $region84
        $region83: #{entity_encoder_forward.1} parent=79 // pred_region
          %p651 = scmp.lt.s32.totalorder %s41, 1
          %s652 = scalar_select %p651, %s41, 1
          %s653 = smul.addr %s652, 8
          %s654 = scalar_lea.vmem %s1, %s653
        $region84: #{entity_encoder_forward.1} parent=79 // pred_fallthru
          _
        // Predicated region
        $region85: #{entity_encoder_forward.1} parent=79 // pred_check
          %p655 = pneg %p87
        $region86: #{entity_encoder_forward.1} parent=79 // pred_check_branch
          %657 = sbr.rel (%p655) target = $region88
        $region87: #{entity_encoder_forward.1} parent=79 // pred_region
          %p658 = scmp.lt.s32.totalorder %s41, 1
          %s659 = scalar_select %p658, %s41, 1
          %s660 = smul.addr %s659, 8
          %s661 = scalar_lea.vmem %s2, %s660
        $region88: #{entity_encoder_forward.1} parent=79 // pred_fallthru
          _
      $region80: #{entity_encoder_forward.1} parent=5 // pred_fallthru
        _
      %p662 = scmp.le.s32.totalorder 1, %s41
      %p663 = scmp.lt.s32.totalorder %s41, 3
      %p664 = pnand %p662, %p663
      %p665 = pneg %p664
      // Predicated region
      $region89: #{entity_encoder_forward.1} parent=5 // pred_check
        _
      $region90: #{entity_encoder_forward.1} parent=5 // pred_check_branch
        %667 = sbr.rel (%p664) target = $region92
      $region91: #{entity_encoder_forward.1} parent=5 // pred_region
        %s668 = ssub.s32 %s41, 1
        // Predicated region
        $region93: #{entity_encoder_forward.1} parent=91 // pred_check
          %p669 = pneg %p114
        $region94: #{entity_encoder_forward.1} parent=91 // pred_check_branch
          %671 = sbr.rel (%p669) target = $region96
        $region95: #{entity_encoder_forward.1} parent=91 // pred_region
          %672 = dma.done [#allocation5], 128
        $region96: #{entity_encoder_forward.1} parent=91 // pred_fallthru
          _
        // Predicated region
        $region97: #{entity_encoder_forward.1} parent=91 // pred_check
          %p673 = pneg %p135
        $region98: #{entity_encoder_forward.1} parent=91 // pred_check_branch
          %675 = sbr.rel (%p673) target = $region100
        $region99: #{entity_encoder_forward.1} parent=91 // pred_region
          %676 = dma.done [#allocation8], 16
        $region100: #{entity_encoder_forward.1} parent=91 // pred_fallthru
          _
        // Predicated region
        $region101: #{entity_encoder_forward.1} parent=91 // pred_check
          %p677 = pneg %p156
        $region102: #{entity_encoder_forward.1} parent=91 // pred_check_branch
          %679 = sbr.rel (%p677) target = $region104
        $region103: #{entity_encoder_forward.1} parent=91 // pred_region
          %680 = dma.done [#allocation8], 9216
        $region104: #{entity_encoder_forward.1} parent=91 // pred_fallthru
          _
        // Predicated region
        $region105: #{entity_encoder_forward.1} parent=91 // pred_check
          %p681 = pneg %p177
        $region106: #{entity_encoder_forward.1} parent=91 // pred_check_branch
          %683 = sbr.rel (%p681) target = $region108
        $region107: #{entity_encoder_forward.1} parent=91 // pred_region
          %684 = dma.done [#allocation11], 144
        $region108: #{entity_encoder_forward.1} parent=91 // pred_fallthru
          _
        // Predicated region
        $region109: #{entity_encoder_forward.1} parent=91 // pred_check
          %p685 = pneg %p240
        $region110: #{entity_encoder_forward.1} parent=91 // pred_check_branch
          %687 = sbr.rel (%p685) target = $region112
        $region111: #{entity_encoder_forward.1} parent=91 // pred_region
          %688 = dma.done [#allocation11], 12288
        $region112: #{entity_encoder_forward.1} parent=91 // pred_fallthru
          _
        // Predicated region
        $region113: #{entity_encoder_forward.1} parent=91 // pred_check
          %p689 = pneg %p282
        $region114: #{entity_encoder_forward.1} parent=91 // pred_check_branch
          %691 = sbr.rel (%p689) target = $region116
        $region115: #{entity_encoder_forward.1} parent=91 // pred_region
          %692 = dma.done [#allocation14], 12288
        $region116: #{entity_encoder_forward.1} parent=91 // pred_fallthru
          _
        // Predicated region
        $region117: #{entity_encoder_forward.1} parent=91 // pred_check
          %p693 = pneg %p303
        $region118: #{entity_encoder_forward.1} parent=91 // pred_check_branch
          %695 = sbr.rel (%p693) target = $region120
        $region119: #{entity_encoder_forward.1} parent=91 // pred_region
          %696 = dma.done [#allocation14], 48
        $region120: #{entity_encoder_forward.1} parent=91 // pred_fallthru
          _
        // Predicated region
        $region121: #{entity_encoder_forward.1} parent=91 // pred_check
          %p697 = pneg %p324
        $region122: #{entity_encoder_forward.1} parent=91 // pred_check_branch
          %699 = sbr.rel (%p697) target = $region124
        $region123: #{entity_encoder_forward.1} parent=91 // pred_region
          %700 = dma.done [#allocation17], 48
        $region124: #{entity_encoder_forward.1} parent=91 // pred_fallthru
          _
        // Predicated region
        $region125: #{entity_encoder_forward.1} parent=91 // pred_check
          %p701 = pneg %p345
        $region126: #{entity_encoder_forward.1} parent=91 // pred_check_branch
          %703 = sbr.rel (%p701) target = $region128
        $region127: #{entity_encoder_forward.1} parent=91 // pred_region
          %704 = dma.done [#allocation17], 48
        $region128: #{entity_encoder_forward.1} parent=91 // pred_fallthru
          _
        // Predicated region
        $region129: #{entity_encoder_forward.1} parent=91 // pred_check
          %p705 = pneg %p366
        $region130: #{entity_encoder_forward.1} parent=91 // pred_check_branch
          %707 = sbr.rel (%p705) target = $region132
        $region131: #{entity_encoder_forward.1} parent=91 // pred_region
          %708 = dma.done [#allocation20], 48
        $region132: #{entity_encoder_forward.1} parent=91 // pred_fallthru
          _
        // Predicated region
        $region133: #{entity_encoder_forward.1} parent=91 // pred_check
          %p709 = pneg %p387
        $region134: #{entity_encoder_forward.1} parent=91 // pred_check_branch
          %711 = sbr.rel (%p709) target = $region136
        $region135: #{entity_encoder_forward.1} parent=91 // pred_region
          %712 = dma.done [#allocation20], 48
        $region136: #{entity_encoder_forward.1} parent=91 // pred_fallthru
          _
        // Predicated region
        $region137: #{entity_encoder_forward.1} parent=91 // pred_check
          %p713 = pneg %p408
        $region138: #{entity_encoder_forward.1} parent=91 // pred_check_branch
          %715 = sbr.rel (%p713) target = $region140
        $region139: #{entity_encoder_forward.1} parent=91 // pred_region
          %716 = dma.done [#allocation23], 1024
        $region140: #{entity_encoder_forward.1} parent=91 // pred_fallthru
          _
        // Predicated region
        $region141: #{entity_encoder_forward.1} parent=91 // pred_check
          %p717 = pneg %p429
        $region142: #{entity_encoder_forward.1} parent=91 // pred_check_branch
          %719 = sbr.rel (%p717) target = $region144
        $region143: #{entity_encoder_forward.1} parent=91 // pred_region
          %720 = dma.done [#allocation23], 16
        $region144: #{entity_encoder_forward.1} parent=91 // pred_fallthru
          _
        %p721 = scmp.lt.s32.totalorder %s46, 1
        %s722 = scalar_select %p721, %s46, 1
        %s723 = smul.addr %s722, 8
        %s724 = scalar_lea.vmem %s1, %s723
        %p725 = pneg %p67
        %p726 = pneg %p64
        %p727 = scmp.lt.s32.totalorder %s46, 1
        %s728 = scalar_select %p727, %s46, 1
        %s729 = smul.addr %s728, 8
        %s730 = scalar_lea.vmem %s2, %s729
        %p731 = pneg %p93
        %p732 = pneg %p90
        %p733 = pneg %p114
        %p734 = pneg %p111
        %p735 = pneg %p135
        %p736 = pneg %p132
        %p737 = pneg %p156
        %p738 = pneg %p153
        %p739 = pneg %p177
        %p740 = pneg %p174
        %p741 = pneg %p198
        %p742 = pneg %p195
        %p743 = pneg %p219
        %p744 = pneg %p216
        %p745 = pneg %p240
        %p746 = pneg %p237
        %p747 = pneg %p261
        %p748 = pneg %p258
        %p749 = pneg %p282
        %p750 = pneg %p279
        %p751 = pneg %p303
        %p752 = pneg %p300
        %p753 = pneg %p324
        %p754 = pneg %p321
        %p755 = pneg %p345
        %p756 = pneg %p342
        %p757 = pneg %p366
        %p758 = pneg %p363
        %p759 = pneg %p387
        %p760 = pneg %p384
        %p761 = pneg %p408
        %p762 = pneg %p405
        %p763 = pneg %p429
        %p764 = pneg %p426
        %p765 = pneg %p455
        %p766 = pneg %p452
        %s767 = sand.u32 %s442, 1
        %s768 = scalar_lea.sflag [#allocation6], %s767
        %s769 = sand.u32 %s442, 1
        %s770 = smul.addr %s769, 8
        %s771 = scalar_lea.vmem [#allocation25], %s770
        %p772 = scmp.lt.s32.totalorder %s46, 1
        %s773 = scalar_select %p772, %s46, 1
        %s774 = smul.addr %s773, 8
        %s775 = scalar_lea.vmem %s1, %s774
        %p776 = scmp.lt.s32.totalorder %s46, 1
        %s777 = scalar_select %p776, %s46, 1
        %s778 = smul.addr %s777, 8
        %s779 = scalar_lea.vmem %s2, %s778
        %s781 = sld [smem:[#allocation3 + %s46]]
        %v782 = vlaneseq
        %v783 = vand.u32 %v782, 127
        %v784 = vstv %s781
        %vm785 = vcmp.lt.s32.totalorder %v783, %v784
        %v786 = vlaneseq
        %v787 = vshrl.u32 %v786, 7
        %vm788 = vcmp.lt.s32.totalorder %v787, %v784
        %v789 = vsel %vm785, -1e+30, 0.0
        %v790 = vsel %vm788, 1, 0
        %v791 = vcvt.s32.f32 %v790
        %v792 = vld [vmem:[%s775] sm:$0xff]
        %v793 = vld [vmem:[#allocation4] sm:$0xf]
        %v794 = vld [vmem:[#allocation4 + $0x4] sm:$0xf]
        %v795 = vpack.c.bf16 %v792, %v792
        %v796 = vld [vmem:[#allocation7] sm:$0x1]
        %v798 = vlaneseq
        %v799 = vshrl.u32 %v798, 7
        %v800 = vsub.s32 0, %v799
        %v801 = vrot.slane %v796, %v800
        %v805 = vunpack.c.l.b16 %v793
        %v806 = vunpack.c.l.b16 %v794
        %v807 = vpack.c.b16 %v806, %v805
        %vm809 = vcmask 130048
        %v811 = vsel %vm809, %v795, 0
        %813 = vmatprep.subr.bf16.mxu0 0
        %814 = vmatpush1.bf16.msra.mxu0 0
        %815 = vmatprep.subr.bf16.mxu0 0
        %816 = vmatpush1.bf16.msra.mxu0 0
        %817 = vmatprep.subr.bf16.mxu0 0
        %818 = vmatpush1.bf16.msra.mxu0 0
        %819 = vmatprep.subr.bf16.mxu0 0
        %820 = vmatpush1.bf16.msra.mxu0 0
        %821 = vmatprep.subr.bf16.mxu0 0
        %822 = vmatpush1.bf16.msra.mxu0 0
        %823 = vmatprep.subr.bf16.mxu0 0
        %824 = vmatpush1.bf16.msra.mxu0 0
        %825 = vmatprep.subr.bf16.mxu0 0
        %826 = vmatpush1.bf16.msra.mxu0 0
        %827 = vmatprep.subr.bf16.mxu0 0
        %828 = vmatpush1.bf16.msra.mxu0 %v807
        %829 = vmatprep.subr.bf16.mxu0 0
        %830 = vmatpush2.bf16.msra.mxu0 0
        %831 = vmatprep.subr.bf16.mxu0 0
        %832 = vmatpush2.bf16.msra.mxu0 0
        %833 = vmatprep.subr.bf16.mxu0 0
        %834 = vmatpush2.bf16.msra.mxu0 0
        %835 = vmatprep.subr.bf16.mxu0 0
        %836 = vmatpush2.bf16.msra.mxu0 0
        %837 = vmatprep.subr.bf16.mxu0 0
        %838 = vmatpush2.bf16.msra.mxu0 0
        %839 = vmatprep.subr.bf16.mxu0 0
        %840 = vmatpush2.bf16.msra.mxu0 0
        %841 = vmatprep.subr.bf16.mxu0 0
        %842 = vmatpush2.bf16.msra.mxu0 0
        %843 = vmatprep.subr.bf16.mxu0 0
        %844 = vmatpush2.bf16.msra.mxu0 0
        %845 = vmatprep.mubr.bf16.mxu0 0
        %846 = vmatmul.mubr.bf16.gmra.mxu0 %v811
        %v847 = vpop.f32.mrf.mxu0
        %v848 = vadd.f32 %v801, %v847
        %v849 = vpop.f32.mrf.mxu0
        %v850 = vpop.f32.mrf.mxu0
        %v851 = vpop.f32.mrf.mxu0
        %852 = vdwg.mxu0
        %v853 = vld [vmem:[%s779] sm:$0xff]
        %v854 = vadd.f32 %v848, %v853
        %v855 = vld [vmem:[#allocation9] sm:$0xff]
        %v856 = vld [vmem:[#allocation9 + $0x8] sm:$0xf]
        %v857 = vld [vmem:[#allocation9 + $0xc] sm:$0xff]
        %v858 = vld [vmem:[#allocation9 + $0x14] sm:$0xf]
        %v859 = vld [vmem:[#allocation9 + $0x18] sm:$0xff]
        %v860 = vld [vmem:[#allocation9 + $0x20] sm:$0xf]
        %v861 = vld [vmem:[#allocation9 + $0x24] sm:$0xff]
        %v862 = vld [vmem:[#allocation9 + $0x2c] sm:$0xf]
        %v863 = vld [vmem:[#allocation9 + $0x30] sm:$0xff]
        %v864 = vld [vmem:[#allocation9 + $0x38] sm:$0xf]
        %v865 = vld [vmem:[#allocation9 + $0x3c] sm:$0xff]
        %v866 = vld [vmem:[#allocation9 + $0x44] sm:$0xf]
        %v867 = vld [vmem:[#allocation9 + $0x48] sm:$0xff]
        %v868 = vld [vmem:[#allocation9 + $0x50] sm:$0xf]
        %v869 = vld [vmem:[#allocation9 + $0x54] sm:$0xff]
        %v870 = vld [vmem:[#allocation9 + $0x5c] sm:$0xf]
        %v871 = vld [vmem:[#allocation9 + $0x60] sm:$0xff]
        %v872 = vld [vmem:[#allocation9 + $0x68] sm:$0xf]
        %v873 = vld [vmem:[#allocation9 + $0x6c] sm:$0xff]
        %v874 = vld [vmem:[#allocation9 + $0x74] sm:$0xf]
        %v875 = vld [vmem:[#allocation9 + $0x78] sm:$0xff]
        %v876 = vld [vmem:[#allocation9 + $0x80] sm:$0xf]
        %v877 = vld [vmem:[#allocation9 + $0x84] sm:$0xff]
        %v878 = vld [vmem:[#allocation9 + $0x8c] sm:$0xf]
        %v879 = vld [vmem:[#allocation9 + $0x90] sm:$0xff]
        %v880 = vld [vmem:[#allocation9 + $0x98] sm:$0xf]
        %v881 = vld [vmem:[#allocation9 + $0x9c] sm:$0xff]
        %v882 = vld [vmem:[#allocation9 + $0xa4] sm:$0xf]
        %v883 = vld [vmem:[#allocation9 + $0xa8] sm:$0xff]
        %v884 = vld [vmem:[#allocation9 + $0xb0] sm:$0xf]
        %v885 = vld [vmem:[#allocation9 + $0xb4] sm:$0xff]
        %v886 = vld [vmem:[#allocation9 + $0xbc] sm:$0xf]
        %v887 = vpack.c.bf16 %v854, %v854
        %v888 = vld [vmem:[#allocation10] sm:$0x7]
        %v890 = vlaneseq
        %v891 = vshrl.u32 %v890, 7
        %v892 = vsub.s32 0, %v891
        %v893 = vrot.slane %v888, %v892
        %v894 = vlaneseq
        %v895 = vshrl.u32 %v894, 7
        %v896 = vsub.s32 1, %v895
        %v897 = vrot.slane %v888, %v896
        %v898 = vlaneseq
        %v899 = vshrl.u32 %v898, 7
        %v900 = vsub.s32 2, %v899
        %v901 = vrot.slane %v888, %v900
        %v937 = vunpack.c.l.b16 %v855
        %v938 = vunpack.c.h.b16 %v855
        %v939 = vunpack.c.l.b16 %v856
        %v940 = vunpack.c.l.b16 %v857
        %v941 = vunpack.c.h.b16 %v857
        %v942 = vunpack.c.l.b16 %v858
        %v943 = vunpack.c.l.b16 %v859
        %v944 = vunpack.c.h.b16 %v859
        %v945 = vunpack.c.l.b16 %v860
        %v946 = vunpack.c.l.b16 %v861
        %v947 = vunpack.c.h.b16 %v861
        %v948 = vunpack.c.l.b16 %v862
        %v949 = vunpack.c.l.b16 %v863
        %v950 = vunpack.c.h.b16 %v863
        %v951 = vunpack.c.l.b16 %v864
        %v952 = vunpack.c.l.b16 %v865
        %v953 = vunpack.c.h.b16 %v865
        %v954 = vunpack.c.l.b16 %v866
        %v955 = vunpack.c.l.b16 %v867
        %v956 = vunpack.c.h.b16 %v867
        %v957 = vunpack.c.l.b16 %v868
        %v958 = vunpack.c.l.b16 %v869
        %v959 = vunpack.c.h.b16 %v869
        %v960 = vunpack.c.l.b16 %v870
        %v961 = vunpack.c.l.b16 %v871
        %v962 = vunpack.c.h.b16 %v871
        %v963 = vunpack.c.l.b16 %v872
        %v964 = vunpack.c.l.b16 %v873
        %v965 = vunpack.c.h.b16 %v873
        %v966 = vunpack.c.l.b16 %v874
        %v967 = vunpack.c.l.b16 %v875
        %v968 = vunpack.c.h.b16 %v875
        %v969 = vunpack.c.l.b16 %v876
        %v970 = vunpack.c.l.b16 %v877
        %v971 = vunpack.c.h.b16 %v877
        %v972 = vunpack.c.l.b16 %v878
        %v973 = vunpack.c.l.b16 %v879
        %v974 = vunpack.c.h.b16 %v879
        %v975 = vunpack.c.l.b16 %v880
        %v976 = vunpack.c.l.b16 %v881
        %v977 = vunpack.c.h.b16 %v881
        %v978 = vunpack.c.l.b16 %v882
        %v979 = vunpack.c.l.b16 %v883
        %v980 = vunpack.c.h.b16 %v883
        %v981 = vunpack.c.l.b16 %v884
        %v982 = vunpack.c.l.b16 %v885
        %v983 = vunpack.c.h.b16 %v885
        %v984 = vunpack.c.l.b16 %v886
        %v985 = vpack.c.b16 %v940, %v937
        %v986 = vpack.c.b16 %v941, %v938
        %v987 = vpack.c.b16 %v942, %v939
        %v988 = vpack.c.b16 %v946, %v943
        %v989 = vpack.c.b16 %v947, %v944
        %v990 = vpack.c.b16 %v948, %v945
        %v991 = vpack.c.b16 %v952, %v949
        %v992 = vpack.c.b16 %v953, %v950
        %v993 = vpack.c.b16 %v954, %v951
        %v994 = vpack.c.b16 %v958, %v955
        %v995 = vpack.c.b16 %v959, %v956
        %v996 = vpack.c.b16 %v960, %v957
        %v997 = vpack.c.b16 %v964, %v961
        %v998 = vpack.c.b16 %v965, %v962
        %v999 = vpack.c.b16 %v966, %v963
        %v1000 = vpack.c.b16 %v970, %v967
        %v1001 = vpack.c.b16 %v971, %v968
        %v1002 = vpack.c.b16 %v972, %v969
        %v1003 = vpack.c.b16 %v976, %v973
        %v1004 = vpack.c.b16 %v977, %v974
        %v1005 = vpack.c.b16 %v978, %v975
        %v1006 = vpack.c.b16 %v982, %v979
        %v1007 = vpack.c.b16 %v983, %v980
        %v1008 = vpack.c.b16 %v984, %v981
        %1033 = vmatprep.subr.bf16.mxu0 %v1007
        %1034 = vmatpush1.bf16.msra.mxu0 %v1006
        %1035 = vmatprep.subr.bf16.mxu0 %v1004
        %1036 = vmatpush1.bf16.msra.mxu0 %v1003
        %1037 = vmatprep.subr.bf16.mxu0 %v1001
        %1038 = vmatpush1.bf16.msra.mxu0 %v1000
        %1039 = vmatprep.subr.bf16.mxu0 %v998
        %1040 = vmatpush1.bf16.msra.mxu0 %v997
        %1041 = vmatprep.subr.bf16.mxu0 %v995
        %1042 = vmatpush1.bf16.msra.mxu0 %v994
        %1043 = vmatprep.subr.bf16.mxu0 %v992
        %1044 = vmatpush1.bf16.msra.mxu0 %v991
        %1045 = vmatprep.subr.bf16.mxu0 %v989
        %1046 = vmatpush1.bf16.msra.mxu0 %v988
        %1047 = vmatprep.subr.bf16.mxu0 %v986
        %1048 = vmatpush1.bf16.msra.mxu0 %v985
        %1049 = vmatprep.subr.bf16.mxu0 0
        %1050 = vmatpush2.bf16.msra.mxu0 0
        %1051 = vmatprep.subr.bf16.mxu0 0
        %1052 = vmatpush2.bf16.msra.mxu0 0
        %1053 = vmatprep.subr.bf16.mxu0 0
        %1054 = vmatpush2.bf16.msra.mxu0 0
        %1055 = vmatprep.subr.bf16.mxu0 0
        %1056 = vmatpush2.bf16.msra.mxu0 0
        %1057 = vmatprep.subr.bf16.mxu0 0
        %1058 = vmatpush2.bf16.msra.mxu0 0
        %1059 = vmatprep.subr.bf16.mxu0 0
        %1060 = vmatpush2.bf16.msra.mxu0 0
        %1061 = vmatprep.subr.bf16.mxu0 0
        %1062 = vmatpush2.bf16.msra.mxu0 0
        %1063 = vmatprep.subr.bf16.mxu0 0
        %1064 = vmatpush2.bf16.msra.mxu0 0
        %1065 = vmatprep.mubr.bf16.mxu0 0
        %1066 = vmatmul.mubr.bf16.gmra.mxu0 %v887
        %v1067 = vpop.f32.mrf.mxu0
        %v1068 = vadd.f32 %v893, %v1067
        %v1069 = vpop.f32.mrf.mxu0
        %v1070 = vadd.f32 %v897, %v1069
        %v1071 = vpop.f32.mrf.mxu0
        %v1072 = vpop.f32.mrf.mxu0
        %1073 = vdwg.mxu0
        %1074 = vmatprep.subr.bf16.mxu0 0
        %1075 = vmatpush1.bf16.msra.mxu0 %v1008
        %1076 = vmatprep.subr.bf16.mxu0 0
        %1077 = vmatpush1.bf16.msra.mxu0 %v1005
        %1078 = vmatprep.subr.bf16.mxu0 0
        %1079 = vmatpush1.bf16.msra.mxu0 %v1002
        %1080 = vmatprep.subr.bf16.mxu0 0
        %1081 = vmatpush1.bf16.msra.mxu0 %v999
        %1082 = vmatprep.subr.bf16.mxu0 0
        %1083 = vmatpush1.bf16.msra.mxu0 %v996
        %1084 = vmatprep.subr.bf16.mxu0 0
        %1085 = vmatpush1.bf16.msra.mxu0 %v993
        %1086 = vmatprep.subr.bf16.mxu0 0
        %1087 = vmatpush1.bf16.msra.mxu0 %v990
        %1088 = vmatprep.subr.bf16.mxu0 0
        %1089 = vmatpush1.bf16.msra.mxu0 %v987
        %1090 = vmatprep.subr.bf16.mxu0 0
        %1091 = vmatpush2.bf16.msra.mxu0 0
        %1092 = vmatprep.subr.bf16.mxu0 0
        %1093 = vmatpush2.bf16.msra.mxu0 0
        %1094 = vmatprep.subr.bf16.mxu0 0
        %1095 = vmatpush2.bf16.msra.mxu0 0
        %1096 = vmatprep.subr.bf16.mxu0 0
        %1097 = vmatpush2.bf16.msra.mxu0 0
        %1098 = vmatprep.subr.bf16.mxu0 0
        %1099 = vmatpush2.bf16.msra.mxu0 0
        %1100 = vmatprep.subr.bf16.mxu0 0
        %1101 = vmatpush2.bf16.msra.mxu0 0
        %1102 = vmatprep.subr.bf16.mxu0 0
        %1103 = vmatpush2.bf16.msra.mxu0 0
        %1104 = vmatprep.subr.bf16.mxu0 0
        %1105 = vmatpush2.bf16.msra.mxu0 0
        %1106 = vmatprep.mubr.bf16.mxu0 0
        %1107 = vmatmul.mubr.bf16.gmra.mxu0 %v887
        %v1108 = vpop.f32.mrf.mxu0
        %v1109 = vadd.f32 %v901, %v1108
        %v1110 = vpop.f32.mrf.mxu0
        %v1111 = vpop.f32.mrf.mxu0
        %v1112 = vpop.f32.mrf.mxu0
        %1113 = vdwg.mxu0
        %v1114 = vmul.f32 %v1068, 0.125
        %v1115 = vld [vmem:[%s7] sm:$0xf]
        %v1116 = vld [vmem:[%s7 + $0x4] sm:$0xf]
        %v1117 = vld [vmem:[%s7 + $0x8] sm:$0xf]
        %v1118 = vld [vmem:[%s7 + $0xc] sm:$0xf]
        %v1119 = vld [vmem:[%s7 + $0x10] sm:$0xf]
        %v1120 = vld [vmem:[%s7 + $0x14] sm:$0xf]
        %v1121 = vld [vmem:[%s7 + $0x18] sm:$0xf]
        %v1122 = vld [vmem:[%s7 + $0x1c] sm:$0xf]
        %v1123 = vld [vmem:[%s7 + $0x20] sm:$0xf]
        %v1124 = vld [vmem:[%s7 + $0x24] sm:$0xf]
        %v1125 = vld [vmem:[%s7 + $0x28] sm:$0xf]
        %v1126 = vld [vmem:[%s7 + $0x2c] sm:$0xf]
        %v1127 = vld [vmem:[%s7 + $0x30] sm:$0xf]
        %v1128 = vld [vmem:[%s7 + $0x34] sm:$0xf]
        %v1129 = vld [vmem:[%s7 + $0x38] sm:$0xf]
        %v1130 = vld [vmem:[%s7 + $0x3c] sm:$0xf]
        %v1131 = vpack.c.bf16 %v1114, %v1114
        %v1132 = vpack.c.bf16 %v1070, %v1070
        %vm1133 = vcmask 523264
        %v1135 = vsel %vm1133, %v1131, 0
        %v1138 = vsel %vm1133, %v1132, 0
        %1140 = vmatprep.subr.bf16.mxu0 0
        %1141 = vmatpush1.bf16.xpose.msra.mxu0 0
        %1142 = vmatprep.subr.bf16.mxu0 0
        %1143 = vmatpush1.bf16.xpose.msra.mxu0 0
        %1144 = vmatprep.subr.bf16.mxu0 0
        %1145 = vmatpush1.bf16.xpose.msra.mxu0 0
        %1146 = vmatprep.subr.bf16.mxu0 0
        %1147 = vmatpush1.bf16.xpose.msra.mxu0 0
        %1148 = vmatprep.subr.bf16.mxu0 0
        %1149 = vmatpush1.bf16.xpose.msra.mxu0 0
        %1150 = vmatprep.subr.bf16.mxu0 0
        %1151 = vmatpush1.bf16.xpose.msra.mxu0 0
        %1152 = vmatprep.subr.bf16.mxu0 0
        %1153 = vmatpush1.bf16.xpose.msra.mxu0 0
        %1154 = vmatprep.subr.bf16.mxu0 0
        %1155 = vmatpush1.bf16.xpose.msra.mxu0 %v1138
        %1156 = vmatprep.subr.bf16.mxu0 0
        %1157 = vmatpush2.bf16.xpose.msra.mxu0 0
        %1158 = vmatprep.subr.bf16.mxu0 0
        %1159 = vmatpush2.bf16.xpose.msra.mxu0 0
        %1160 = vmatprep.subr.bf16.mxu0 0
        %1161 = vmatpush2.bf16.xpose.msra.mxu0 0
        %1162 = vmatprep.subr.bf16.mxu0 0
        %1163 = vmatpush2.bf16.xpose.msra.mxu0 0
        %1164 = vmatprep.subr.bf16.mxu0 0
        %1165 = vmatpush2.bf16.xpose.msra.mxu0 0
        %1166 = vmatprep.subr.bf16.mxu0 0
        %1167 = vmatpush2.bf16.xpose.msra.mxu0 0
        %1168 = vmatprep.subr.bf16.mxu0 0
        %1169 = vmatpush2.bf16.xpose.msra.mxu0 0
        %1170 = vmatprep.subr.bf16.mxu0 0
        %1171 = vmatpush2.bf16.xpose.msra.mxu0 0
        %1172 = vmatprep.mubr.bf16.mxu0 0
        %1173 = vmatmul.mubr.bf16.gmra.mxu0 %v1135
        %v1174 = vpop.f32.mrf.mxu0
        %v1175 = vadd.f32 %v789, %v1174
        %v1176 = vpop.f32.mrf.mxu0
        %v1177 = vpop.f32.mrf.mxu0
        %v1178 = vpop.f32.mrf.mxu0
        %1179 = vdwg.mxu0
        %vm1180 = vcmask 64512
        %v1181 = vsel %vm1180, %v1175, -inf
        %1182 = vmax.xlane.f32.xlu0 %v1181
        %v1183 = vpop.xlane.xlu0 %1182
        %v1184 = vsub.f32 %v1175, %v1183
        %v1185 = vmul.f32 %v1184, 1.442695
        %v1186 = vpow.pop %v1185
        %v1187 = vsel %vm1180, %v1186, 0.0
        %1188 = vadd.xlane.f32.xlu0 %v1187
        %v1189 = vpop.xlane.xlu0 %1188
        %v1190 = vrcp.pop %v1189
        %v1191 = vmul.f32 %v1186, %v1190
        %v1192 = vpack.c.bf16 %v1109, %v1109
        %v1193 = vpack.c.bf16 %v1191, %v1191
        %v1195 = vsel %vm1180, %v1193, 0
        %vm1197 = vcmask 1043456
        %v1199 = vsel %vm1197, %v1192, 0
        %1201 = vmatprep.subr.bf16.mxu0 0
        %1202 = vmatpush1.bf16.msra.mxu0 0
        %1203 = vmatprep.subr.bf16.mxu0 0
        %1204 = vmatpush1.bf16.msra.mxu0 0
        %1205 = vmatprep.subr.bf16.mxu0 0
        %1206 = vmatpush1.bf16.msra.mxu0 0
        %1207 = vmatprep.subr.bf16.mxu0 0
        %1208 = vmatpush1.bf16.msra.mxu0 0
        %1209 = vmatprep.subr.bf16.mxu0 0
        %1210 = vmatpush1.bf16.msra.mxu0 0
        %1211 = vmatprep.subr.bf16.mxu0 0
        %1212 = vmatpush1.bf16.msra.mxu0 0
        %1213 = vmatprep.subr.bf16.mxu0 0
        %1214 = vmatpush1.bf16.msra.mxu0 0
        %1215 = vmatprep.subr.bf16.mxu0 0
        %1216 = vmatpush1.bf16.msra.mxu0 %v1199
        %1217 = vmatprep.subr.bf16.mxu0 0
        %1218 = vmatpush2.bf16.msra.mxu0 0
        %1219 = vmatprep.subr.bf16.mxu0 0
        %1220 = vmatpush2.bf16.msra.mxu0 0
        %1221 = vmatprep.subr.bf16.mxu0 0
        %1222 = vmatpush2.bf16.msra.mxu0 0
        %1223 = vmatprep.subr.bf16.mxu0 0
        %1224 = vmatpush2.bf16.msra.mxu0 0
        %1225 = vmatprep.subr.bf16.mxu0 0
        %1226 = vmatpush2.bf16.msra.mxu0 0
        %1227 = vmatprep.subr.bf16.mxu0 0
        %1228 = vmatpush2.bf16.msra.mxu0 0
        %1229 = vmatprep.subr.bf16.mxu0 0
        %1230 = vmatpush2.bf16.msra.mxu0 0
        %1231 = vmatprep.subr.bf16.mxu0 0
        %1232 = vmatpush2.bf16.msra.mxu0 0
        %1233 = vmatprep.mubr.bf16.mxu0 0
        %1234 = vmatmul.mubr.bf16.gmra.mxu0 %v1195
        %v1235 = vpop.f32.mrf.mxu0
        %v1236 = vadd.f32 0.0, %v1235
        %v1237 = vpop.f32.mrf.mxu0
        %v1238 = vpop.f32.mrf.mxu0
        %v1239 = vpop.f32.mrf.mxu0
        %1240 = vdwg.mxu0
        %v1241 = vpack.c.bf16 %v1236, %v1236
        %1243 = vrot.lane.b32.xlu0 %v1131, 64
        %v1244 = vpop.permute.xlu0 %1243
        %1246 = vrot.lane.b32.xlu0 %v1132, 64
        %v1247 = vpop.permute.xlu0 %1246
        %v1249 = vsel %vm1133, %v1244, 0
        %v1252 = vsel %vm1133, %v1247, 0
        %1254 = vmatprep.subr.bf16.mxu0 0
        %1255 = vmatpush1.bf16.xpose.msra.mxu0 0
        %1256 = vmatprep.subr.bf16.mxu0 0
        %1257 = vmatpush1.bf16.xpose.msra.mxu0 0
        %1258 = vmatprep.subr.bf16.mxu0 0
        %1259 = vmatpush1.bf16.xpose.msra.mxu0 0
        %1260 = vmatprep.subr.bf16.mxu0 0
        %1261 = vmatpush1.bf16.xpose.msra.mxu0 0
        %1262 = vmatprep.subr.bf16.mxu0 0
        %1263 = vmatpush1.bf16.xpose.msra.mxu0 0
        %1264 = vmatprep.subr.bf16.mxu0 0
        %1265 = vmatpush1.bf16.xpose.msra.mxu0 0
        %1266 = vmatprep.subr.bf16.mxu0 0
        %1267 = vmatpush1.bf16.xpose.msra.mxu0 0
        %1268 = vmatprep.subr.bf16.mxu0 0
        %1269 = vmatpush1.bf16.xpose.msra.mxu0 %v1252
        %1270 = vmatprep.subr.bf16.mxu0 0
        %1271 = vmatpush2.bf16.xpose.msra.mxu0 0
        %1272 = vmatprep.subr.bf16.mxu0 0
        %1273 = vmatpush2.bf16.xpose.msra.mxu0 0
        %1274 = vmatprep.subr.bf16.mxu0 0
        %1275 = vmatpush2.bf16.xpose.msra.mxu0 0
        %1276 = vmatprep.subr.bf16.mxu0 0
        %1277 = vmatpush2.bf16.xpose.msra.mxu0 0
        %1278 = vmatprep.subr.bf16.mxu0 0
        %1279 = vmatpush2.bf16.xpose.msra.mxu0 0
        %1280 = vmatprep.subr.bf16.mxu0 0
        %1281 = vmatpush2.bf16.xpose.msra.mxu0 0
        %1282 = vmatprep.subr.bf16.mxu0 0
        %1283 = vmatpush2.bf16.xpose.msra.mxu0 0
        %1284 = vmatprep.subr.bf16.mxu0 0
        %1285 = vmatpush2.bf16.xpose.msra.mxu0 0
        %1286 = vmatprep.mubr.bf16.mxu0 0
        %1287 = vmatmul.mubr.bf16.gmra.mxu0 %v1249
        %v1288 = vpop.f32.mrf.mxu0
        %v1289 = vadd.f32 %v789, %v1288
        %v1290 = vpop.f32.mrf.mxu0
        %v1291 = vpop.f32.mrf.mxu0
        %v1292 = vpop.f32.mrf.mxu0
        %1293 = vdwg.mxu0
        %v1294 = vsel %vm1180, %v1289, -inf
        %1295 = vmax.xlane.f32.xlu0 %v1294
        %v1296 = vpop.xlane.xlu0 %1295
        %v1297 = vsub.f32 %v1289, %v1296
        %v1298 = vmul.f32 %v1297, 1.442695
        %v1299 = vpow.pop %v1298
        %v1300 = vsel %vm1180, %v1299, 0.0
        %1301 = vadd.xlane.f32.xlu0 %v1300
        %v1302 = vpop.xlane.xlu0 %1301
        %v1303 = vrcp.pop %v1302
        %v1304 = vmul.f32 %v1299, %v1303
        %v1305 = vpack.c.bf16 %v1304, %v1304
        %1307 = vrot.lane.b32.xlu0 %v1192, 64
        %v1308 = vpop.permute.xlu0 %1307
        %v1310 = vsel %vm1180, %v1305, 0
        %v1313 = vsel %vm1197, %v1308, 0
        %1315 = vmatprep.subr.bf16.mxu0 0
        %1316 = vmatpush1.bf16.msra.mxu0 0
        %1317 = vmatprep.subr.bf16.mxu0 0
        %1318 = vmatpush1.bf16.msra.mxu0 0
        %1319 = vmatprep.subr.bf16.mxu0 0
        %1320 = vmatpush1.bf16.msra.mxu0 0
        %1321 = vmatprep.subr.bf16.mxu0 0
        %1322 = vmatpush1.bf16.msra.mxu0 0
        %1323 = vmatprep.subr.bf16.mxu0 0
        %1324 = vmatpush1.bf16.msra.mxu0 0
        %1325 = vmatprep.subr.bf16.mxu0 0
        %1326 = vmatpush1.bf16.msra.mxu0 0
        %1327 = vmatprep.subr.bf16.mxu0 0
        %1328 = vmatpush1.bf16.msra.mxu0 0
        %1329 = vmatprep.subr.bf16.mxu0 0
        %1330 = vmatpush1.bf16.msra.mxu0 %v1313
        %1331 = vmatprep.subr.bf16.mxu0 0
        %1332 = vmatpush2.bf16.msra.mxu0 0
        %1333 = vmatprep.subr.bf16.mxu0 0
        %1334 = vmatpush2.bf16.msra.mxu0 0
        %1335 = vmatprep.subr.bf16.mxu0 0
        %1336 = vmatpush2.bf16.msra.mxu0 0
        %1337 = vmatprep.subr.bf16.mxu0 0
        %1338 = vmatpush2.bf16.msra.mxu0 0
        %1339 = vmatprep.subr.bf16.mxu0 0
        %1340 = vmatpush2.bf16.msra.mxu0 0
        %1341 = vmatprep.subr.bf16.mxu0 0
        %1342 = vmatpush2.bf16.msra.mxu0 0
        %1343 = vmatprep.subr.bf16.mxu0 0
        %1344 = vmatpush2.bf16.msra.mxu0 0
        %1345 = vmatprep.subr.bf16.mxu0 0
        %1346 = vmatpush2.bf16.msra.mxu0 0
        %1347 = vmatprep.mubr.bf16.mxu0 0
        %1348 = vmatmul.mubr.bf16.gmra.mxu0 %v1310
        %v1349 = vpop.f32.mrf.mxu0
        %v1350 = vadd.f32 0.0, %v1349
        %v1351 = vpop.f32.mrf.mxu0
        %v1352 = vpop.f32.mrf.mxu0
        %v1353 = vpop.f32.mrf.mxu0
        %1354 = vdwg.mxu0
        %v1355 = vpack.c.bf16 %v1350, %v1350
        %v1364 = vunpack.c.l.b16 %v1123
        %v1365 = vunpack.c.l.b16 %v1124
        %v1366 = vunpack.c.l.b16 %v1125
        %v1367 = vunpack.c.l.b16 %v1126
        %v1368 = vunpack.c.l.b16 %v1127
        %v1369 = vunpack.c.l.b16 %v1128
        %v1370 = vunpack.c.l.b16 %v1129
        %v1371 = vunpack.c.l.b16 %v1130
        %v1372 = vpack.c.b16 %v1365, %v1364
        %v1373 = vpack.c.b16 %v1367, %v1366
        %v1374 = vpack.c.b16 %v1369, %v1368
        %v1375 = vpack.c.b16 %v1371, %v1370
        %v1381 = vsel %vm1133, %v1355, 0
        %1383 = vmatprep.subr.bf16.mxu0 0
        %1384 = vmatpush1.bf16.msra.mxu0 0
        %1385 = vmatprep.subr.bf16.mxu0 0
        %1386 = vmatpush1.bf16.msra.mxu0 0
        %1387 = vmatprep.subr.bf16.mxu0 0
        %1388 = vmatpush1.bf16.msra.mxu0 0
        %1389 = vmatprep.subr.bf16.mxu0 0
        %1390 = vmatpush1.bf16.msra.mxu0 0
        %1391 = vmatprep.subr.bf16.mxu0 0
        %1392 = vmatpush1.bf16.msra.mxu0 %v1375
        %1393 = vmatprep.subr.bf16.mxu0 0
        %1394 = vmatpush1.bf16.msra.mxu0 %v1374
        %1395 = vmatprep.subr.bf16.mxu0 0
        %1396 = vmatpush1.bf16.msra.mxu0 %v1373
        %1397 = vmatprep.subr.bf16.mxu0 0
        %1398 = vmatpush1.bf16.msra.mxu0 %v1372
        %1399 = vmatprep.subr.bf16.mxu0 0
        %1400 = vmatpush2.bf16.msra.mxu0 0
        %1401 = vmatprep.subr.bf16.mxu0 0
        %1402 = vmatpush2.bf16.msra.mxu0 0
        %1403 = vmatprep.subr.bf16.mxu0 0
        %1404 = vmatpush2.bf16.msra.mxu0 0
        %1405 = vmatprep.subr.bf16.mxu0 0
        %1406 = vmatpush2.bf16.msra.mxu0 0
        %1407 = vmatprep.subr.bf16.mxu0 0
        %1408 = vmatpush2.bf16.msra.mxu0 0
        %1409 = vmatprep.subr.bf16.mxu0 0
        %1410 = vmatpush2.bf16.msra.mxu0 0
        %1411 = vmatprep.subr.bf16.mxu0 0
        %1412 = vmatpush2.bf16.msra.mxu0 0
        %1413 = vmatprep.subr.bf16.mxu0 0
        %1414 = vmatpush2.bf16.msra.mxu0 0
        %1415 = vmatprep.mubr.bf16.mxu0 0
        %1416 = vmatmul.mubr.bf16.gmra.mxu0 %v1381
        %v1417 = vpop.f32.mrf.mxu0
        %v1418 = vadd.f32 0.0, %v1417
        %v1419 = vpop.f32.mrf.mxu0
        %v1420 = vpop.f32.mrf.mxu0
        %v1421 = vpop.f32.mrf.mxu0
        %1422 = vdwg.mxu0
        %v1431 = vunpack.c.l.b16 %v1115
        %v1432 = vunpack.c.l.b16 %v1116
        %v1433 = vunpack.c.l.b16 %v1117
        %v1434 = vunpack.c.l.b16 %v1118
        %v1435 = vunpack.c.l.b16 %v1119
        %v1436 = vunpack.c.l.b16 %v1120
        %v1437 = vunpack.c.l.b16 %v1121
        %v1438 = vunpack.c.l.b16 %v1122
        %v1439 = vpack.c.b16 %v1432, %v1431
        %v1440 = vpack.c.b16 %v1434, %v1433
        %v1441 = vpack.c.b16 %v1436, %v1435
        %v1442 = vpack.c.b16 %v1438, %v1437
        %v1448 = vsel %vm1133, %v1241, 0
        %1450 = vmatprep.subr.bf16.mxu0 0
        %1451 = vmatpush1.bf16.msra.mxu0 0
        %1452 = vmatprep.subr.bf16.mxu0 0
        %1453 = vmatpush1.bf16.msra.mxu0 0
        %1454 = vmatprep.subr.bf16.mxu0 0
        %1455 = vmatpush1.bf16.msra.mxu0 0
        %1456 = vmatprep.subr.bf16.mxu0 0
        %1457 = vmatpush1.bf16.msra.mxu0 0
        %1458 = vmatprep.subr.bf16.mxu0 0
        %1459 = vmatpush1.bf16.msra.mxu0 %v1442
        %1460 = vmatprep.subr.bf16.mxu0 0
        %1461 = vmatpush1.bf16.msra.mxu0 %v1441
        %1462 = vmatprep.subr.bf16.mxu0 0
        %1463 = vmatpush1.bf16.msra.mxu0 %v1440
        %1464 = vmatprep.subr.bf16.mxu0 0
        %1465 = vmatpush1.bf16.msra.mxu0 %v1439
        %1466 = vmatprep.subr.bf16.mxu0 0
        %1467 = vmatpush2.bf16.msra.mxu0 0
        %1468 = vmatprep.subr.bf16.mxu0 0
        %1469 = vmatpush2.bf16.msra.mxu0 0
        %1470 = vmatprep.subr.bf16.mxu0 0
        %1471 = vmatpush2.bf16.msra.mxu0 0
        %1472 = vmatprep.subr.bf16.mxu0 0
        %1473 = vmatpush2.bf16.msra.mxu0 0
        %1474 = vmatprep.subr.bf16.mxu0 0
        %1475 = vmatpush2.bf16.msra.mxu0 0
        %1476 = vmatprep.subr.bf16.mxu0 0
        %1477 = vmatpush2.bf16.msra.mxu0 0
        %1478 = vmatprep.subr.bf16.mxu0 0
        %1479 = vmatpush2.bf16.msra.mxu0 0
        %1480 = vmatprep.subr.bf16.mxu0 0
        %1481 = vmatpush2.bf16.msra.mxu0 0
        %1482 = vmatprep.mubr.bf16.mxu0 0
        %1483 = vmatmul.mubr.bf16.gmra.mxu0 %v1448
        %v1484 = vpop.f32.mrf.mxu0
        %v1485 = vadd.f32 %v1418, %v1484
        %v1486 = vpop.f32.mrf.mxu0
        %v1487 = vpop.f32.mrf.mxu0
        %v1488 = vpop.f32.mrf.mxu0
        %1489 = vdwg.mxu0
        %v1490 = vld [vmem:[%s8] sm:$0x1]
        %v1492 = vlaneseq
        %v1493 = vshrl.u32 %v1492, 7
        %v1494 = vsub.s32 0, %v1493
        %v1495 = vrot.slane %v1490, %v1494
        %v1497 = vadd.f32 %v1485, %v1495
        %v1498 = vadd.f32 %v854, %v1497
        %v1499 = vld [vmem:[#allocation16] sm:$0x1]
        %v1500 = vld [vmem:[#allocation18] sm:$0x1]
        %1501 = vadd.xlane.f32.xlu0 %v1498
        %v1502 = vpop.xlane.xlu0 %1501
        %v1503 = vrcp.pop 128.0
        %v1504 = vmul.f32 %v1502, %v1503
        %v1505 = vsub.f32 %v1498, %v1504
        %v1506 = vmul.f32 %v1505, %v1505
        %1507 = vadd.xlane.f32.xlu0 %v1506
        %v1508 = vpop.xlane.xlu0 %1507
        %v1509 = vmul.f32 %v1508, %v1503
        %v1510 = vadd.f32 %v1509, 1e-06
        %v1511 = vrsqrt.pop %v1510
        %v1512 = vmul.f32 %v1505, %v1511
        %v1514 = vlaneseq
        %v1515 = vshrl.u32 %v1514, 7
        %v1516 = vsub.s32 0, %v1515
        %v1517 = vrot.slane %v1499, %v1516
        %v1519 = vmul.f32 %v1512, %v1517
        %v1521 = vlaneseq
        %v1522 = vshrl.u32 %v1521, 7
        %v1523 = vsub.s32 0, %v1522
        %v1524 = vrot.slane %v1500, %v1523
        %v1526 = vadd.f32 %v1519, %v1524
        %v1527 = vld [vmem:[#allocation12] sm:$0xff]
        %v1528 = vld [vmem:[#allocation12 + $0x8] sm:$0xff]
        %v1529 = vld [vmem:[#allocation12 + $0x10] sm:$0xff]
        %v1530 = vld [vmem:[#allocation12 + $0x18] sm:$0xff]
        %v1531 = vld [vmem:[#allocation12 + $0x20] sm:$0xff]
        %v1532 = vld [vmem:[#allocation12 + $0x28] sm:$0xff]
        %v1533 = vld [vmem:[#allocation12 + $0x30] sm:$0xff]
        %v1534 = vld [vmem:[#allocation12 + $0x38] sm:$0xff]
        %v1535 = vld [vmem:[#allocation12 + $0x40] sm:$0xff]
        %v1536 = vld [vmem:[#allocation12 + $0x48] sm:$0xff]
        %v1537 = vld [vmem:[#allocation12 + $0x50] sm:$0xff]
        %v1538 = vld [vmem:[#allocation12 + $0x58] sm:$0xff]
        %v1539 = vld [vmem:[#allocation12 + $0x60] sm:$0xff]
        %v1540 = vld [vmem:[#allocation12 + $0x68] sm:$0xff]
        %v1541 = vld [vmem:[#allocation12 + $0x70] sm:$0xff]
        %v1542 = vld [vmem:[#allocation12 + $0x78] sm:$0xff]
        %v1543 = vld [vmem:[#allocation12 + $0x80] sm:$0xff]
        %v1544 = vld [vmem:[#allocation12 + $0x88] sm:$0xff]
        %v1545 = vld [vmem:[#allocation12 + $0x90] sm:$0xff]
        %v1546 = vld [vmem:[#allocation12 + $0x98] sm:$0xff]
        %v1547 = vld [vmem:[#allocation12 + $0xa0] sm:$0xff]
        %v1548 = vld [vmem:[#allocation12 + $0xa8] sm:$0xff]
        %v1549 = vld [vmem:[#allocation12 + $0xb0] sm:$0xff]
        %v1550 = vld [vmem:[#allocation12 + $0xb8] sm:$0xff]
        %v1551 = vld [vmem:[#allocation12 + $0xc0] sm:$0xff]
        %v1552 = vld [vmem:[#allocation12 + $0xc8] sm:$0xff]
        %v1553 = vld [vmem:[#allocation12 + $0xd0] sm:$0xff]
        %v1554 = vld [vmem:[#allocation12 + $0xd8] sm:$0xff]
        %v1555 = vld [vmem:[#allocation12 + $0xe0] sm:$0xff]
        %v1556 = vld [vmem:[#allocation12 + $0xe8] sm:$0xff]
        %v1557 = vld [vmem:[#allocation12 + $0xf0] sm:$0xff]
        %v1558 = vld [vmem:[#allocation12 + $0xf8] sm:$0xff]
        %v1559 = vpack.c.bf16 %v1526, %v1526
        %v1560 = vld [vmem:[%s10] sm:$0xf]
        %v1562 = vlaneseq
        %v1563 = vshrl.u32 %v1562, 7
        %v1564 = vsub.s32 0, %v1563
        %v1565 = vrot.slane %v1560, %v1564
        %v1566 = vlaneseq
        %v1567 = vshrl.u32 %v1566, 7
        %v1568 = vsub.s32 1, %v1567
        %v1569 = vrot.slane %v1560, %v1568
        %v1570 = vlaneseq
        %v1571 = vshrl.u32 %v1570, 7
        %v1572 = vsub.s32 2, %v1571
        %v1573 = vrot.slane %v1560, %v1572
        %v1574 = vlaneseq
        %v1575 = vshrl.u32 %v1574, 7
        %v1576 = vsub.s32 3, %v1575
        %v1577 = vrot.slane %v1560, %v1576
        %v1614 = vunpack.c.l.b16 %v1527
        %v1615 = vunpack.c.h.b16 %v1527
        %v1616 = vunpack.c.l.b16 %v1528
        %v1617 = vunpack.c.h.b16 %v1528
        %v1618 = vunpack.c.l.b16 %v1529
        %v1619 = vunpack.c.h.b16 %v1529
        %v1620 = vunpack.c.l.b16 %v1530
        %v1621 = vunpack.c.h.b16 %v1530
        %v1622 = vunpack.c.l.b16 %v1531
        %v1623 = vunpack.c.h.b16 %v1531
        %v1624 = vunpack.c.l.b16 %v1532
        %v1625 = vunpack.c.h.b16 %v1532
        %v1626 = vunpack.c.l.b16 %v1533
        %v1627 = vunpack.c.h.b16 %v1533
        %v1628 = vunpack.c.l.b16 %v1534
        %v1629 = vunpack.c.h.b16 %v1534
        %v1630 = vunpack.c.l.b16 %v1535
        %v1631 = vunpack.c.h.b16 %v1535
        %v1632 = vunpack.c.l.b16 %v1536
        %v1633 = vunpack.c.h.b16 %v1536
        %v1634 = vunpack.c.l.b16 %v1537
        %v1635 = vunpack.c.h.b16 %v1537
        %v1636 = vunpack.c.l.b16 %v1538
        %v1637 = vunpack.c.h.b16 %v1538
        %v1638 = vunpack.c.l.b16 %v1539
        %v1639 = vunpack.c.h.b16 %v1539
        %v1640 = vunpack.c.l.b16 %v1540
        %v1641 = vunpack.c.h.b16 %v1540
        %v1642 = vunpack.c.l.b16 %v1541
        %v1643 = vunpack.c.h.b16 %v1541
        %v1644 = vunpack.c.l.b16 %v1542
        %v1645 = vunpack.c.h.b16 %v1542
        %v1646 = vunpack.c.l.b16 %v1543
        %v1647 = vunpack.c.h.b16 %v1543
        %v1648 = vunpack.c.l.b16 %v1544
        %v1649 = vunpack.c.h.b16 %v1544
        %v1650 = vunpack.c.l.b16 %v1545
        %v1651 = vunpack.c.h.b16 %v1545
        %v1652 = vunpack.c.l.b16 %v1546
        %v1653 = vunpack.c.h.b16 %v1546
        %v1654 = vunpack.c.l.b16 %v1547
        %v1655 = vunpack.c.h.b16 %v1547
        %v1656 = vunpack.c.l.b16 %v1548
        %v1657 = vunpack.c.h.b16 %v1548
        %v1658 = vunpack.c.l.b16 %v1549
        %v1659 = vunpack.c.h.b16 %v1549
        %v1660 = vunpack.c.l.b16 %v1550
        %v1661 = vunpack.c.h.b16 %v1550
        %v1662 = vunpack.c.l.b16 %v1551
        %v1663 = vunpack.c.h.b16 %v1551
        %v1664 = vunpack.c.l.b16 %v1552
        %v1665 = vunpack.c.h.b16 %v1552
        %v1666 = vunpack.c.l.b16 %v1553
        %v1667 = vunpack.c.h.b16 %v1553
        %v1668 = vunpack.c.l.b16 %v1554
        %v1669 = vunpack.c.h.b16 %v1554
        %v1670 = vunpack.c.l.b16 %v1555
        %v1671 = vunpack.c.h.b16 %v1555
        %v1672 = vunpack.c.l.b16 %v1556
        %v1673 = vunpack.c.h.b16 %v1556
        %v1674 = vunpack.c.l.b16 %v1557
        %v1675 = vunpack.c.h.b16 %v1557
        %v1676 = vunpack.c.l.b16 %v1558
        %v1677 = vunpack.c.h.b16 %v1558
        %v1678 = vpack.c.b16 %v1618, %v1614
        %v1679 = vpack.c.b16 %v1619, %v1615
        %v1680 = vpack.c.b16 %v1620, %v1616
        %v1681 = vpack.c.b16 %v1621, %v1617
        %v1682 = vpack.c.b16 %v1626, %v1622
        %v1683 = vpack.c.b16 %v1627, %v1623
        %v1684 = vpack.c.b16 %v1628, %v1624
        %v1685 = vpack.c.b16 %v1629, %v1625
        %v1686 = vpack.c.b16 %v1634, %v1630
        %v1687 = vpack.c.b16 %v1635, %v1631
        %v1688 = vpack.c.b16 %v1636, %v1632
        %v1689 = vpack.c.b16 %v1637, %v1633
        %v1690 = vpack.c.b16 %v1642, %v1638
        %v1691 = vpack.c.b16 %v1643, %v1639
        %v1692 = vpack.c.b16 %v1644, %v1640
        %v1693 = vpack.c.b16 %v1645, %v1641
        %v1694 = vpack.c.b16 %v1650, %v1646
        %v1695 = vpack.c.b16 %v1651, %v1647
        %v1696 = vpack.c.b16 %v1652, %v1648
        %v1697 = vpack.c.b16 %v1653, %v1649
        %v1698 = vpack.c.b16 %v1658, %v1654
        %v1699 = vpack.c.b16 %v1659, %v1655
        %v1700 = vpack.c.b16 %v1660, %v1656
        %v1701 = vpack.c.b16 %v1661, %v1657
        %v1702 = vpack.c.b16 %v1666, %v1662
        %v1703 = vpack.c.b16 %v1667, %v1663
        %v1704 = vpack.c.b16 %v1668, %v1664
        %v1705 = vpack.c.b16 %v1669, %v1665
        %v1706 = vpack.c.b16 %v1674, %v1670
        %v1707 = vpack.c.b16 %v1675, %v1671
        %v1708 = vpack.c.b16 %v1676, %v1672
        %v1709 = vpack.c.b16 %v1677, %v1673
        %1742 = vmatprep.subr.bf16.mxu0 %v1707
        %1743 = vmatpush1.bf16.msra.mxu0 %v1706
        %1744 = vmatprep.subr.bf16.mxu0 %v1703
        %1745 = vmatpush1.bf16.msra.mxu0 %v1702
        %1746 = vmatprep.subr.bf16.mxu0 %v1699
        %1747 = vmatpush1.bf16.msra.mxu0 %v1698
        %1748 = vmatprep.subr.bf16.mxu0 %v1695
        %1749 = vmatpush1.bf16.msra.mxu0 %v1694
        %1750 = vmatprep.subr.bf16.mxu0 %v1691
        %1751 = vmatpush1.bf16.msra.mxu0 %v1690
        %1752 = vmatprep.subr.bf16.mxu0 %v1687
        %1753 = vmatpush1.bf16.msra.mxu0 %v1686
        %1754 = vmatprep.subr.bf16.mxu0 %v1683
        %1755 = vmatpush1.bf16.msra.mxu0 %v1682
        %1756 = vmatprep.subr.bf16.mxu0 %v1679
        %1757 = vmatpush1.bf16.msra.mxu0 %v1678
        %1758 = vmatprep.subr.bf16.mxu0 0
        %1759 = vmatpush2.bf16.msra.mxu0 0
        %1760 = vmatprep.subr.bf16.mxu0 0
        %1761 = vmatpush2.bf16.msra.mxu0 0
        %1762 = vmatprep.subr.bf16.mxu0 0
        %1763 = vmatpush2.bf16.msra.mxu0 0
        %1764 = vmatprep.subr.bf16.mxu0 0
        %1765 = vmatpush2.bf16.msra.mxu0 0
        %1766 = vmatprep.subr.bf16.mxu0 0
        %1767 = vmatpush2.bf16.msra.mxu0 0
        %1768 = vmatprep.subr.bf16.mxu0 0
        %1769 = vmatpush2.bf16.msra.mxu0 0
        %1770 = vmatprep.subr.bf16.mxu0 0
        %1771 = vmatpush2.bf16.msra.mxu0 0
        %1772 = vmatprep.subr.bf16.mxu0 0
        %1773 = vmatpush2.bf16.msra.mxu0 0
        %1774 = vmatprep.mubr.bf16.mxu0 0
        %1775 = vmatmul.mubr.bf16.gmra.mxu0 %v1559
        %v1776 = vpop.f32.mrf.mxu0
        %v1777 = vadd.f32 %v1565, %v1776
        %v1778 = vpop.f32.mrf.mxu0
        %v1779 = vadd.f32 %v1569, %v1778
        %v1780 = vpop.f32.mrf.mxu0
        %v1781 = vpop.f32.mrf.mxu0
        %1782 = vdwg.mxu0
        %1783 = vmatprep.subr.bf16.mxu0 %v1709
        %1784 = vmatpush1.bf16.msra.mxu0 %v1708
        %1785 = vmatprep.subr.bf16.mxu0 %v1705
        %1786 = vmatpush1.bf16.msra.mxu0 %v1704
        %1787 = vmatprep.subr.bf16.mxu0 %v1701
        %1788 = vmatpush1.bf16.msra.mxu0 %v1700
        %1789 = vmatprep.subr.bf16.mxu0 %v1697
        %1790 = vmatpush1.bf16.msra.mxu0 %v1696
        %1791 = vmatprep.subr.bf16.mxu0 %v1693
        %1792 = vmatpush1.bf16.msra.mxu0 %v1692
        %1793 = vmatprep.subr.bf16.mxu0 %v1689
        %1794 = vmatpush1.bf16.msra.mxu0 %v1688
        %1795 = vmatprep.subr.bf16.mxu0 %v1685
        %1796 = vmatpush1.bf16.msra.mxu0 %v1684
        %1797 = vmatprep.subr.bf16.mxu0 %v1681
        %1798 = vmatpush1.bf16.msra.mxu0 %v1680
        %1799 = vmatprep.subr.bf16.mxu0 0
        %1800 = vmatpush2.bf16.msra.mxu0 0
        %1801 = vmatprep.subr.bf16.mxu0 0
        %1802 = vmatpush2.bf16.msra.mxu0 0
        %1803 = vmatprep.subr.bf16.mxu0 0
        %1804 = vmatpush2.bf16.msra.mxu0 0
        %1805 = vmatprep.subr.bf16.mxu0 0
        %1806 = vmatpush2.bf16.msra.mxu0 0
        %1807 = vmatprep.subr.bf16.mxu0 0
        %1808 = vmatpush2.bf16.msra.mxu0 0
        %1809 = vmatprep.subr.bf16.mxu0 0
        %1810 = vmatpush2.bf16.msra.mxu0 0
        %1811 = vmatprep.subr.bf16.mxu0 0
        %1812 = vmatpush2.bf16.msra.mxu0 0
        %1813 = vmatprep.subr.bf16.mxu0 0
        %1814 = vmatpush2.bf16.msra.mxu0 0
        %1815 = vmatprep.mubr.bf16.mxu0 0
        %1816 = vmatmul.mubr.bf16.gmra.mxu0 %v1559
        %v1817 = vpop.f32.mrf.mxu0
        %v1818 = vadd.f32 %v1573, %v1817
        %v1819 = vpop.f32.mrf.mxu0
        %v1820 = vadd.f32 %v1577, %v1819
        %v1821 = vpop.f32.mrf.mxu0
        %v1822 = vpop.f32.mrf.mxu0
        %1823 = vdwg.mxu0
        %v1824 = vmax.f32 %v1777, 0.0
        %v1825 = vmax.f32 %v1779, 0.0
        %v1826 = vmax.f32 %v1818, 0.0
        %v1827 = vmax.f32 %v1820, 0.0
        %v1828 = vld [vmem:[#allocation13] sm:$0xf]
        %v1829 = vld [vmem:[#allocation13 + $0x4] sm:$0xf]
        %v1830 = vld [vmem:[#allocation13 + $0x8] sm:$0xf]
        %v1831 = vld [vmem:[#allocation13 + $0xc] sm:$0xf]
        %v1832 = vld [vmem:[#allocation13 + $0x10] sm:$0xf]
        %v1833 = vld [vmem:[#allocation13 + $0x14] sm:$0xf]
        %v1834 = vld [vmem:[#allocation13 + $0x18] sm:$0xf]
        %v1835 = vld [vmem:[#allocation13 + $0x1c] sm:$0xf]
        %v1836 = vld [vmem:[#allocation13 + $0x20] sm:$0xf]
        %v1837 = vld [vmem:[#allocation13 + $0x24] sm:$0xf]
        %v1838 = vld [vmem:[#allocation13 + $0x28] sm:$0xf]
        %v1839 = vld [vmem:[#allocation13 + $0x2c] sm:$0xf]
        %v1840 = vld [vmem:[#allocation13 + $0x30] sm:$0xf]
        %v1841 = vld [vmem:[#allocation13 + $0x34] sm:$0xf]
        %v1842 = vld [vmem:[#allocation13 + $0x38] sm:$0xf]
        %v1843 = vld [vmem:[#allocation13 + $0x3c] sm:$0xf]
        %v1844 = vld [vmem:[#allocation13 + $0x40] sm:$0xf]
        %v1845 = vld [vmem:[#allocation13 + $0x44] sm:$0xf]
        %v1846 = vld [vmem:[#allocation13 + $0x48] sm:$0xf]
        %v1847 = vld [vmem:[#allocation13 + $0x4c] sm:$0xf]
        %v1848 = vld [vmem:[#allocation13 + $0x50] sm:$0xf]
        %v1849 = vld [vmem:[#allocation13 + $0x54] sm:$0xf]
        %v1850 = vld [vmem:[#allocation13 + $0x58] sm:$0xf]
        %v1851 = vld [vmem:[#allocation13 + $0x5c] sm:$0xf]
        %v1852 = vld [vmem:[#allocation13 + $0x60] sm:$0xf]
        %v1853 = vld [vmem:[#allocation13 + $0x64] sm:$0xf]
        %v1854 = vld [vmem:[#allocation13 + $0x68] sm:$0xf]
        %v1855 = vld [vmem:[#allocation13 + $0x6c] sm:$0xf]
        %v1856 = vld [vmem:[#allocation13 + $0x70] sm:$0xf]
        %v1857 = vld [vmem:[#allocation13 + $0x74] sm:$0xf]
        %v1858 = vld [vmem:[#allocation13 + $0x78] sm:$0xf]
        %v1859 = vld [vmem:[#allocation13 + $0x7c] sm:$0xf]
        %v1860 = vld [vmem:[#allocation13 + $0x80] sm:$0xf]
        %v1861 = vld [vmem:[#allocation13 + $0x84] sm:$0xf]
        %v1862 = vld [vmem:[#allocation13 + $0x88] sm:$0xf]
        %v1863 = vld [vmem:[#allocation13 + $0x8c] sm:$0xf]
        %v1864 = vld [vmem:[#allocation13 + $0x90] sm:$0xf]
        %v1865 = vld [vmem:[#allocation13 + $0x94] sm:$0xf]
        %v1866 = vld [vmem:[#allocation13 + $0x98] sm:$0xf]
        %v1867 = vld [vmem:[#allocation13 + $0x9c] sm:$0xf]
        %v1868 = vld [vmem:[#allocation13 + $0xa0] sm:$0xf]
        %v1869 = vld [vmem:[#allocation13 + $0xa4] sm:$0xf]
        %v1870 = vld [vmem:[#allocation13 + $0xa8] sm:$0xf]
        %v1871 = vld [vmem:[#allocation13 + $0xac] sm:$0xf]
        %v1872 = vld [vmem:[#allocation13 + $0xb0] sm:$0xf]
        %v1873 = vld [vmem:[#allocation13 + $0xb4] sm:$0xf]
        %v1874 = vld [vmem:[#allocation13 + $0xb8] sm:$0xf]
        %v1875 = vld [vmem:[#allocation13 + $0xbc] sm:$0xf]
        %v1876 = vld [vmem:[#allocation13 + $0xc0] sm:$0xf]
        %v1877 = vld [vmem:[#allocation13 + $0xc4] sm:$0xf]
        %v1878 = vld [vmem:[#allocation13 + $0xc8] sm:$0xf]
        %v1879 = vld [vmem:[#allocation13 + $0xcc] sm:$0xf]
        %v1880 = vld [vmem:[#allocation13 + $0xd0] sm:$0xf]
        %v1881 = vld [vmem:[#allocation13 + $0xd4] sm:$0xf]
        %v1882 = vld [vmem:[#allocation13 + $0xd8] sm:$0xf]
        %v1883 = vld [vmem:[#allocation13 + $0xdc] sm:$0xf]
        %v1884 = vld [vmem:[#allocation13 + $0xe0] sm:$0xf]
        %v1885 = vld [vmem:[#allocation13 + $0xe4] sm:$0xf]
        %v1886 = vld [vmem:[#allocation13 + $0xe8] sm:$0xf]
        %v1887 = vld [vmem:[#allocation13 + $0xec] sm:$0xf]
        %v1888 = vld [vmem:[#allocation13 + $0xf0] sm:$0xf]
        %v1889 = vld [vmem:[#allocation13 + $0xf4] sm:$0xf]
        %v1890 = vld [vmem:[#allocation13 + $0xf8] sm:$0xf]
        %v1891 = vld [vmem:[#allocation13 + $0xfc] sm:$0xf]
        %v1892 = vpack.c.bf16 %v1824, %v1824
        %v1893 = vpack.c.bf16 %v1825, %v1825
        %v1894 = vpack.c.bf16 %v1826, %v1826
        %v1895 = vpack.c.bf16 %v1827, %v1827
        %v1896 = vld [vmem:[#allocation15] sm:$0x1]
        %v1898 = vlaneseq
        %v1899 = vshrl.u32 %v1898, 7
        %v1900 = vsub.s32 0, %v1899
        %v1901 = vrot.slane %v1896, %v1900
        %v1967 = vunpack.c.l.b16 %v1828
        %v1968 = vunpack.c.l.b16 %v1829
        %v1969 = vunpack.c.l.b16 %v1830
        %v1970 = vunpack.c.l.b16 %v1831
        %v1971 = vunpack.c.l.b16 %v1832
        %v1972 = vunpack.c.l.b16 %v1833
        %v1973 = vunpack.c.l.b16 %v1834
        %v1974 = vunpack.c.l.b16 %v1835
        %v1975 = vunpack.c.l.b16 %v1836
        %v1976 = vunpack.c.l.b16 %v1837
        %v1977 = vunpack.c.l.b16 %v1838
        %v1978 = vunpack.c.l.b16 %v1839
        %v1979 = vunpack.c.l.b16 %v1840
        %v1980 = vunpack.c.l.b16 %v1841
        %v1981 = vunpack.c.l.b16 %v1842
        %v1982 = vunpack.c.l.b16 %v1843
        %v1983 = vunpack.c.l.b16 %v1844
        %v1984 = vunpack.c.l.b16 %v1845
        %v1985 = vunpack.c.l.b16 %v1846
        %v1986 = vunpack.c.l.b16 %v1847
        %v1987 = vunpack.c.l.b16 %v1848
        %v1988 = vunpack.c.l.b16 %v1849
        %v1989 = vunpack.c.l.b16 %v1850
        %v1990 = vunpack.c.l.b16 %v1851
        %v1991 = vunpack.c.l.b16 %v1852
        %v1992 = vunpack.c.l.b16 %v1853
        %v1993 = vunpack.c.l.b16 %v1854
        %v1994 = vunpack.c.l.b16 %v1855
        %v1995 = vunpack.c.l.b16 %v1856
        %v1996 = vunpack.c.l.b16 %v1857
        %v1997 = vunpack.c.l.b16 %v1858
        %v1998 = vunpack.c.l.b16 %v1859
        %v1999 = vunpack.c.l.b16 %v1860
        %v2000 = vunpack.c.l.b16 %v1861
        %v2001 = vunpack.c.l.b16 %v1862
        %v2002 = vunpack.c.l.b16 %v1863
        %v2003 = vunpack.c.l.b16 %v1864
        %v2004 = vunpack.c.l.b16 %v1865
        %v2005 = vunpack.c.l.b16 %v1866
        %v2006 = vunpack.c.l.b16 %v1867
        %v2007 = vunpack.c.l.b16 %v1868
        %v2008 = vunpack.c.l.b16 %v1869
        %v2009 = vunpack.c.l.b16 %v1870
        %v2010 = vunpack.c.l.b16 %v1871
        %v2011 = vunpack.c.l.b16 %v1872
        %v2012 = vunpack.c.l.b16 %v1873
        %v2013 = vunpack.c.l.b16 %v1874
        %v2014 = vunpack.c.l.b16 %v1875
        %v2015 = vunpack.c.l.b16 %v1876
        %v2016 = vunpack.c.l.b16 %v1877
        %v2017 = vunpack.c.l.b16 %v1878
        %v2018 = vunpack.c.l.b16 %v1879
        %v2019 = vunpack.c.l.b16 %v1880
        %v2020 = vunpack.c.l.b16 %v1881
        %v2021 = vunpack.c.l.b16 %v1882
        %v2022 = vunpack.c.l.b16 %v1883
        %v2023 = vunpack.c.l.b16 %v1884
        %v2024 = vunpack.c.l.b16 %v1885
        %v2025 = vunpack.c.l.b16 %v1886
        %v2026 = vunpack.c.l.b16 %v1887
        %v2027 = vunpack.c.l.b16 %v1888
        %v2028 = vunpack.c.l.b16 %v1889
        %v2029 = vunpack.c.l.b16 %v1890
        %v2030 = vunpack.c.l.b16 %v1891
        %v2031 = vpack.c.b16 %v1968, %v1967
        %v2032 = vpack.c.b16 %v1970, %v1969
        %v2033 = vpack.c.b16 %v1972, %v1971
        %v2034 = vpack.c.b16 %v1974, %v1973
        %v2035 = vpack.c.b16 %v1976, %v1975
        %v2036 = vpack.c.b16 %v1978, %v1977
        %v2037 = vpack.c.b16 %v1980, %v1979
        %v2038 = vpack.c.b16 %v1982, %v1981
        %v2039 = vpack.c.b16 %v1984, %v1983
        %v2040 = vpack.c.b16 %v1986, %v1985
        %v2041 = vpack.c.b16 %v1988, %v1987
        %v2042 = vpack.c.b16 %v1990, %v1989
        %v2043 = vpack.c.b16 %v1992, %v1991
        %v2044 = vpack.c.b16 %v1994, %v1993
        %v2045 = vpack.c.b16 %v1996, %v1995
        %v2046 = vpack.c.b16 %v1998, %v1997
        %v2047 = vpack.c.b16 %v2000, %v1999
        %v2048 = vpack.c.b16 %v2002, %v2001
        %v2049 = vpack.c.b16 %v2004, %v2003
        %v2050 = vpack.c.b16 %v2006, %v2005
        %v2051 = vpack.c.b16 %v2008, %v2007
        %v2052 = vpack.c.b16 %v2010, %v2009
        %v2053 = vpack.c.b16 %v2012, %v2011
        %v2054 = vpack.c.b16 %v2014, %v2013
        %v2055 = vpack.c.b16 %v2016, %v2015
        %v2056 = vpack.c.b16 %v2018, %v2017
        %v2057 = vpack.c.b16 %v2020, %v2019
        %v2058 = vpack.c.b16 %v2022, %v2021
        %v2059 = vpack.c.b16 %v2024, %v2023
        %v2060 = vpack.c.b16 %v2026, %v2025
        %v2061 = vpack.c.b16 %v2028, %v2027
        %v2062 = vpack.c.b16 %v2030, %v2029
        %2095 = vmatprep.subr.bf16.mxu0 0
        %2096 = vmatpush1.bf16.msra.mxu0 %v2038
        %2097 = vmatprep.subr.bf16.mxu0 0
        %2098 = vmatpush1.bf16.msra.mxu0 %v2037
        %2099 = vmatprep.subr.bf16.mxu0 0
        %2100 = vmatpush1.bf16.msra.mxu0 %v2036
        %2101 = vmatprep.subr.bf16.mxu0 0
        %2102 = vmatpush1.bf16.msra.mxu0 %v2035
        %2103 = vmatprep.subr.bf16.mxu0 0
        %2104 = vmatpush1.bf16.msra.mxu0 %v2034
        %2105 = vmatprep.subr.bf16.mxu0 0
        %2106 = vmatpush1.bf16.msra.mxu0 %v2033
        %2107 = vmatprep.subr.bf16.mxu0 0
        %2108 = vmatpush1.bf16.msra.mxu0 %v2032
        %2109 = vmatprep.subr.bf16.mxu0 0
        %2110 = vmatpush1.bf16.msra.mxu0 %v2031
        %2111 = vmatprep.subr.bf16.mxu0 0
        %2112 = vmatpush2.bf16.msra.mxu0 %v2046
        %2113 = vmatprep.subr.bf16.mxu0 0
        %2114 = vmatpush2.bf16.msra.mxu0 %v2045
        %2115 = vmatprep.subr.bf16.mxu0 0
        %2116 = vmatpush2.bf16.msra.mxu0 %v2044
        %2117 = vmatprep.subr.bf16.mxu0 0
        %2118 = vmatpush2.bf16.msra.mxu0 %v2043
        %2119 = vmatprep.subr.bf16.mxu0 0
        %2120 = vmatpush2.bf16.msra.mxu0 %v2042
        %2121 = vmatprep.subr.bf16.mxu0 0
        %2122 = vmatpush2.bf16.msra.mxu0 %v2041
        %2123 = vmatprep.subr.bf16.mxu0 0
        %2124 = vmatpush2.bf16.msra.mxu0 %v2040
        %2125 = vmatprep.subr.bf16.mxu0 0
        %2126 = vmatpush2.bf16.msra.mxu0 %v2039
        %2127 = vmatprep.mubr.bf16.mxu0 %v1893
        %2128 = vmatmul.mubr.bf16.gmra.mxu0 %v1892
        %v2129 = vpop.f32.mrf.mxu0
        %v2130 = vadd.f32 %v1901, %v2129
        %v2131 = vpop.f32.mrf.mxu0
        %v2132 = vpop.f32.mrf.mxu0
        %v2133 = vpop.f32.mrf.mxu0
        %2134 = vdwg.mxu0
        %2135 = vmatprep.subr.bf16.mxu0 0
        %2136 = vmatpush1.bf16.msra.mxu0 %v2054
        %2137 = vmatprep.subr.bf16.mxu0 0
        %2138 = vmatpush1.bf16.msra.mxu0 %v2053
        %2139 = vmatprep.subr.bf16.mxu0 0
        %2140 = vmatpush1.bf16.msra.mxu0 %v2052
        %2141 = vmatprep.subr.bf16.mxu0 0
        %2142 = vmatpush1.bf16.msra.mxu0 %v2051
        %2143 = vmatprep.subr.bf16.mxu0 0
        %2144 = vmatpush1.bf16.msra.mxu0 %v2050
        %2145 = vmatprep.subr.bf16.mxu0 0
        %2146 = vmatpush1.bf16.msra.mxu0 %v2049
        %2147 = vmatprep.subr.bf16.mxu0 0
        %2148 = vmatpush1.bf16.msra.mxu0 %v2048
        %2149 = vmatprep.subr.bf16.mxu0 0
        %2150 = vmatpush1.bf16.msra.mxu0 %v2047
        %2151 = vmatprep.subr.bf16.mxu0 0
        %2152 = vmatpush2.bf16.msra.mxu0 %v2062
        %2153 = vmatprep.subr.bf16.mxu0 0
        %2154 = vmatpush2.bf16.msra.mxu0 %v2061
        %2155 = vmatprep.subr.bf16.mxu0 0
        %2156 = vmatpush2.bf16.msra.mxu0 %v2060
        %2157 = vmatprep.subr.bf16.mxu0 0
        %2158 = vmatpush2.bf16.msra.mxu0 %v2059
        %2159 = vmatprep.subr.bf16.mxu0 0
        %2160 = vmatpush2.bf16.msra.mxu0 %v2058
        %2161 = vmatprep.subr.bf16.mxu0 0
        %2162 = vmatpush2.bf16.msra.mxu0 %v2057
        %2163 = vmatprep.subr.bf16.mxu0 0
        %2164 = vmatpush2.bf16.msra.mxu0 %v2056
        %2165 = vmatprep.subr.bf16.mxu0 0
        %2166 = vmatpush2.bf16.msra.mxu0 %v2055
        %2167 = vmatprep.mubr.bf16.mxu0 %v1895
        %2168 = vmatmul.mubr.bf16.gmra.mxu0 %v1894
        %v2169 = vpop.f32.mrf.mxu0
        %v2170 = vadd.f32 %v2130, %v2169
        %v2171 = vpop.f32.mrf.mxu0
        %v2172 = vpop.f32.mrf.mxu0
        %v2173 = vpop.f32.mrf.mxu0
        %2174 = vdwg.mxu0
        %v2175 = vadd.f32 %v1526, %v2170
        %v2176 = vld [vmem:[#allocation19] sm:$0x1]
        %v2177 = vld [vmem:[#allocation21] sm:$0x1]
        %2178 = vadd.xlane.f32.xlu0 %v2175
        %v2179 = vpop.xlane.xlu0 %2178
        %v2180 = vmul.f32 %v2179, %v1503
        %v2181 = vsub.f32 %v2175, %v2180
        %v2182 = vmul.f32 %v2181, %v2181
        %2183 = vadd.xlane.f32.xlu0 %v2182
        %v2184 = vpop.xlane.xlu0 %2183
        %v2185 = vmul.f32 %v2184, %v1503
        %v2186 = vadd.f32 %v2185, 1e-06
        %v2187 = vrsqrt.pop %v2186
        %v2188 = vmul.f32 %v2181, %v2187
        %v2190 = vlaneseq
        %v2191 = vshrl.u32 %v2190, 7
        %v2192 = vsub.s32 0, %v2191
        %v2193 = vrot.slane %v2176, %v2192
        %v2195 = vmul.f32 %v2188, %v2193
        %v2197 = vlaneseq
        %v2198 = vshrl.u32 %v2197, 7
        %v2199 = vsub.s32 0, %v2198
        %v2200 = vrot.slane %v2177, %v2199
        %v2202 = vadd.f32 %v2195, %v2200
        %s2203 = scalar_lea.vmem [#allocation9], 192
        %v2204 = vld [vmem:[%s2203] sm:$0xff]
        %v2205 = vld [vmem:[%s2203 + $0x8] sm:$0xf]
        %v2206 = vld [vmem:[%s2203 + $0xc] sm:$0xff]
        %v2207 = vld [vmem:[%s2203 + $0x14] sm:$0xf]
        %v2208 = vld [vmem:[%s2203 + $0x18] sm:$0xff]
        %v2209 = vld [vmem:[%s2203 + $0x20] sm:$0xf]
        %v2210 = vld [vmem:[%s2203 + $0x24] sm:$0xff]
        %v2211 = vld [vmem:[%s2203 + $0x2c] sm:$0xf]
        %v2212 = vld [vmem:[%s2203 + $0x30] sm:$0xff]
        %v2213 = vld [vmem:[%s2203 + $0x38] sm:$0xf]
        %v2214 = vld [vmem:[%s2203 + $0x3c] sm:$0xff]
        %v2215 = vld [vmem:[%s2203 + $0x44] sm:$0xf]
        %v2216 = vld [vmem:[%s2203 + $0x48] sm:$0xff]
        %v2217 = vld [vmem:[%s2203 + $0x50] sm:$0xf]
        %v2218 = vld [vmem:[%s2203 + $0x54] sm:$0xff]
        %v2219 = vld [vmem:[%s2203 + $0x5c] sm:$0xf]
        %v2220 = vld [vmem:[%s2203 + $0x60] sm:$0xff]
        %v2221 = vld [vmem:[%s2203 + $0x68] sm:$0xf]
        %v2222 = vld [vmem:[%s2203 + $0x6c] sm:$0xff]
        %v2223 = vld [vmem:[%s2203 + $0x74] sm:$0xf]
        %v2224 = vld [vmem:[%s2203 + $0x78] sm:$0xff]
        %v2225 = vld [vmem:[%s2203 + $0x80] sm:$0xf]
        %v2226 = vld [vmem:[%s2203 + $0x84] sm:$0xff]
        %v2227 = vld [vmem:[%s2203 + $0x8c] sm:$0xf]
        %v2228 = vld [vmem:[%s2203 + $0x90] sm:$0xff]
        %v2229 = vld [vmem:[%s2203 + $0x98] sm:$0xf]
        %v2230 = vld [vmem:[%s2203 + $0x9c] sm:$0xff]
        %v2231 = vld [vmem:[%s2203 + $0xa4] sm:$0xf]
        %v2232 = vld [vmem:[%s2203 + $0xa8] sm:$0xff]
        %v2233 = vld [vmem:[%s2203 + $0xb0] sm:$0xf]
        %v2234 = vld [vmem:[%s2203 + $0xb4] sm:$0xff]
        %v2235 = vld [vmem:[%s2203 + $0xbc] sm:$0xf]
        %v2236 = vpack.c.bf16 %v2202, %v2202
        %s2237 = scalar_lea.vmem [#allocation10], 3
        %v2238 = vld [vmem:[%s2237] sm:$0x7]
        %v2240 = vlaneseq
        %v2241 = vshrl.u32 %v2240, 7
        %v2242 = vsub.s32 0, %v2241
        %v2243 = vrot.slane %v2238, %v2242
        %v2244 = vlaneseq
        %v2245 = vshrl.u32 %v2244, 7
        %v2246 = vsub.s32 1, %v2245
        %v2247 = vrot.slane %v2238, %v2246
        %v2248 = vlaneseq
        %v2249 = vshrl.u32 %v2248, 7
        %v2250 = vsub.s32 2, %v2249
        %v2251 = vrot.slane %v2238, %v2250
        %v2287 = vunpack.c.l.b16 %v2204
        %v2288 = vunpack.c.h.b16 %v2204
        %v2289 = vunpack.c.l.b16 %v2205
        %v2290 = vunpack.c.l.b16 %v2206
        %v2291 = vunpack.c.h.b16 %v2206
        %v2292 = vunpack.c.l.b16 %v2207
        %v2293 = vunpack.c.l.b16 %v2208
        %v2294 = vunpack.c.h.b16 %v2208
        %v2295 = vunpack.c.l.b16 %v2209
        %v2296 = vunpack.c.l.b16 %v2210
        %v2297 = vunpack.c.h.b16 %v2210
        %v2298 = vunpack.c.l.b16 %v2211
        %v2299 = vunpack.c.l.b16 %v2212
        %v2300 = vunpack.c.h.b16 %v2212
        %v2301 = vunpack.c.l.b16 %v2213
        %v2302 = vunpack.c.l.b16 %v2214
        %v2303 = vunpack.c.h.b16 %v2214
        %v2304 = vunpack.c.l.b16 %v2215
        %v2305 = vunpack.c.l.b16 %v2216
        %v2306 = vunpack.c.h.b16 %v2216
        %v2307 = vunpack.c.l.b16 %v2217
        %v2308 = vunpack.c.l.b16 %v2218
        %v2309 = vunpack.c.h.b16 %v2218
        %v2310 = vunpack.c.l.b16 %v2219
        %v2311 = vunpack.c.l.b16 %v2220
        %v2312 = vunpack.c.h.b16 %v2220
        %v2313 = vunpack.c.l.b16 %v2221
        %v2314 = vunpack.c.l.b16 %v2222
        %v2315 = vunpack.c.h.b16 %v2222
        %v2316 = vunpack.c.l.b16 %v2223
        %v2317 = vunpack.c.l.b16 %v2224
        %v2318 = vunpack.c.h.b16 %v2224
        %v2319 = vunpack.c.l.b16 %v2225
        %v2320 = vunpack.c.l.b16 %v2226
        %v2321 = vunpack.c.h.b16 %v2226
        %v2322 = vunpack.c.l.b16 %v2227
        %v2323 = vunpack.c.l.b16 %v2228
        %v2324 = vunpack.c.h.b16 %v2228
        %v2325 = vunpack.c.l.b16 %v2229
        %v2326 = vunpack.c.l.b16 %v2230
        %v2327 = vunpack.c.h.b16 %v2230
        %v2328 = vunpack.c.l.b16 %v2231
        %v2329 = vunpack.c.l.b16 %v2232
        %v2330 = vunpack.c.h.b16 %v2232
        %v2331 = vunpack.c.l.b16 %v2233
        %v2332 = vunpack.c.l.b16 %v2234
        %v2333 = vunpack.c.h.b16 %v2234
        %v2334 = vunpack.c.l.b16 %v2235
        %v2335 = vpack.c.b16 %v2290, %v2287
        %v2336 = vpack.c.b16 %v2291, %v2288
        %v2337 = vpack.c.b16 %v2292, %v2289
        %v2338 = vpack.c.b16 %v2296, %v2293
        %v2339 = vpack.c.b16 %v2297, %v2294
        %v2340 = vpack.c.b16 %v2298, %v2295
        %v2341 = vpack.c.b16 %v2302, %v2299
        %v2342 = vpack.c.b16 %v2303, %v2300
        %v2343 = vpack.c.b16 %v2304, %v2301
        %v2344 = vpack.c.b16 %v2308, %v2305
        %v2345 = vpack.c.b16 %v2309, %v2306
        %v2346 = vpack.c.b16 %v2310, %v2307
        %v2347 = vpack.c.b16 %v2314, %v2311
        %v2348 = vpack.c.b16 %v2315, %v2312
        %v2349 = vpack.c.b16 %v2316, %v2313
        %v2350 = vpack.c.b16 %v2320, %v2317
        %v2351 = vpack.c.b16 %v2321, %v2318
        %v2352 = vpack.c.b16 %v2322, %v2319
        %v2353 = vpack.c.b16 %v2326, %v2323
        %v2354 = vpack.c.b16 %v2327, %v2324
        %v2355 = vpack.c.b16 %v2328, %v2325
        %v2356 = vpack.c.b16 %v2332, %v2329
        %v2357 = vpack.c.b16 %v2333, %v2330
        %v2358 = vpack.c.b16 %v2334, %v2331
        %2383 = vmatprep.subr.bf16.mxu0 %v2357
        %2384 = vmatpush1.bf16.msra.mxu0 %v2356
        %2385 = vmatprep.subr.bf16.mxu0 %v2354
        %2386 = vmatpush1.bf16.msra.mxu0 %v2353
        %2387 = vmatprep.subr.bf16.mxu0 %v2351
        %2388 = vmatpush1.bf16.msra.mxu0 %v2350
        %2389 = vmatprep.subr.bf16.mxu0 %v2348
        %2390 = vmatpush1.bf16.msra.mxu0 %v2347
        %2391 = vmatprep.subr.bf16.mxu0 %v2345
        %2392 = vmatpush1.bf16.msra.mxu0 %v2344
        %2393 = vmatprep.subr.bf16.mxu0 %v2342
        %2394 = vmatpush1.bf16.msra.mxu0 %v2341
        %2395 = vmatprep.subr.bf16.mxu0 %v2339
        %2396 = vmatpush1.bf16.msra.mxu0 %v2338
        %2397 = vmatprep.subr.bf16.mxu0 %v2336
        %2398 = vmatpush1.bf16.msra.mxu0 %v2335
        %2399 = vmatprep.subr.bf16.mxu0 0
        %2400 = vmatpush2.bf16.msra.mxu0 0
        %2401 = vmatprep.subr.bf16.mxu0 0
        %2402 = vmatpush2.bf16.msra.mxu0 0
        %2403 = vmatprep.subr.bf16.mxu0 0
        %2404 = vmatpush2.bf16.msra.mxu0 0
        %2405 = vmatprep.subr.bf16.mxu0 0
        %2406 = vmatpush2.bf16.msra.mxu0 0
        %2407 = vmatprep.subr.bf16.mxu0 0
        %2408 = vmatpush2.bf16.msra.mxu0 0
        %2409 = vmatprep.subr.bf16.mxu0 0
        %2410 = vmatpush2.bf16.msra.mxu0 0
        %2411 = vmatprep.subr.bf16.mxu0 0
        %2412 = vmatpush2.bf16.msra.mxu0 0
        %2413 = vmatprep.subr.bf16.mxu0 0
        %2414 = vmatpush2.bf16.msra.mxu0 0
        %2415 = vmatprep.mubr.bf16.mxu0 0
        %2416 = vmatmul.mubr.bf16.gmra.mxu0 %v2236
        %v2417 = vpop.f32.mrf.mxu0
        %v2418 = vadd.f32 %v2243, %v2417
        %v2419 = vpop.f32.mrf.mxu0
        %v2420 = vadd.f32 %v2247, %v2419
        %v2421 = vpop.f32.mrf.mxu0
        %v2422 = vpop.f32.mrf.mxu0
        %2423 = vdwg.mxu0
        %2424 = vmatprep.subr.bf16.mxu0 0
        %2425 = vmatpush1.bf16.msra.mxu0 %v2358
        %2426 = vmatprep.subr.bf16.mxu0 0
        %2427 = vmatpush1.bf16.msra.mxu0 %v2355
        %2428 = vmatprep.subr.bf16.mxu0 0
        %2429 = vmatpush1.bf16.msra.mxu0 %v2352
        %2430 = vmatprep.subr.bf16.mxu0 0
        %2431 = vmatpush1.bf16.msra.mxu0 %v2349
        %2432 = vmatprep.subr.bf16.mxu0 0
        %2433 = vmatpush1.bf16.msra.mxu0 %v2346
        %2434 = vmatprep.subr.bf16.mxu0 0
        %2435 = vmatpush1.bf16.msra.mxu0 %v2343
        %2436 = vmatprep.subr.bf16.mxu0 0
        %2437 = vmatpush1.bf16.msra.mxu0 %v2340
        %2438 = vmatprep.subr.bf16.mxu0 0
        %2439 = vmatpush1.bf16.msra.mxu0 %v2337
        %2440 = vmatprep.subr.bf16.mxu0 0
        %2441 = vmatpush2.bf16.msra.mxu0 0
        %2442 = vmatprep.subr.bf16.mxu0 0
        %2443 = vmatpush2.bf16.msra.mxu0 0
        %2444 = vmatprep.subr.bf16.mxu0 0
        %2445 = vmatpush2.bf16.msra.mxu0 0
        %2446 = vmatprep.subr.bf16.mxu0 0
        %2447 = vmatpush2.bf16.msra.mxu0 0
        %2448 = vmatprep.subr.bf16.mxu0 0
        %2449 = vmatpush2.bf16.msra.mxu0 0
        %2450 = vmatprep.subr.bf16.mxu0 0
        %2451 = vmatpush2.bf16.msra.mxu0 0
        %2452 = vmatprep.subr.bf16.mxu0 0
        %2453 = vmatpush2.bf16.msra.mxu0 0
        %2454 = vmatprep.subr.bf16.mxu0 0
        %2455 = vmatpush2.bf16.msra.mxu0 0
        %2456 = vmatprep.mubr.bf16.mxu0 0
        %2457 = vmatmul.mubr.bf16.gmra.mxu0 %v2236
        %v2458 = vpop.f32.mrf.mxu0
        %v2459 = vadd.f32 %v2251, %v2458
        %v2460 = vpop.f32.mrf.mxu0
        %v2461 = vpop.f32.mrf.mxu0
        %v2462 = vpop.f32.mrf.mxu0
        %2463 = vdwg.mxu0
        %v2464 = vmul.f32 %v2418, 0.125
        %s2465 = scalar_lea.vmem %s7, 64
        %v2466 = vld [vmem:[%s2465] sm:$0xf]
        %v2467 = vld [vmem:[%s2465 + $0x4] sm:$0xf]
        %v2468 = vld [vmem:[%s2465 + $0x8] sm:$0xf]
        %v2469 = vld [vmem:[%s2465 + $0xc] sm:$0xf]
        %v2470 = vld [vmem:[%s2465 + $0x10] sm:$0xf]
        %v2471 = vld [vmem:[%s2465 + $0x14] sm:$0xf]
        %v2472 = vld [vmem:[%s2465 + $0x18] sm:$0xf]
        %v2473 = vld [vmem:[%s2465 + $0x1c] sm:$0xf]
        %v2474 = vld [vmem:[%s2465 + $0x20] sm:$0xf]
        %v2475 = vld [vmem:[%s2465 + $0x24] sm:$0xf]
        %v2476 = vld [vmem:[%s2465 + $0x28] sm:$0xf]
        %v2477 = vld [vmem:[%s2465 + $0x2c] sm:$0xf]
        %v2478 = vld [vmem:[%s2465 + $0x30] sm:$0xf]
        %v2479 = vld [vmem:[%s2465 + $0x34] sm:$0xf]
        %v2480 = vld [vmem:[%s2465 + $0x38] sm:$0xf]
        %v2481 = vld [vmem:[%s2465 + $0x3c] sm:$0xf]
        %v2482 = vpack.c.bf16 %v2464, %v2464
        %v2483 = vpack.c.bf16 %v2420, %v2420
        %v2485 = vsel %vm1133, %v2482, 0
        %v2488 = vsel %vm1133, %v2483, 0
        %2490 = vmatprep.subr.bf16.mxu0 0
        %2491 = vmatpush1.bf16.xpose.msra.mxu0 0
        %2492 = vmatprep.subr.bf16.mxu0 0
        %2493 = vmatpush1.bf16.xpose.msra.mxu0 0
        %2494 = vmatprep.subr.bf16.mxu0 0
        %2495 = vmatpush1.bf16.xpose.msra.mxu0 0
        %2496 = vmatprep.subr.bf16.mxu0 0
        %2497 = vmatpush1.bf16.xpose.msra.mxu0 0
        %2498 = vmatprep.subr.bf16.mxu0 0
        %2499 = vmatpush1.bf16.xpose.msra.mxu0 0
        %2500 = vmatprep.subr.bf16.mxu0 0
        %2501 = vmatpush1.bf16.xpose.msra.mxu0 0
        %2502 = vmatprep.subr.bf16.mxu0 0
        %2503 = vmatpush1.bf16.xpose.msra.mxu0 0
        %2504 = vmatprep.subr.bf16.mxu0 0
        %2505 = vmatpush1.bf16.xpose.msra.mxu0 %v2488
        %2506 = vmatprep.subr.bf16.mxu0 0
        %2507 = vmatpush2.bf16.xpose.msra.mxu0 0
        %2508 = vmatprep.subr.bf16.mxu0 0
        %2509 = vmatpush2.bf16.xpose.msra.mxu0 0
        %2510 = vmatprep.subr.bf16.mxu0 0
        %2511 = vmatpush2.bf16.xpose.msra.mxu0 0
        %2512 = vmatprep.subr.bf16.mxu0 0
        %2513 = vmatpush2.bf16.xpose.msra.mxu0 0
        %2514 = vmatprep.subr.bf16.mxu0 0
        %2515 = vmatpush2.bf16.xpose.msra.mxu0 0
        %2516 = vmatprep.subr.bf16.mxu0 0
        %2517 = vmatpush2.bf16.xpose.msra.mxu0 0
        %2518 = vmatprep.subr.bf16.mxu0 0
        %2519 = vmatpush2.bf16.xpose.msra.mxu0 0
        %2520 = vmatprep.subr.bf16.mxu0 0
        %2521 = vmatpush2.bf16.xpose.msra.mxu0 0
        %2522 = vmatprep.mubr.bf16.mxu0 0
        %2523 = vmatmul.mubr.bf16.gmra.mxu0 %v2485
        %v2524 = vpop.f32.mrf.mxu0
        %v2525 = vadd.f32 %v789, %v2524
        %v2526 = vpop.f32.mrf.mxu0
        %v2527 = vpop.f32.mrf.mxu0
        %v2528 = vpop.f32.mrf.mxu0
        %2529 = vdwg.mxu0
        %v2530 = vsel %vm1180, %v2525, -inf
        %2531 = vmax.xlane.f32.xlu0 %v2530
        %v2532 = vpop.xlane.xlu0 %2531
        %v2533 = vsub.f32 %v2525, %v2532
        %v2534 = vmul.f32 %v2533, 1.442695
        %v2535 = vpow.pop %v2534
        %v2536 = vsel %vm1180, %v2535, 0.0
        %2537 = vadd.xlane.f32.xlu0 %v2536
        %v2538 = vpop.xlane.xlu0 %2537
        %v2539 = vrcp.pop %v2538
        %v2540 = vmul.f32 %v2535, %v2539
        %v2541 = vpack.c.bf16 %v2459, %v2459
        %v2542 = vpack.c.bf16 %v2540, %v2540
        %v2544 = vsel %vm1180, %v2542, 0
        %v2547 = vsel %vm1197, %v2541, 0
        %2549 = vmatprep.subr.bf16.mxu0 0
        %2550 = vmatpush1.bf16.msra.mxu0 0
        %2551 = vmatprep.subr.bf16.mxu0 0
        %2552 = vmatpush1.bf16.msra.mxu0 0
        %2553 = vmatprep.subr.bf16.mxu0 0
        %2554 = vmatpush1.bf16.msra.mxu0 0
        %2555 = vmatprep.subr.bf16.mxu0 0
        %2556 = vmatpush1.bf16.msra.mxu0 0
        %2557 = vmatprep.subr.bf16.mxu0 0
        %2558 = vmatpush1.bf16.msra.mxu0 0
        %2559 = vmatprep.subr.bf16.mxu0 0
        %2560 = vmatpush1.bf16.msra.mxu0 0
        %2561 = vmatprep.subr.bf16.mxu0 0
        %2562 = vmatpush1.bf16.msra.mxu0 0
        %2563 = vmatprep.subr.bf16.mxu0 0
        %2564 = vmatpush1.bf16.msra.mxu0 %v2547
        %2565 = vmatprep.subr.bf16.mxu0 0
        %2566 = vmatpush2.bf16.msra.mxu0 0
        %2567 = vmatprep.subr.bf16.mxu0 0
        %2568 = vmatpush2.bf16.msra.mxu0 0
        %2569 = vmatprep.subr.bf16.mxu0 0
        %2570 = vmatpush2.bf16.msra.mxu0 0
        %2571 = vmatprep.subr.bf16.mxu0 0
        %2572 = vmatpush2.bf16.msra.mxu0 0
        %2573 = vmatprep.subr.bf16.mxu0 0
        %2574 = vmatpush2.bf16.msra.mxu0 0
        %2575 = vmatprep.subr.bf16.mxu0 0
        %2576 = vmatpush2.bf16.msra.mxu0 0
        %2577 = vmatprep.subr.bf16.mxu0 0
        %2578 = vmatpush2.bf16.msra.mxu0 0
        %2579 = vmatprep.subr.bf16.mxu0 0
        %2580 = vmatpush2.bf16.msra.mxu0 0
        %2581 = vmatprep.mubr.bf16.mxu0 0
        %2582 = vmatmul.mubr.bf16.gmra.mxu0 %v2544
        %v2583 = vpop.f32.mrf.mxu0
        %v2584 = vadd.f32 0.0, %v2583
        %v2585 = vpop.f32.mrf.mxu0
        %v2586 = vpop.f32.mrf.mxu0
        %v2587 = vpop.f32.mrf.mxu0
        %2588 = vdwg.mxu0
        %v2589 = vpack.c.bf16 %v2584, %v2584
        %2591 = vrot.lane.b32.xlu0 %v2482, 64
        %v2592 = vpop.permute.xlu0 %2591
        %2594 = vrot.lane.b32.xlu0 %v2483, 64
        %v2595 = vpop.permute.xlu0 %2594
        %v2597 = vsel %vm1133, %v2592, 0
        %v2600 = vsel %vm1133, %v2595, 0
        %2602 = vmatprep.subr.bf16.mxu0 0
        %2603 = vmatpush1.bf16.xpose.msra.mxu0 0
        %2604 = vmatprep.subr.bf16.mxu0 0
        %2605 = vmatpush1.bf16.xpose.msra.mxu0 0
        %2606 = vmatprep.subr.bf16.mxu0 0
        %2607 = vmatpush1.bf16.xpose.msra.mxu0 0
        %2608 = vmatprep.subr.bf16.mxu0 0
        %2609 = vmatpush1.bf16.xpose.msra.mxu0 0
        %2610 = vmatprep.subr.bf16.mxu0 0
        %2611 = vmatpush1.bf16.xpose.msra.mxu0 0
        %2612 = vmatprep.subr.bf16.mxu0 0
        %2613 = vmatpush1.bf16.xpose.msra.mxu0 0
        %2614 = vmatprep.subr.bf16.mxu0 0
        %2615 = vmatpush1.bf16.xpose.msra.mxu0 0
        %2616 = vmatprep.subr.bf16.mxu0 0
        %2617 = vmatpush1.bf16.xpose.msra.mxu0 %v2600
        %2618 = vmatprep.subr.bf16.mxu0 0
        %2619 = vmatpush2.bf16.xpose.msra.mxu0 0
        %2620 = vmatprep.subr.bf16.mxu0 0
        %2621 = vmatpush2.bf16.xpose.msra.mxu0 0
        %2622 = vmatprep.subr.bf16.mxu0 0
        %2623 = vmatpush2.bf16.xpose.msra.mxu0 0
        %2624 = vmatprep.subr.bf16.mxu0 0
        %2625 = vmatpush2.bf16.xpose.msra.mxu0 0
        %2626 = vmatprep.subr.bf16.mxu0 0
        %2627 = vmatpush2.bf16.xpose.msra.mxu0 0
        %2628 = vmatprep.subr.bf16.mxu0 0
        %2629 = vmatpush2.bf16.xpose.msra.mxu0 0
        %2630 = vmatprep.subr.bf16.mxu0 0
        %2631 = vmatpush2.bf16.xpose.msra.mxu0 0
        %2632 = vmatprep.subr.bf16.mxu0 0
        %2633 = vmatpush2.bf16.xpose.msra.mxu0 0
        %2634 = vmatprep.mubr.bf16.mxu0 0
        %2635 = vmatmul.mubr.bf16.gmra.mxu0 %v2597
        %v2636 = vpop.f32.mrf.mxu0
        %v2637 = vadd.f32 %v789, %v2636
        %v2638 = vpop.f32.mrf.mxu0
        %v2639 = vpop.f32.mrf.mxu0
        %v2640 = vpop.f32.mrf.mxu0
        %2641 = vdwg.mxu0
        %v2642 = vsel %vm1180, %v2637, -inf
        %2643 = vmax.xlane.f32.xlu0 %v2642
        %v2644 = vpop.xlane.xlu0 %2643
        %v2645 = vsub.f32 %v2637, %v2644
        %v2646 = vmul.f32 %v2645, 1.442695
        %v2647 = vpow.pop %v2646
        %v2648 = vsel %vm1180, %v2647, 0.0
        %2649 = vadd.xlane.f32.xlu0 %v2648
        %v2650 = vpop.xlane.xlu0 %2649
        %v2651 = vrcp.pop %v2650
        %v2652 = vmul.f32 %v2647, %v2651
        %v2653 = vpack.c.bf16 %v2652, %v2652
        %2655 = vrot.lane.b32.xlu0 %v2541, 64
        %v2656 = vpop.permute.xlu0 %2655
        %v2658 = vsel %vm1180, %v2653, 0
        %v2661 = vsel %vm1197, %v2656, 0
        %2663 = vmatprep.subr.bf16.mxu0 0
        %2664 = vmatpush1.bf16.msra.mxu0 0
        %2665 = vmatprep.subr.bf16.mxu0 0
        %2666 = vmatpush1.bf16.msra.mxu0 0
        %2667 = vmatprep.subr.bf16.mxu0 0
        %2668 = vmatpush1.bf16.msra.mxu0 0
        %2669 = vmatprep.subr.bf16.mxu0 0
        %2670 = vmatpush1.bf16.msra.mxu0 0
        %2671 = vmatprep.subr.bf16.mxu0 0
        %2672 = vmatpush1.bf16.msra.mxu0 0
        %2673 = vmatprep.subr.bf16.mxu0 0
        %2674 = vmatpush1.bf16.msra.mxu0 0
        %2675 = vmatprep.subr.bf16.mxu0 0
        %2676 = vmatpush1.bf16.msra.mxu0 0
        %2677 = vmatprep.subr.bf16.mxu0 0
        %2678 = vmatpush1.bf16.msra.mxu0 %v2661
        %2679 = vmatprep.subr.bf16.mxu0 0
        %2680 = vmatpush2.bf16.msra.mxu0 0
        %2681 = vmatprep.subr.bf16.mxu0 0
        %2682 = vmatpush2.bf16.msra.mxu0 0
        %2683 = vmatprep.subr.bf16.mxu0 0
        %2684 = vmatpush2.bf16.msra.mxu0 0
        %2685 = vmatprep.subr.bf16.mxu0 0
        %2686 = vmatpush2.bf16.msra.mxu0 0
        %2687 = vmatprep.subr.bf16.mxu0 0
        %2688 = vmatpush2.bf16.msra.mxu0 0
        %2689 = vmatprep.subr.bf16.mxu0 0
        %2690 = vmatpush2.bf16.msra.mxu0 0
        %2691 = vmatprep.subr.bf16.mxu0 0
        %2692 = vmatpush2.bf16.msra.mxu0 0
        %2693 = vmatprep.subr.bf16.mxu0 0
        %2694 = vmatpush2.bf16.msra.mxu0 0
        %2695 = vmatprep.mubr.bf16.mxu0 0
        %2696 = vmatmul.mubr.bf16.gmra.mxu0 %v2658
        %v2697 = vpop.f32.mrf.mxu0
        %v2698 = vadd.f32 0.0, %v2697
        %v2699 = vpop.f32.mrf.mxu0
        %v2700 = vpop.f32.mrf.mxu0
        %v2701 = vpop.f32.mrf.mxu0
        %2702 = vdwg.mxu0
        %v2703 = vpack.c.bf16 %v2698, %v2698
        %v2712 = vunpack.c.l.b16 %v2474
        %v2713 = vunpack.c.l.b16 %v2475
        %v2714 = vunpack.c.l.b16 %v2476
        %v2715 = vunpack.c.l.b16 %v2477
        %v2716 = vunpack.c.l.b16 %v2478
        %v2717 = vunpack.c.l.b16 %v2479
        %v2718 = vunpack.c.l.b16 %v2480
        %v2719 = vunpack.c.l.b16 %v2481
        %v2720 = vpack.c.b16 %v2713, %v2712
        %v2721 = vpack.c.b16 %v2715, %v2714
        %v2722 = vpack.c.b16 %v2717, %v2716
        %v2723 = vpack.c.b16 %v2719, %v2718
        %v2729 = vsel %vm1133, %v2703, 0
        %2731 = vmatprep.subr.bf16.mxu0 0
        %2732 = vmatpush1.bf16.msra.mxu0 0
        %2733 = vmatprep.subr.bf16.mxu0 0
        %2734 = vmatpush1.bf16.msra.mxu0 0
        %2735 = vmatprep.subr.bf16.mxu0 0
        %2736 = vmatpush1.bf16.msra.mxu0 0
        %2737 = vmatprep.subr.bf16.mxu0 0
        %2738 = vmatpush1.bf16.msra.mxu0 0
        %2739 = vmatprep.subr.bf16.mxu0 0
        %2740 = vmatpush1.bf16.msra.mxu0 %v2723
        %2741 = vmatprep.subr.bf16.mxu0 0
        %2742 = vmatpush1.bf16.msra.mxu0 %v2722
        %2743 = vmatprep.subr.bf16.mxu0 0
        %2744 = vmatpush1.bf16.msra.mxu0 %v2721
        %2745 = vmatprep.subr.bf16.mxu0 0
        %2746 = vmatpush1.bf16.msra.mxu0 %v2720
        %2747 = vmatprep.subr.bf16.mxu0 0
        %2748 = vmatpush2.bf16.msra.mxu0 0
        %2749 = vmatprep.subr.bf16.mxu0 0
        %2750 = vmatpush2.bf16.msra.mxu0 0
        %2751 = vmatprep.subr.bf16.mxu0 0
        %2752 = vmatpush2.bf16.msra.mxu0 0
        %2753 = vmatprep.subr.bf16.mxu0 0
        %2754 = vmatpush2.bf16.msra.mxu0 0
        %2755 = vmatprep.subr.bf16.mxu0 0
        %2756 = vmatpush2.bf16.msra.mxu0 0
        %2757 = vmatprep.subr.bf16.mxu0 0
        %2758 = vmatpush2.bf16.msra.mxu0 0
        %2759 = vmatprep.subr.bf16.mxu0 0
        %2760 = vmatpush2.bf16.msra.mxu0 0
        %2761 = vmatprep.subr.bf16.mxu0 0
        %2762 = vmatpush2.bf16.msra.mxu0 0
        %2763 = vmatprep.mubr.bf16.mxu0 0
        %2764 = vmatmul.mubr.bf16.gmra.mxu0 %v2729
        %v2765 = vpop.f32.mrf.mxu0
        %v2766 = vadd.f32 0.0, %v2765
        %v2767 = vpop.f32.mrf.mxu0
        %v2768 = vpop.f32.mrf.mxu0
        %v2769 = vpop.f32.mrf.mxu0
        %2770 = vdwg.mxu0
        %v2779 = vunpack.c.l.b16 %v2466
        %v2780 = vunpack.c.l.b16 %v2467
        %v2781 = vunpack.c.l.b16 %v2468
        %v2782 = vunpack.c.l.b16 %v2469
        %v2783 = vunpack.c.l.b16 %v2470
        %v2784 = vunpack.c.l.b16 %v2471
        %v2785 = vunpack.c.l.b16 %v2472
        %v2786 = vunpack.c.l.b16 %v2473
        %v2787 = vpack.c.b16 %v2780, %v2779
        %v2788 = vpack.c.b16 %v2782, %v2781
        %v2789 = vpack.c.b16 %v2784, %v2783
        %v2790 = vpack.c.b16 %v2786, %v2785
        %v2796 = vsel %vm1133, %v2589, 0
        %2798 = vmatprep.subr.bf16.mxu0 0
        %2799 = vmatpush1.bf16.msra.mxu0 0
        %2800 = vmatprep.subr.bf16.mxu0 0
        %2801 = vmatpush1.bf16.msra.mxu0 0
        %2802 = vmatprep.subr.bf16.mxu0 0
        %2803 = vmatpush1.bf16.msra.mxu0 0
        %2804 = vmatprep.subr.bf16.mxu0 0
        %2805 = vmatpush1.bf16.msra.mxu0 0
        %2806 = vmatprep.subr.bf16.mxu0 0
        %2807 = vmatpush1.bf16.msra.mxu0 %v2790
        %2808 = vmatprep.subr.bf16.mxu0 0
        %2809 = vmatpush1.bf16.msra.mxu0 %v2789
        %2810 = vmatprep.subr.bf16.mxu0 0
        %2811 = vmatpush1.bf16.msra.mxu0 %v2788
        %2812 = vmatprep.subr.bf16.mxu0 0
        %2813 = vmatpush1.bf16.msra.mxu0 %v2787
        %2814 = vmatprep.subr.bf16.mxu0 0
        %2815 = vmatpush2.bf16.msra.mxu0 0
        %2816 = vmatprep.subr.bf16.mxu0 0
        %2817 = vmatpush2.bf16.msra.mxu0 0
        %2818 = vmatprep.subr.bf16.mxu0 0
        %2819 = vmatpush2.bf16.msra.mxu0 0
        %2820 = vmatprep.subr.bf16.mxu0 0
        %2821 = vmatpush2.bf16.msra.mxu0 0
        %2822 = vmatprep.subr.bf16.mxu0 0
        %2823 = vmatpush2.bf16.msra.mxu0 0
        %2824 = vmatprep.subr.bf16.mxu0 0
        %2825 = vmatpush2.bf16.msra.mxu0 0
        %2826 = vmatprep.subr.bf16.mxu0 0
        %2827 = vmatpush2.bf16.msra.mxu0 0
        %2828 = vmatprep.subr.bf16.mxu0 0
        %2829 = vmatpush2.bf16.msra.mxu0 0
        %2830 = vmatprep.mubr.bf16.mxu0 0
        %2831 = vmatmul.mubr.bf16.gmra.mxu0 %v2796
        %v2832 = vpop.f32.mrf.mxu0
        %v2833 = vadd.f32 %v2766, %v2832
        %v2834 = vpop.f32.mrf.mxu0
        %v2835 = vpop.f32.mrf.mxu0
        %v2836 = vpop.f32.mrf.mxu0
        %2837 = vdwg.mxu0
        %s2838 = scalar_lea.vmem %s8, 1
        %v2839 = vld [vmem:[%s2838] sm:$0x1]
        %v2841 = vlaneseq
        %v2842 = vshrl.u32 %v2841, 7
        %v2843 = vsub.s32 0, %v2842
        %v2844 = vrot.slane %v2839, %v2843
        %v2846 = vadd.f32 %v2833, %v2844
        %v2847 = vadd.f32 %v2202, %v2846
        %s2848 = scalar_lea.vmem [#allocation16], 1
        %v2849 = vld [vmem:[%s2848] sm:$0x1]
        %s2850 = scalar_lea.vmem [#allocation18], 1
        %v2851 = vld [vmem:[%s2850] sm:$0x1]
        %2852 = vadd.xlane.f32.xlu0 %v2847
        %v2853 = vpop.xlane.xlu0 %2852
        %v2854 = vmul.f32 %v2853, %v1503
        %v2855 = vsub.f32 %v2847, %v2854
        %v2856 = vmul.f32 %v2855, %v2855
        %2857 = vadd.xlane.f32.xlu0 %v2856
        %v2858 = vpop.xlane.xlu0 %2857
        %v2859 = vmul.f32 %v2858, %v1503
        %v2860 = vadd.f32 %v2859, 1e-06
        %v2861 = vrsqrt.pop %v2860
        %v2862 = vmul.f32 %v2855, %v2861
        %v2864 = vlaneseq
        %v2865 = vshrl.u32 %v2864, 7
        %v2866 = vsub.s32 0, %v2865
        %v2867 = vrot.slane %v2849, %v2866
        %v2869 = vmul.f32 %v2862, %v2867
        %v2871 = vlaneseq
        %v2872 = vshrl.u32 %v2871, 7
        %v2873 = vsub.s32 0, %v2872
        %v2874 = vrot.slane %v2851, %v2873
        %v2876 = vadd.f32 %v2869, %v2874
        %s2877 = scalar_lea.vmem [#allocation12], 256
        %v2878 = vld [vmem:[%s2877] sm:$0xff]
        %v2879 = vld [vmem:[%s2877 + $0x8] sm:$0xff]
        %v2880 = vld [vmem:[%s2877 + $0x10] sm:$0xff]
        %v2881 = vld [vmem:[%s2877 + $0x18] sm:$0xff]
        %v2882 = vld [vmem:[%s2877 + $0x20] sm:$0xff]
        %v2883 = vld [vmem:[%s2877 + $0x28] sm:$0xff]
        %v2884 = vld [vmem:[%s2877 + $0x30] sm:$0xff]
        %v2885 = vld [vmem:[%s2877 + $0x38] sm:$0xff]
        %v2886 = vld [vmem:[%s2877 + $0x40] sm:$0xff]
        %v2887 = vld [vmem:[%s2877 + $0x48] sm:$0xff]
        %v2888 = vld [vmem:[%s2877 + $0x50] sm:$0xff]
        %v2889 = vld [vmem:[%s2877 + $0x58] sm:$0xff]
        %v2890 = vld [vmem:[%s2877 + $0x60] sm:$0xff]
        %v2891 = vld [vmem:[%s2877 + $0x68] sm:$0xff]
        %v2892 = vld [vmem:[%s2877 + $0x70] sm:$0xff]
        %v2893 = vld [vmem:[%s2877 + $0x78] sm:$0xff]
        %v2894 = vld [vmem:[%s2877 + $0x80] sm:$0xff]
        %v2895 = vld [vmem:[%s2877 + $0x88] sm:$0xff]
        %v2896 = vld [vmem:[%s2877 + $0x90] sm:$0xff]
        %v2897 = vld [vmem:[%s2877 + $0x98] sm:$0xff]
        %v2898 = vld [vmem:[%s2877 + $0xa0] sm:$0xff]
        %v2899 = vld [vmem:[%s2877 + $0xa8] sm:$0xff]
        %v2900 = vld [vmem:[%s2877 + $0xb0] sm:$0xff]
        %v2901 = vld [vmem:[%s2877 + $0xb8] sm:$0xff]
        %v2902 = vld [vmem:[%s2877 + $0xc0] sm:$0xff]
        %v2903 = vld [vmem:[%s2877 + $0xc8] sm:$0xff]
        %v2904 = vld [vmem:[%s2877 + $0xd0] sm:$0xff]
        %v2905 = vld [vmem:[%s2877 + $0xd8] sm:$0xff]
        %v2906 = vld [vmem:[%s2877 + $0xe0] sm:$0xff]
        %v2907 = vld [vmem:[%s2877 + $0xe8] sm:$0xff]
        %v2908 = vld [vmem:[%s2877 + $0xf0] sm:$0xff]
        %v2909 = vld [vmem:[%s2877 + $0xf8] sm:$0xff]
        %v2910 = vpack.c.bf16 %v2876, %v2876
        %s2911 = scalar_lea.vmem %s10, 4
        %v2912 = vld [vmem:[%s2911] sm:$0xf]
        %v2914 = vlaneseq
        %v2915 = vshrl.u32 %v2914, 7
        %v2916 = vsub.s32 0, %v2915
        %v2917 = vrot.slane %v2912, %v2916
        %v2918 = vlaneseq
        %v2919 = vshrl.u32 %v2918, 7
        %v2920 = vsub.s32 1, %v2919
        %v2921 = vrot.slane %v2912, %v2920
        %v2922 = vlaneseq
        %v2923 = vshrl.u32 %v2922, 7
        %v2924 = vsub.s32 2, %v2923
        %v2925 = vrot.slane %v2912, %v2924
        %v2926 = vlaneseq
        %v2927 = vshrl.u32 %v2926, 7
        %v2928 = vsub.s32 3, %v2927
        %v2929 = vrot.slane %v2912, %v2928
        %v2966 = vunpack.c.l.b16 %v2878
        %v2967 = vunpack.c.h.b16 %v2878
        %v2968 = vunpack.c.l.b16 %v2879
        %v2969 = vunpack.c.h.b16 %v2879
        %v2970 = vunpack.c.l.b16 %v2880
        %v2971 = vunpack.c.h.b16 %v2880
        %v2972 = vunpack.c.l.b16 %v2881
        %v2973 = vunpack.c.h.b16 %v2881
        %v2974 = vunpack.c.l.b16 %v2882
        %v2975 = vunpack.c.h.b16 %v2882
        %v2976 = vunpack.c.l.b16 %v2883
        %v2977 = vunpack.c.h.b16 %v2883
        %v2978 = vunpack.c.l.b16 %v2884
        %v2979 = vunpack.c.h.b16 %v2884
        %v2980 = vunpack.c.l.b16 %v2885
        %v2981 = vunpack.c.h.b16 %v2885
        %v2982 = vunpack.c.l.b16 %v2886
        %v2983 = vunpack.c.h.b16 %v2886
        %v2984 = vunpack.c.l.b16 %v2887
        %v2985 = vunpack.c.h.b16 %v2887
        %v2986 = vunpack.c.l.b16 %v2888
        %v2987 = vunpack.c.h.b16 %v2888
        %v2988 = vunpack.c.l.b16 %v2889
        %v2989 = vunpack.c.h.b16 %v2889
        %v2990 = vunpack.c.l.b16 %v2890
        %v2991 = vunpack.c.h.b16 %v2890
        %v2992 = vunpack.c.l.b16 %v2891
        %v2993 = vunpack.c.h.b16 %v2891
        %v2994 = vunpack.c.l.b16 %v2892
        %v2995 = vunpack.c.h.b16 %v2892
        %v2996 = vunpack.c.l.b16 %v2893
        %v2997 = vunpack.c.h.b16 %v2893
        %v2998 = vunpack.c.l.b16 %v2894
        %v2999 = vunpack.c.h.b16 %v2894
        %v3000 = vunpack.c.l.b16 %v2895
        %v3001 = vunpack.c.h.b16 %v2895
        %v3002 = vunpack.c.l.b16 %v2896
        %v3003 = vunpack.c.h.b16 %v2896
        %v3004 = vunpack.c.l.b16 %v2897
        %v3005 = vunpack.c.h.b16 %v2897
        %v3006 = vunpack.c.l.b16 %v2898
        %v3007 = vunpack.c.h.b16 %v2898
        %v3008 = vunpack.c.l.b16 %v2899
        %v3009 = vunpack.c.h.b16 %v2899
        %v3010 = vunpack.c.l.b16 %v2900
        %v3011 = vunpack.c.h.b16 %v2900
        %v3012 = vunpack.c.l.b16 %v2901
        %v3013 = vunpack.c.h.b16 %v2901
        %v3014 = vunpack.c.l.b16 %v2902
        %v3015 = vunpack.c.h.b16 %v2902
        %v3016 = vunpack.c.l.b16 %v2903
        %v3017 = vunpack.c.h.b16 %v2903
        %v3018 = vunpack.c.l.b16 %v2904
        %v3019 = vunpack.c.h.b16 %v2904
        %v3020 = vunpack.c.l.b16 %v2905
        %v3021 = vunpack.c.h.b16 %v2905
        %v3022 = vunpack.c.l.b16 %v2906
        %v3023 = vunpack.c.h.b16 %v2906
        %v3024 = vunpack.c.l.b16 %v2907
        %v3025 = vunpack.c.h.b16 %v2907
        %v3026 = vunpack.c.l.b16 %v2908
        %v3027 = vunpack.c.h.b16 %v2908
        %v3028 = vunpack.c.l.b16 %v2909
        %v3029 = vunpack.c.h.b16 %v2909
        %v3030 = vpack.c.b16 %v2970, %v2966
        %v3031 = vpack.c.b16 %v2971, %v2967
        %v3032 = vpack.c.b16 %v2972, %v2968
        %v3033 = vpack.c.b16 %v2973, %v2969
        %v3034 = vpack.c.b16 %v2978, %v2974
        %v3035 = vpack.c.b16 %v2979, %v2975
        %v3036 = vpack.c.b16 %v2980, %v2976
        %v3037 = vpack.c.b16 %v2981, %v2977
        %v3038 = vpack.c.b16 %v2986, %v2982
        %v3039 = vpack.c.b16 %v2987, %v2983
        %v3040 = vpack.c.b16 %v2988, %v2984
        %v3041 = vpack.c.b16 %v2989, %v2985
        %v3042 = vpack.c.b16 %v2994, %v2990
        %v3043 = vpack.c.b16 %v2995, %v2991
        %v3044 = vpack.c.b16 %v2996, %v2992
        %v3045 = vpack.c.b16 %v2997, %v2993
        %v3046 = vpack.c.b16 %v3002, %v2998
        %v3047 = vpack.c.b16 %v3003, %v2999
        %v3048 = vpack.c.b16 %v3004, %v3000
        %v3049 = vpack.c.b16 %v3005, %v3001
        %v3050 = vpack.c.b16 %v3010, %v3006
        %v3051 = vpack.c.b16 %v3011, %v3007
        %v3052 = vpack.c.b16 %v3012, %v3008
        %v3053 = vpack.c.b16 %v3013, %v3009
        %v3054 = vpack.c.b16 %v3018, %v3014
        %v3055 = vpack.c.b16 %v3019, %v3015
        %v3056 = vpack.c.b16 %v3020, %v3016
        %v3057 = vpack.c.b16 %v3021, %v3017
        %v3058 = vpack.c.b16 %v3026, %v3022
        %v3059 = vpack.c.b16 %v3027, %v3023
        %v3060 = vpack.c.b16 %v3028, %v3024
        %v3061 = vpack.c.b16 %v3029, %v3025
        %3094 = vmatprep.subr.bf16.mxu0 %v3059
        %3095 = vmatpush1.bf16.msra.mxu0 %v3058
        %3096 = vmatprep.subr.bf16.mxu0 %v3055
        %3097 = vmatpush1.bf16.msra.mxu0 %v3054
        %3098 = vmatprep.subr.bf16.mxu0 %v3051
        %3099 = vmatpush1.bf16.msra.mxu0 %v3050
        %3100 = vmatprep.subr.bf16.mxu0 %v3047
        %3101 = vmatpush1.bf16.msra.mxu0 %v3046
        %3102 = vmatprep.subr.bf16.mxu0 %v3043
        %3103 = vmatpush1.bf16.msra.mxu0 %v3042
        %3104 = vmatprep.subr.bf16.mxu0 %v3039
        %3105 = vmatpush1.bf16.msra.mxu0 %v3038
        %3106 = vmatprep.subr.bf16.mxu0 %v3035
        %3107 = vmatpush1.bf16.msra.mxu0 %v3034
        %3108 = vmatprep.subr.bf16.mxu0 %v3031
        %3109 = vmatpush1.bf16.msra.mxu0 %v3030
        %3110 = vmatprep.subr.bf16.mxu0 0
        %3111 = vmatpush2.bf16.msra.mxu0 0
        %3112 = vmatprep.subr.bf16.mxu0 0
        %3113 = vmatpush2.bf16.msra.mxu0 0
        %3114 = vmatprep.subr.bf16.mxu0 0
        %3115 = vmatpush2.bf16.msra.mxu0 0
        %3116 = vmatprep.subr.bf16.mxu0 0
        %3117 = vmatpush2.bf16.msra.mxu0 0
        %3118 = vmatprep.subr.bf16.mxu0 0
        %3119 = vmatpush2.bf16.msra.mxu0 0
        %3120 = vmatprep.subr.bf16.mxu0 0
        %3121 = vmatpush2.bf16.msra.mxu0 0
        %3122 = vmatprep.subr.bf16.mxu0 0
        %3123 = vmatpush2.bf16.msra.mxu0 0
        %3124 = vmatprep.subr.bf16.mxu0 0
        %3125 = vmatpush2.bf16.msra.mxu0 0
        %3126 = vmatprep.mubr.bf16.mxu0 0
        %3127 = vmatmul.mubr.bf16.gmra.mxu0 %v2910
        %v3128 = vpop.f32.mrf.mxu0
        %v3129 = vadd.f32 %v2917, %v3128
        %v3130 = vpop.f32.mrf.mxu0
        %v3131 = vadd.f32 %v2921, %v3130
        %v3132 = vpop.f32.mrf.mxu0
        %v3133 = vpop.f32.mrf.mxu0
        %3134 = vdwg.mxu0
        %3135 = vmatprep.subr.bf16.mxu0 %v3061
        %3136 = vmatpush1.bf16.msra.mxu0 %v3060
        %3137 = vmatprep.subr.bf16.mxu0 %v3057
        %3138 = vmatpush1.bf16.msra.mxu0 %v3056
        %3139 = vmatprep.subr.bf16.mxu0 %v3053
        %3140 = vmatpush1.bf16.msra.mxu0 %v3052
        %3141 = vmatprep.subr.bf16.mxu0 %v3049
        %3142 = vmatpush1.bf16.msra.mxu0 %v3048
        %3143 = vmatprep.subr.bf16.mxu0 %v3045
        %3144 = vmatpush1.bf16.msra.mxu0 %v3044
        %3145 = vmatprep.subr.bf16.mxu0 %v3041
        %3146 = vmatpush1.bf16.msra.mxu0 %v3040
        %3147 = vmatprep.subr.bf16.mxu0 %v3037
        %3148 = vmatpush1.bf16.msra.mxu0 %v3036
        %3149 = vmatprep.subr.bf16.mxu0 %v3033
        %3150 = vmatpush1.bf16.msra.mxu0 %v3032
        %3151 = vmatprep.subr.bf16.mxu0 0
        %3152 = vmatpush2.bf16.msra.mxu0 0
        %3153 = vmatprep.subr.bf16.mxu0 0
        %3154 = vmatpush2.bf16.msra.mxu0 0
        %3155 = vmatprep.subr.bf16.mxu0 0
        %3156 = vmatpush2.bf16.msra.mxu0 0
        %3157 = vmatprep.subr.bf16.mxu0 0
        %3158 = vmatpush2.bf16.msra.mxu0 0
        %3159 = vmatprep.subr.bf16.mxu0 0
        %3160 = vmatpush2.bf16.msra.mxu0 0
        %3161 = vmatprep.subr.bf16.mxu0 0
        %3162 = vmatpush2.bf16.msra.mxu0 0
        %3163 = vmatprep.subr.bf16.mxu0 0
        %3164 = vmatpush2.bf16.msra.mxu0 0
        %3165 = vmatprep.subr.bf16.mxu0 0
        %3166 = vmatpush2.bf16.msra.mxu0 0
        %3167 = vmatprep.mubr.bf16.mxu0 0
        %3168 = vmatmul.mubr.bf16.gmra.mxu0 %v2910
        %v3169 = vpop.f32.mrf.mxu0
        %v3170 = vadd.f32 %v2925, %v3169
        %v3171 = vpop.f32.mrf.mxu0
        %v3172 = vadd.f32 %v2929, %v3171
        %v3173 = vpop.f32.mrf.mxu0
        %v3174 = vpop.f32.mrf.mxu0
        %3175 = vdwg.mxu0
        %v3176 = vmax.f32 %v3129, 0.0
        %v3177 = vmax.f32 %v3131, 0.0
        %v3178 = vmax.f32 %v3170, 0.0
        %v3179 = vmax.f32 %v3172, 0.0
        %s3180 = scalar_lea.vmem [#allocation13], 256
        %v3181 = vld [vmem:[%s3180] sm:$0xf]
        %v3182 = vld [vmem:[%s3180 + $0x4] sm:$0xf]
        %v3183 = vld [vmem:[%s3180 + $0x8] sm:$0xf]
        %v3184 = vld [vmem:[%s3180 + $0xc] sm:$0xf]
        %v3185 = vld [vmem:[%s3180 + $0x10] sm:$0xf]
        %v3186 = vld [vmem:[%s3180 + $0x14] sm:$0xf]
        %v3187 = vld [vmem:[%s3180 + $0x18] sm:$0xf]
        %v3188 = vld [vmem:[%s3180 + $0x1c] sm:$0xf]
        %v3189 = vld [vmem:[%s3180 + $0x20] sm:$0xf]
        %v3190 = vld [vmem:[%s3180 + $0x24] sm:$0xf]
        %v3191 = vld [vmem:[%s3180 + $0x28] sm:$0xf]
        %v3192 = vld [vmem:[%s3180 + $0x2c] sm:$0xf]
        %v3193 = vld [vmem:[%s3180 + $0x30] sm:$0xf]
        %v3194 = vld [vmem:[%s3180 + $0x34] sm:$0xf]
        %v3195 = vld [vmem:[%s3180 + $0x38] sm:$0xf]
        %v3196 = vld [vmem:[%s3180 + $0x3c] sm:$0xf]
        %v3197 = vld [vmem:[%s3180 + $0x40] sm:$0xf]
        %v3198 = vld [vmem:[%s3180 + $0x44] sm:$0xf]
        %v3199 = vld [vmem:[%s3180 + $0x48] sm:$0xf]
        %v3200 = vld [vmem:[%s3180 + $0x4c] sm:$0xf]
        %v3201 = vld [vmem:[%s3180 + $0x50] sm:$0xf]
        %v3202 = vld [vmem:[%s3180 + $0x54] sm:$0xf]
        %v3203 = vld [vmem:[%s3180 + $0x58] sm:$0xf]
        %v3204 = vld [vmem:[%s3180 + $0x5c] sm:$0xf]
        %v3205 = vld [vmem:[%s3180 + $0x60] sm:$0xf]
        %v3206 = vld [vmem:[%s3180 + $0x64] sm:$0xf]
        %v3207 = vld [vmem:[%s3180 + $0x68] sm:$0xf]
        %v3208 = vld [vmem:[%s3180 + $0x6c] sm:$0xf]
        %v3209 = vld [vmem:[%s3180 + $0x70] sm:$0xf]
        %v3210 = vld [vmem:[%s3180 + $0x74] sm:$0xf]
        %v3211 = vld [vmem:[%s3180 + $0x78] sm:$0xf]
        %v3212 = vld [vmem:[%s3180 + $0x7c] sm:$0xf]
        %v3213 = vld [vmem:[%s3180 + $0x80] sm:$0xf]
        %v3214 = vld [vmem:[%s3180 + $0x84] sm:$0xf]
        %v3215 = vld [vmem:[%s3180 + $0x88] sm:$0xf]
        %v3216 = vld [vmem:[%s3180 + $0x8c] sm:$0xf]
        %v3217 = vld [vmem:[%s3180 + $0x90] sm:$0xf]
        %v3218 = vld [vmem:[%s3180 + $0x94] sm:$0xf]
        %v3219 = vld [vmem:[%s3180 + $0x98] sm:$0xf]
        %v3220 = vld [vmem:[%s3180 + $0x9c] sm:$0xf]
        %v3221 = vld [vmem:[%s3180 + $0xa0] sm:$0xf]
        %v3222 = vld [vmem:[%s3180 + $0xa4] sm:$0xf]
        %v3223 = vld [vmem:[%s3180 + $0xa8] sm:$0xf]
        %v3224 = vld [vmem:[%s3180 + $0xac] sm:$0xf]
        %v3225 = vld [vmem:[%s3180 + $0xb0] sm:$0xf]
        %v3226 = vld [vmem:[%s3180 + $0xb4] sm:$0xf]
        %v3227 = vld [vmem:[%s3180 + $0xb8] sm:$0xf]
        %v3228 = vld [vmem:[%s3180 + $0xbc] sm:$0xf]
        %v3229 = vld [vmem:[%s3180 + $0xc0] sm:$0xf]
        %v3230 = vld [vmem:[%s3180 + $0xc4] sm:$0xf]
        %v3231 = vld [vmem:[%s3180 + $0xc8] sm:$0xf]
        %v3232 = vld [vmem:[%s3180 + $0xcc] sm:$0xf]
        %v3233 = vld [vmem:[%s3180 + $0xd0] sm:$0xf]
        %v3234 = vld [vmem:[%s3180 + $0xd4] sm:$0xf]
        %v3235 = vld [vmem:[%s3180 + $0xd8] sm:$0xf]
        %v3236 = vld [vmem:[%s3180 + $0xdc] sm:$0xf]
        %v3237 = vld [vmem:[%s3180 + $0xe0] sm:$0xf]
        %v3238 = vld [vmem:[%s3180 + $0xe4] sm:$0xf]
        %v3239 = vld [vmem:[%s3180 + $0xe8] sm:$0xf]
        %v3240 = vld [vmem:[%s3180 + $0xec] sm:$0xf]
        %v3241 = vld [vmem:[%s3180 + $0xf0] sm:$0xf]
        %v3242 = vld [vmem:[%s3180 + $0xf4] sm:$0xf]
        %v3243 = vld [vmem:[%s3180 + $0xf8] sm:$0xf]
        %v3244 = vld [vmem:[%s3180 + $0xfc] sm:$0xf]
        %v3245 = vpack.c.bf16 %v3176, %v3176
        %v3246 = vpack.c.bf16 %v3177, %v3177
        %v3247 = vpack.c.bf16 %v3178, %v3178
        %v3248 = vpack.c.bf16 %v3179, %v3179
        %s3249 = scalar_lea.vmem [#allocation15], 1
        %v3250 = vld [vmem:[%s3249] sm:$0x1]
        %v3252 = vlaneseq
        %v3253 = vshrl.u32 %v3252, 7
        %v3254 = vsub.s32 0, %v3253
        %v3255 = vrot.slane %v3250, %v3254
        %v3321 = vunpack.c.l.b16 %v3181
        %v3322 = vunpack.c.l.b16 %v3182
        %v3323 = vunpack.c.l.b16 %v3183
        %v3324 = vunpack.c.l.b16 %v3184
        %v3325 = vunpack.c.l.b16 %v3185
        %v3326 = vunpack.c.l.b16 %v3186
        %v3327 = vunpack.c.l.b16 %v3187
        %v3328 = vunpack.c.l.b16 %v3188
        %v3329 = vunpack.c.l.b16 %v3189
        %v3330 = vunpack.c.l.b16 %v3190
        %v3331 = vunpack.c.l.b16 %v3191
        %v3332 = vunpack.c.l.b16 %v3192
        %v3333 = vunpack.c.l.b16 %v3193
        %v3334 = vunpack.c.l.b16 %v3194
        %v3335 = vunpack.c.l.b16 %v3195
        %v3336 = vunpack.c.l.b16 %v3196
        %v3337 = vunpack.c.l.b16 %v3197
        %v3338 = vunpack.c.l.b16 %v3198
        %v3339 = vunpack.c.l.b16 %v3199
        %v3340 = vunpack.c.l.b16 %v3200
        %v3341 = vunpack.c.l.b16 %v3201
        %v3342 = vunpack.c.l.b16 %v3202
        %v3343 = vunpack.c.l.b16 %v3203
        %v3344 = vunpack.c.l.b16 %v3204
        %v3345 = vunpack.c.l.b16 %v3205
        %v3346 = vunpack.c.l.b16 %v3206
        %v3347 = vunpack.c.l.b16 %v3207
        %v3348 = vunpack.c.l.b16 %v3208
        %v3349 = vunpack.c.l.b16 %v3209
        %v3350 = vunpack.c.l.b16 %v3210
        %v3351 = vunpack.c.l.b16 %v3211
        %v3352 = vunpack.c.l.b16 %v3212
        %v3353 = vunpack.c.l.b16 %v3213
        %v3354 = vunpack.c.l.b16 %v3214
        %v3355 = vunpack.c.l.b16 %v3215
        %v3356 = vunpack.c.l.b16 %v3216
        %v3357 = vunpack.c.l.b16 %v3217
        %v3358 = vunpack.c.l.b16 %v3218
        %v3359 = vunpack.c.l.b16 %v3219
        %v3360 = vunpack.c.l.b16 %v3220
        %v3361 = vunpack.c.l.b16 %v3221
        %v3362 = vunpack.c.l.b16 %v3222
        %v3363 = vunpack.c.l.b16 %v3223
        %v3364 = vunpack.c.l.b16 %v3224
        %v3365 = vunpack.c.l.b16 %v3225
        %v3366 = vunpack.c.l.b16 %v3226
        %v3367 = vunpack.c.l.b16 %v3227
        %v3368 = vunpack.c.l.b16 %v3228
        %v3369 = vunpack.c.l.b16 %v3229
        %v3370 = vunpack.c.l.b16 %v3230
        %v3371 = vunpack.c.l.b16 %v3231
        %v3372 = vunpack.c.l.b16 %v3232
        %v3373 = vunpack.c.l.b16 %v3233
        %v3374 = vunpack.c.l.b16 %v3234
        %v3375 = vunpack.c.l.b16 %v3235
        %v3376 = vunpack.c.l.b16 %v3236
        %v3377 = vunpack.c.l.b16 %v3237
        %v3378 = vunpack.c.l.b16 %v3238
        %v3379 = vunpack.c.l.b16 %v3239
        %v3380 = vunpack.c.l.b16 %v3240
        %v3381 = vunpack.c.l.b16 %v3241
        %v3382 = vunpack.c.l.b16 %v3242
        %v3383 = vunpack.c.l.b16 %v3243
        %v3384 = vunpack.c.l.b16 %v3244
        %v3385 = vpack.c.b16 %v3322, %v3321
        %v3386 = vpack.c.b16 %v3324, %v3323
        %v3387 = vpack.c.b16 %v3326, %v3325
        %v3388 = vpack.c.b16 %v3328, %v3327
        %v3389 = vpack.c.b16 %v3330, %v3329
        %v3390 = vpack.c.b16 %v3332, %v3331
        %v3391 = vpack.c.b16 %v3334, %v3333
        %v3392 = vpack.c.b16 %v3336, %v3335
        %v3393 = vpack.c.b16 %v3338, %v3337
        %v3394 = vpack.c.b16 %v3340, %v3339
        %v3395 = vpack.c.b16 %v3342, %v3341
        %v3396 = vpack.c.b16 %v3344, %v3343
        %v3397 = vpack.c.b16 %v3346, %v3345
        %v3398 = vpack.c.b16 %v3348, %v3347
        %v3399 = vpack.c.b16 %v3350, %v3349
        %v3400 = vpack.c.b16 %v3352, %v3351
        %v3401 = vpack.c.b16 %v3354, %v3353
        %v3402 = vpack.c.b16 %v3356, %v3355
        %v3403 = vpack.c.b16 %v3358, %v3357
        %v3404 = vpack.c.b16 %v3360, %v3359
        %v3405 = vpack.c.b16 %v3362, %v3361
        %v3406 = vpack.c.b16 %v3364, %v3363
        %v3407 = vpack.c.b16 %v3366, %v3365
        %v3408 = vpack.c.b16 %v3368, %v3367
        %v3409 = vpack.c.b16 %v3370, %v3369
        %v3410 = vpack.c.b16 %v3372, %v3371
        %v3411 = vpack.c.b16 %v3374, %v3373
        %v3412 = vpack.c.b16 %v3376, %v3375
        %v3413 = vpack.c.b16 %v3378, %v3377
        %v3414 = vpack.c.b16 %v3380, %v3379
        %v3415 = vpack.c.b16 %v3382, %v3381
        %v3416 = vpack.c.b16 %v3384, %v3383
        %3449 = vmatprep.subr.bf16.mxu0 0
        %3450 = vmatpush1.bf16.msra.mxu0 %v3392
        %3451 = vmatprep.subr.bf16.mxu0 0
        %3452 = vmatpush1.bf16.msra.mxu0 %v3391
        %3453 = vmatprep.subr.bf16.mxu0 0
        %3454 = vmatpush1.bf16.msra.mxu0 %v3390
        %3455 = vmatprep.subr.bf16.mxu0 0
        %3456 = vmatpush1.bf16.msra.mxu0 %v3389
        %3457 = vmatprep.subr.bf16.mxu0 0
        %3458 = vmatpush1.bf16.msra.mxu0 %v3388
        %3459 = vmatprep.subr.bf16.mxu0 0
        %3460 = vmatpush1.bf16.msra.mxu0 %v3387
        %3461 = vmatprep.subr.bf16.mxu0 0
        %3462 = vmatpush1.bf16.msra.mxu0 %v3386
        %3463 = vmatprep.subr.bf16.mxu0 0
        %3464 = vmatpush1.bf16.msra.mxu0 %v3385
        %3465 = vmatprep.subr.bf16.mxu0 0
        %3466 = vmatpush2.bf16.msra.mxu0 %v3400
        %3467 = vmatprep.subr.bf16.mxu0 0
        %3468 = vmatpush2.bf16.msra.mxu0 %v3399
        %3469 = vmatprep.subr.bf16.mxu0 0
        %3470 = vmatpush2.bf16.msra.mxu0 %v3398
        %3471 = vmatprep.subr.bf16.mxu0 0
        %3472 = vmatpush2.bf16.msra.mxu0 %v3397
        %3473 = vmatprep.subr.bf16.mxu0 0
        %3474 = vmatpush2.bf16.msra.mxu0 %v3396
        %3475 = vmatprep.subr.bf16.mxu0 0
        %3476 = vmatpush2.bf16.msra.mxu0 %v3395
        %3477 = vmatprep.subr.bf16.mxu0 0
        %3478 = vmatpush2.bf16.msra.mxu0 %v3394
        %3479 = vmatprep.subr.bf16.mxu0 0
        %3480 = vmatpush2.bf16.msra.mxu0 %v3393
        %3481 = vmatprep.mubr.bf16.mxu0 %v3246
        %3482 = vmatmul.mubr.bf16.gmra.mxu0 %v3245
        %v3483 = vpop.f32.mrf.mxu0
        %v3484 = vadd.f32 %v3255, %v3483
        %v3485 = vpop.f32.mrf.mxu0
        %v3486 = vpop.f32.mrf.mxu0
        %v3487 = vpop.f32.mrf.mxu0
        %3488 = vdwg.mxu0
        %3489 = vmatprep.subr.bf16.mxu0 0
        %3490 = vmatpush1.bf16.msra.mxu0 %v3408
        %3491 = vmatprep.subr.bf16.mxu0 0
        %3492 = vmatpush1.bf16.msra.mxu0 %v3407
        %3493 = vmatprep.subr.bf16.mxu0 0
        %3494 = vmatpush1.bf16.msra.mxu0 %v3406
        %3495 = vmatprep.subr.bf16.mxu0 0
        %3496 = vmatpush1.bf16.msra.mxu0 %v3405
        %3497 = vmatprep.subr.bf16.mxu0 0
        %3498 = vmatpush1.bf16.msra.mxu0 %v3404
        %3499 = vmatprep.subr.bf16.mxu0 0
        %3500 = vmatpush1.bf16.msra.mxu0 %v3403
        %3501 = vmatprep.subr.bf16.mxu0 0
        %3502 = vmatpush1.bf16.msra.mxu0 %v3402
        %3503 = vmatprep.subr.bf16.mxu0 0
        %3504 = vmatpush1.bf16.msra.mxu0 %v3401
        %3505 = vmatprep.subr.bf16.mxu0 0
        %3506 = vmatpush2.bf16.msra.mxu0 %v3416
        %3507 = vmatprep.subr.bf16.mxu0 0
        %3508 = vmatpush2.bf16.msra.mxu0 %v3415
        %3509 = vmatprep.subr.bf16.mxu0 0
        %3510 = vmatpush2.bf16.msra.mxu0 %v3414
        %3511 = vmatprep.subr.bf16.mxu0 0
        %3512 = vmatpush2.bf16.msra.mxu0 %v3413
        %3513 = vmatprep.subr.bf16.mxu0 0
        %3514 = vmatpush2.bf16.msra.mxu0 %v3412
        %3515 = vmatprep.subr.bf16.mxu0 0
        %3516 = vmatpush2.bf16.msra.mxu0 %v3411
        %3517 = vmatprep.subr.bf16.mxu0 0
        %3518 = vmatpush2.bf16.msra.mxu0 %v3410
        %3519 = vmatprep.subr.bf16.mxu0 0
        %3520 = vmatpush2.bf16.msra.mxu0 %v3409
        %3521 = vmatprep.mubr.bf16.mxu0 %v3248
        %3522 = vmatmul.mubr.bf16.gmra.mxu0 %v3247
        %v3523 = vpop.f32.mrf.mxu0
        %v3524 = vadd.f32 %v3484, %v3523
        %v3525 = vpop.f32.mrf.mxu0
        %v3526 = vpop.f32.mrf.mxu0
        %v3527 = vpop.f32.mrf.mxu0
        %3528 = vdwg.mxu0
        %v3529 = vadd.f32 %v2876, %v3524
        %s3530 = scalar_lea.vmem [#allocation19], 1
        %v3531 = vld [vmem:[%s3530] sm:$0x1]
        %s3532 = scalar_lea.vmem [#allocation21], 1
        %v3533 = vld [vmem:[%s3532] sm:$0x1]
        %3534 = vadd.xlane.f32.xlu0 %v3529
        %v3535 = vpop.xlane.xlu0 %3534
        %v3536 = vmul.f32 %v3535, %v1503
        %v3537 = vsub.f32 %v3529, %v3536
        %v3538 = vmul.f32 %v3537, %v3537
        %3539 = vadd.xlane.f32.xlu0 %v3538
        %v3540 = vpop.xlane.xlu0 %3539
        %v3541 = vmul.f32 %v3540, %v1503
        %v3542 = vadd.f32 %v3541, 1e-06
        %v3543 = vrsqrt.pop %v3542
        %v3544 = vmul.f32 %v3537, %v3543
        %v3546 = vlaneseq
        %v3547 = vshrl.u32 %v3546, 7
        %v3548 = vsub.s32 0, %v3547
        %v3549 = vrot.slane %v3531, %v3548
        %v3551 = vmul.f32 %v3544, %v3549
        %v3553 = vlaneseq
        %v3554 = vshrl.u32 %v3553, 7
        %v3555 = vsub.s32 0, %v3554
        %v3556 = vrot.slane %v3533, %v3555
        %v3558 = vadd.f32 %v3551, %v3556
        %s3559 = scalar_lea.vmem [#allocation9], 384
        %v3560 = vld [vmem:[%s3559] sm:$0xff]
        %v3561 = vld [vmem:[%s3559 + $0x8] sm:$0xf]
        %v3562 = vld [vmem:[%s3559 + $0xc] sm:$0xff]
        %v3563 = vld [vmem:[%s3559 + $0x14] sm:$0xf]
        %v3564 = vld [vmem:[%s3559 + $0x18] sm:$0xff]
        %v3565 = vld [vmem:[%s3559 + $0x20] sm:$0xf]
        %v3566 = vld [vmem:[%s3559 + $0x24] sm:$0xff]
        %v3567 = vld [vmem:[%s3559 + $0x2c] sm:$0xf]
        %v3568 = vld [vmem:[%s3559 + $0x30] sm:$0xff]
        %v3569 = vld [vmem:[%s3559 + $0x38] sm:$0xf]
        %v3570 = vld [vmem:[%s3559 + $0x3c] sm:$0xff]
        %v3571 = vld [vmem:[%s3559 + $0x44] sm:$0xf]
        %v3572 = vld [vmem:[%s3559 + $0x48] sm:$0xff]
        %v3573 = vld [vmem:[%s3559 + $0x50] sm:$0xf]
        %v3574 = vld [vmem:[%s3559 + $0x54] sm:$0xff]
        %v3575 = vld [vmem:[%s3559 + $0x5c] sm:$0xf]
        %v3576 = vld [vmem:[%s3559 + $0x60] sm:$0xff]
        %v3577 = vld [vmem:[%s3559 + $0x68] sm:$0xf]
        %v3578 = vld [vmem:[%s3559 + $0x6c] sm:$0xff]
        %v3579 = vld [vmem:[%s3559 + $0x74] sm:$0xf]
        %v3580 = vld [vmem:[%s3559 + $0x78] sm:$0xff]
        %v3581 = vld [vmem:[%s3559 + $0x80] sm:$0xf]
        %v3582 = vld [vmem:[%s3559 + $0x84] sm:$0xff]
        %v3583 = vld [vmem:[%s3559 + $0x8c] sm:$0xf]
        %v3584 = vld [vmem:[%s3559 + $0x90] sm:$0xff]
        %v3585 = vld [vmem:[%s3559 + $0x98] sm:$0xf]
        %v3586 = vld [vmem:[%s3559 + $0x9c] sm:$0xff]
        %v3587 = vld [vmem:[%s3559 + $0xa4] sm:$0xf]
        %v3588 = vld [vmem:[%s3559 + $0xa8] sm:$0xff]
        %v3589 = vld [vmem:[%s3559 + $0xb0] sm:$0xf]
        %v3590 = vld [vmem:[%s3559 + $0xb4] sm:$0xff]
        %v3591 = vld [vmem:[%s3559 + $0xbc] sm:$0xf]
        %v3592 = vpack.c.bf16 %v3558, %v3558
        %s3593 = scalar_lea.vmem [#allocation10], 6
        %v3594 = vld [vmem:[%s3593] sm:$0x7]
        %v3596 = vlaneseq
        %v3597 = vshrl.u32 %v3596, 7
        %v3598 = vsub.s32 0, %v3597
        %v3599 = vrot.slane %v3594, %v3598
        %v3600 = vlaneseq
        %v3601 = vshrl.u32 %v3600, 7
        %v3602 = vsub.s32 1, %v3601
        %v3603 = vrot.slane %v3594, %v3602
        %v3604 = vlaneseq
        %v3605 = vshrl.u32 %v3604, 7
        %v3606 = vsub.s32 2, %v3605
        %v3607 = vrot.slane %v3594, %v3606
        %v3643 = vunpack.c.l.b16 %v3560
        %v3644 = vunpack.c.h.b16 %v3560
        %v3645 = vunpack.c.l.b16 %v3561
        %v3646 = vunpack.c.l.b16 %v3562
        %v3647 = vunpack.c.h.b16 %v3562
        %v3648 = vunpack.c.l.b16 %v3563
        %v3649 = vunpack.c.l.b16 %v3564
        %v3650 = vunpack.c.h.b16 %v3564
        %v3651 = vunpack.c.l.b16 %v3565
        %v3652 = vunpack.c.l.b16 %v3566
        %v3653 = vunpack.c.h.b16 %v3566
        %v3654 = vunpack.c.l.b16 %v3567
        %v3655 = vunpack.c.l.b16 %v3568
        %v3656 = vunpack.c.h.b16 %v3568
        %v3657 = vunpack.c.l.b16 %v3569
        %v3658 = vunpack.c.l.b16 %v3570
        %v3659 = vunpack.c.h.b16 %v3570
        %v3660 = vunpack.c.l.b16 %v3571
        %v3661 = vunpack.c.l.b16 %v3572
        %v3662 = vunpack.c.h.b16 %v3572
        %v3663 = vunpack.c.l.b16 %v3573
        %v3664 = vunpack.c.l.b16 %v3574
        %v3665 = vunpack.c.h.b16 %v3574
        %v3666 = vunpack.c.l.b16 %v3575
        %v3667 = vunpack.c.l.b16 %v3576
        %v3668 = vunpack.c.h.b16 %v3576
        %v3669 = vunpack.c.l.b16 %v3577
        %v3670 = vunpack.c.l.b16 %v3578
        %v3671 = vunpack.c.h.b16 %v3578
        %v3672 = vunpack.c.l.b16 %v3579
        %v3673 = vunpack.c.l.b16 %v3580
        %v3674 = vunpack.c.h.b16 %v3580
        %v3675 = vunpack.c.l.b16 %v3581
        %v3676 = vunpack.c.l.b16 %v3582
        %v3677 = vunpack.c.h.b16 %v3582
        %v3678 = vunpack.c.l.b16 %v3583
        %v3679 = vunpack.c.l.b16 %v3584
        %v3680 = vunpack.c.h.b16 %v3584
        %v3681 = vunpack.c.l.b16 %v3585
        %v3682 = vunpack.c.l.b16 %v3586
        %v3683 = vunpack.c.h.b16 %v3586
        %v3684 = vunpack.c.l.b16 %v3587
        %v3685 = vunpack.c.l.b16 %v3588
        %v3686 = vunpack.c.h.b16 %v3588
        %v3687 = vunpack.c.l.b16 %v3589
        %v3688 = vunpack.c.l.b16 %v3590
        %v3689 = vunpack.c.h.b16 %v3590
        %v3690 = vunpack.c.l.b16 %v3591
        %v3691 = vpack.c.b16 %v3646, %v3643
        %v3692 = vpack.c.b16 %v3647, %v3644
        %v3693 = vpack.c.b16 %v3648, %v3645
        %v3694 = vpack.c.b16 %v3652, %v3649
        %v3695 = vpack.c.b16 %v3653, %v3650
        %v3696 = vpack.c.b16 %v3654, %v3651
        %v3697 = vpack.c.b16 %v3658, %v3655
        %v3698 = vpack.c.b16 %v3659, %v3656
        %v3699 = vpack.c.b16 %v3660, %v3657
        %v3700 = vpack.c.b16 %v3664, %v3661
        %v3701 = vpack.c.b16 %v3665, %v3662
        %v3702 = vpack.c.b16 %v3666, %v3663
        %v3703 = vpack.c.b16 %v3670, %v3667
        %v3704 = vpack.c.b16 %v3671, %v3668
        %v3705 = vpack.c.b16 %v3672, %v3669
        %v3706 = vpack.c.b16 %v3676, %v3673
        %v3707 = vpack.c.b16 %v3677, %v3674
        %v3708 = vpack.c.b16 %v3678, %v3675
        %v3709 = vpack.c.b16 %v3682, %v3679
        %v3710 = vpack.c.b16 %v3683, %v3680
        %v3711 = vpack.c.b16 %v3684, %v3681
        %v3712 = vpack.c.b16 %v3688, %v3685
        %v3713 = vpack.c.b16 %v3689, %v3686
        %v3714 = vpack.c.b16 %v3690, %v3687
        %3739 = vmatprep.subr.bf16.mxu0 %v3713
        %3740 = vmatpush1.bf16.msra.mxu0 %v3712
        %3741 = vmatprep.subr.bf16.mxu0 %v3710
        %3742 = vmatpush1.bf16.msra.mxu0 %v3709
        %3743 = vmatprep.subr.bf16.mxu0 %v3707
        %3744 = vmatpush1.bf16.msra.mxu0 %v3706
        %3745 = vmatprep.subr.bf16.mxu0 %v3704
        %3746 = vmatpush1.bf16.msra.mxu0 %v3703
        %3747 = vmatprep.subr.bf16.mxu0 %v3701
        %3748 = vmatpush1.bf16.msra.mxu0 %v3700
        %3749 = vmatprep.subr.bf16.mxu0 %v3698
        %3750 = vmatpush1.bf16.msra.mxu0 %v3697
        %3751 = vmatprep.subr.bf16.mxu0 %v3695
        %3752 = vmatpush1.bf16.msra.mxu0 %v3694
        %3753 = vmatprep.subr.bf16.mxu0 %v3692
        %3754 = vmatpush1.bf16.msra.mxu0 %v3691
        %3755 = vmatprep.subr.bf16.mxu0 0
        %3756 = vmatpush2.bf16.msra.mxu0 0
        %3757 = vmatprep.subr.bf16.mxu0 0
        %3758 = vmatpush2.bf16.msra.mxu0 0
        %3759 = vmatprep.subr.bf16.mxu0 0
        %3760 = vmatpush2.bf16.msra.mxu0 0
        %3761 = vmatprep.subr.bf16.mxu0 0
        %3762 = vmatpush2.bf16.msra.mxu0 0
        %3763 = vmatprep.subr.bf16.mxu0 0
        %3764 = vmatpush2.bf16.msra.mxu0 0
        %3765 = vmatprep.subr.bf16.mxu0 0
        %3766 = vmatpush2.bf16.msra.mxu0 0
        %3767 = vmatprep.subr.bf16.mxu0 0
        %3768 = vmatpush2.bf16.msra.mxu0 0
        %3769 = vmatprep.subr.bf16.mxu0 0
        %3770 = vmatpush2.bf16.msra.mxu0 0
        %3771 = vmatprep.mubr.bf16.mxu0 0
        %3772 = vmatmul.mubr.bf16.gmra.mxu0 %v3592
        %v3773 = vpop.f32.mrf.mxu0
        %v3774 = vadd.f32 %v3599, %v3773
        %v3775 = vpop.f32.mrf.mxu0
        %v3776 = vadd.f32 %v3603, %v3775
        %v3777 = vpop.f32.mrf.mxu0
        %v3778 = vpop.f32.mrf.mxu0
        %3779 = vdwg.mxu0
        %3780 = vmatprep.subr.bf16.mxu0 0
        %3781 = vmatpush1.bf16.msra.mxu0 %v3714
        %3782 = vmatprep.subr.bf16.mxu0 0
        %3783 = vmatpush1.bf16.msra.mxu0 %v3711
        %3784 = vmatprep.subr.bf16.mxu0 0
        %3785 = vmatpush1.bf16.msra.mxu0 %v3708
        %3786 = vmatprep.subr.bf16.mxu0 0
        %3787 = vmatpush1.bf16.msra.mxu0 %v3705
        %3788 = vmatprep.subr.bf16.mxu0 0
        %3789 = vmatpush1.bf16.msra.mxu0 %v3702
        %3790 = vmatprep.subr.bf16.mxu0 0
        %3791 = vmatpush1.bf16.msra.mxu0 %v3699
        %3792 = vmatprep.subr.bf16.mxu0 0
        %3793 = vmatpush1.bf16.msra.mxu0 %v3696
        %3794 = vmatprep.subr.bf16.mxu0 0
        %3795 = vmatpush1.bf16.msra.mxu0 %v3693
        %3796 = vmatprep.subr.bf16.mxu0 0
        %3797 = vmatpush2.bf16.msra.mxu0 0
        %3798 = vmatprep.subr.bf16.mxu0 0
        %3799 = vmatpush2.bf16.msra.mxu0 0
        %3800 = vmatprep.subr.bf16.mxu0 0
        %3801 = vmatpush2.bf16.msra.mxu0 0
        %3802 = vmatprep.subr.bf16.mxu0 0
        %3803 = vmatpush2.bf16.msra.mxu0 0
        %3804 = vmatprep.subr.bf16.mxu0 0
        %3805 = vmatpush2.bf16.msra.mxu0 0
        %3806 = vmatprep.subr.bf16.mxu0 0
        %3807 = vmatpush2.bf16.msra.mxu0 0
        %3808 = vmatprep.subr.bf16.mxu0 0
        %3809 = vmatpush2.bf16.msra.mxu0 0
        %3810 = vmatprep.subr.bf16.mxu0 0
        %3811 = vmatpush2.bf16.msra.mxu0 0
        %3812 = vmatprep.mubr.bf16.mxu0 0
        %3813 = vmatmul.mubr.bf16.gmra.mxu0 %v3592
        %v3814 = vpop.f32.mrf.mxu0
        %v3815 = vadd.f32 %v3607, %v3814
        %v3816 = vpop.f32.mrf.mxu0
        %v3817 = vpop.f32.mrf.mxu0
        %v3818 = vpop.f32.mrf.mxu0
        %3819 = vdwg.mxu0
        %v3820 = vmul.f32 %v3774, 0.125
        %s3821 = scalar_lea.vmem %s7, 128
        %v3822 = vld [vmem:[%s3821] sm:$0xf]
        %v3823 = vld [vmem:[%s3821 + $0x4] sm:$0xf]
        %v3824 = vld [vmem:[%s3821 + $0x8] sm:$0xf]
        %v3825 = vld [vmem:[%s3821 + $0xc] sm:$0xf]
        %v3826 = vld [vmem:[%s3821 + $0x10] sm:$0xf]
        %v3827 = vld [vmem:[%s3821 + $0x14] sm:$0xf]
        %v3828 = vld [vmem:[%s3821 + $0x18] sm:$0xf]
        %v3829 = vld [vmem:[%s3821 + $0x1c] sm:$0xf]
        %v3830 = vld [vmem:[%s3821 + $0x20] sm:$0xf]
        %v3831 = vld [vmem:[%s3821 + $0x24] sm:$0xf]
        %v3832 = vld [vmem:[%s3821 + $0x28] sm:$0xf]
        %v3833 = vld [vmem:[%s3821 + $0x2c] sm:$0xf]
        %v3834 = vld [vmem:[%s3821 + $0x30] sm:$0xf]
        %v3835 = vld [vmem:[%s3821 + $0x34] sm:$0xf]
        %v3836 = vld [vmem:[%s3821 + $0x38] sm:$0xf]
        %v3837 = vld [vmem:[%s3821 + $0x3c] sm:$0xf]
        %v3838 = vpack.c.bf16 %v3820, %v3820
        %v3839 = vpack.c.bf16 %v3776, %v3776
        %v3841 = vsel %vm1133, %v3838, 0
        %v3844 = vsel %vm1133, %v3839, 0
        %3846 = vmatprep.subr.bf16.mxu0 0
        %3847 = vmatpush1.bf16.xpose.msra.mxu0 0
        %3848 = vmatprep.subr.bf16.mxu0 0
        %3849 = vmatpush1.bf16.xpose.msra.mxu0 0
        %3850 = vmatprep.subr.bf16.mxu0 0
        %3851 = vmatpush1.bf16.xpose.msra.mxu0 0
        %3852 = vmatprep.subr.bf16.mxu0 0
        %3853 = vmatpush1.bf16.xpose.msra.mxu0 0
        %3854 = vmatprep.subr.bf16.mxu0 0
        %3855 = vmatpush1.bf16.xpose.msra.mxu0 0
        %3856 = vmatprep.subr.bf16.mxu0 0
        %3857 = vmatpush1.bf16.xpose.msra.mxu0 0
        %3858 = vmatprep.subr.bf16.mxu0 0
        %3859 = vmatpush1.bf16.xpose.msra.mxu0 0
        %3860 = vmatprep.subr.bf16.mxu0 0
        %3861 = vmatpush1.bf16.xpose.msra.mxu0 %v3844
        %3862 = vmatprep.subr.bf16.mxu0 0
        %3863 = vmatpush2.bf16.xpose.msra.mxu0 0
        %3864 = vmatprep.subr.bf16.mxu0 0
        %3865 = vmatpush2.bf16.xpose.msra.mxu0 0
        %3866 = vmatprep.subr.bf16.mxu0 0
        %3867 = vmatpush2.bf16.xpose.msra.mxu0 0
        %3868 = vmatprep.subr.bf16.mxu0 0
        %3869 = vmatpush2.bf16.xpose.msra.mxu0 0
        %3870 = vmatprep.subr.bf16.mxu0 0
        %3871 = vmatpush2.bf16.xpose.msra.mxu0 0
        %3872 = vmatprep.subr.bf16.mxu0 0
        %3873 = vmatpush2.bf16.xpose.msra.mxu0 0
        %3874 = vmatprep.subr.bf16.mxu0 0
        %3875 = vmatpush2.bf16.xpose.msra.mxu0 0
        %3876 = vmatprep.subr.bf16.mxu0 0
        %3877 = vmatpush2.bf16.xpose.msra.mxu0 0
        %3878 = vmatprep.mubr.bf16.mxu0 0
        %3879 = vmatmul.mubr.bf16.gmra.mxu0 %v3841
        %v3880 = vpop.f32.mrf.mxu0
        %v3881 = vadd.f32 %v789, %v3880
        %v3882 = vpop.f32.mrf.mxu0
        %v3883 = vpop.f32.mrf.mxu0
        %v3884 = vpop.f32.mrf.mxu0
        %3885 = vdwg.mxu0
        %v3886 = vsel %vm1180, %v3881, -inf
        %3887 = vmax.xlane.f32.xlu0 %v3886
        %v3888 = vpop.xlane.xlu0 %3887
        %v3889 = vsub.f32 %v3881, %v3888
        %v3890 = vmul.f32 %v3889, 1.442695
        %v3891 = vpow.pop %v3890
        %v3892 = vsel %vm1180, %v3891, 0.0
        %3893 = vadd.xlane.f32.xlu0 %v3892
        %v3894 = vpop.xlane.xlu0 %3893
        %v3895 = vrcp.pop %v3894
        %v3896 = vmul.f32 %v3891, %v3895
        %v3897 = vpack.c.bf16 %v3815, %v3815
        %v3898 = vpack.c.bf16 %v3896, %v3896
        %v3900 = vsel %vm1180, %v3898, 0
        %v3903 = vsel %vm1197, %v3897, 0
        %3905 = vmatprep.subr.bf16.mxu0 0
        %3906 = vmatpush1.bf16.msra.mxu0 0
        %3907 = vmatprep.subr.bf16.mxu0 0
        %3908 = vmatpush1.bf16.msra.mxu0 0
        %3909 = vmatprep.subr.bf16.mxu0 0
        %3910 = vmatpush1.bf16.msra.mxu0 0
        %3911 = vmatprep.subr.bf16.mxu0 0
        %3912 = vmatpush1.bf16.msra.mxu0 0
        %3913 = vmatprep.subr.bf16.mxu0 0
        %3914 = vmatpush1.bf16.msra.mxu0 0
        %3915 = vmatprep.subr.bf16.mxu0 0
        %3916 = vmatpush1.bf16.msra.mxu0 0
        %3917 = vmatprep.subr.bf16.mxu0 0
        %3918 = vmatpush1.bf16.msra.mxu0 0
        %3919 = vmatprep.subr.bf16.mxu0 0
        %3920 = vmatpush1.bf16.msra.mxu0 %v3903
        %3921 = vmatprep.subr.bf16.mxu0 0
        %3922 = vmatpush2.bf16.msra.mxu0 0
        %3923 = vmatprep.subr.bf16.mxu0 0
        %3924 = vmatpush2.bf16.msra.mxu0 0
        %3925 = vmatprep.subr.bf16.mxu0 0
        %3926 = vmatpush2.bf16.msra.mxu0 0
        %3927 = vmatprep.subr.bf16.mxu0 0
        %3928 = vmatpush2.bf16.msra.mxu0 0
        %3929 = vmatprep.subr.bf16.mxu0 0
        %3930 = vmatpush2.bf16.msra.mxu0 0
        %3931 = vmatprep.subr.bf16.mxu0 0
        %3932 = vmatpush2.bf16.msra.mxu0 0
        %3933 = vmatprep.subr.bf16.mxu0 0
        %3934 = vmatpush2.bf16.msra.mxu0 0
        %3935 = vmatprep.subr.bf16.mxu0 0
        %3936 = vmatpush2.bf16.msra.mxu0 0
        %3937 = vmatprep.mubr.bf16.mxu0 0
        %3938 = vmatmul.mubr.bf16.gmra.mxu0 %v3900
        %v3939 = vpop.f32.mrf.mxu0
        %v3940 = vadd.f32 0.0, %v3939
        %v3941 = vpop.f32.mrf.mxu0
        %v3942 = vpop.f32.mrf.mxu0
        %v3943 = vpop.f32.mrf.mxu0
        %3944 = vdwg.mxu0
        %v3945 = vpack.c.bf16 %v3940, %v3940
        %3947 = vrot.lane.b32.xlu0 %v3838, 64
        %v3948 = vpop.permute.xlu0 %3947
        %3950 = vrot.lane.b32.xlu0 %v3839, 64
        %v3951 = vpop.permute.xlu0 %3950
        %v3953 = vsel %vm1133, %v3948, 0
        %v3956 = vsel %vm1133, %v3951, 0
        %3958 = vmatprep.subr.bf16.mxu0 0
        %3959 = vmatpush1.bf16.xpose.msra.mxu0 0
        %3960 = vmatprep.subr.bf16.mxu0 0
        %3961 = vmatpush1.bf16.xpose.msra.mxu0 0
        %3962 = vmatprep.subr.bf16.mxu0 0
        %3963 = vmatpush1.bf16.xpose.msra.mxu0 0
        %3964 = vmatprep.subr.bf16.mxu0 0
        %3965 = vmatpush1.bf16.xpose.msra.mxu0 0
        %3966 = vmatprep.subr.bf16.mxu0 0
        %3967 = vmatpush1.bf16.xpose.msra.mxu0 0
        %3968 = vmatprep.subr.bf16.mxu0 0
        %3969 = vmatpush1.bf16.xpose.msra.mxu0 0
        %3970 = vmatprep.subr.bf16.mxu0 0
        %3971 = vmatpush1.bf16.xpose.msra.mxu0 0
        %3972 = vmatprep.subr.bf16.mxu0 0
        %3973 = vmatpush1.bf16.xpose.msra.mxu0 %v3956
        %3974 = vmatprep.subr.bf16.mxu0 0
        %3975 = vmatpush2.bf16.xpose.msra.mxu0 0
        %3976 = vmatprep.subr.bf16.mxu0 0
        %3977 = vmatpush2.bf16.xpose.msra.mxu0 0
        %3978 = vmatprep.subr.bf16.mxu0 0
        %3979 = vmatpush2.bf16.xpose.msra.mxu0 0
        %3980 = vmatprep.subr.bf16.mxu0 0
        %3981 = vmatpush2.bf16.xpose.msra.mxu0 0
        %3982 = vmatprep.subr.bf16.mxu0 0
        %3983 = vmatpush2.bf16.xpose.msra.mxu0 0
        %3984 = vmatprep.subr.bf16.mxu0 0
        %3985 = vmatpush2.bf16.xpose.msra.mxu0 0
        %3986 = vmatprep.subr.bf16.mxu0 0
        %3987 = vmatpush2.bf16.xpose.msra.mxu0 0
        %3988 = vmatprep.subr.bf16.mxu0 0
        %3989 = vmatpush2.bf16.xpose.msra.mxu0 0
        %3990 = vmatprep.mubr.bf16.mxu0 0
        %3991 = vmatmul.mubr.bf16.gmra.mxu0 %v3953
        %v3992 = vpop.f32.mrf.mxu0
        %v3993 = vadd.f32 %v789, %v3992
        %v3994 = vpop.f32.mrf.mxu0
        %v3995 = vpop.f32.mrf.mxu0
        %v3996 = vpop.f32.mrf.mxu0
        %3997 = vdwg.mxu0
        %v3998 = vsel %vm1180, %v3993, -inf
        %3999 = vmax.xlane.f32.xlu0 %v3998
        %v4000 = vpop.xlane.xlu0 %3999
        %v4001 = vsub.f32 %v3993, %v4000
        %v4002 = vmul.f32 %v4001, 1.442695
        %v4003 = vpow.pop %v4002
        %v4004 = vsel %vm1180, %v4003, 0.0
        %4005 = vadd.xlane.f32.xlu0 %v4004
        %v4006 = vpop.xlane.xlu0 %4005
        %v4007 = vrcp.pop %v4006
        %v4008 = vmul.f32 %v4003, %v4007
        %v4009 = vpack.c.bf16 %v4008, %v4008
        %4011 = vrot.lane.b32.xlu0 %v3897, 64
        %v4012 = vpop.permute.xlu0 %4011
        %v4014 = vsel %vm1180, %v4009, 0
        %v4017 = vsel %vm1197, %v4012, 0
        %4019 = vmatprep.subr.bf16.mxu0 0
        %4020 = vmatpush1.bf16.msra.mxu0 0
        %4021 = vmatprep.subr.bf16.mxu0 0
        %4022 = vmatpush1.bf16.msra.mxu0 0
        %4023 = vmatprep.subr.bf16.mxu0 0
        %4024 = vmatpush1.bf16.msra.mxu0 0
        %4025 = vmatprep.subr.bf16.mxu0 0
        %4026 = vmatpush1.bf16.msra.mxu0 0
        %4027 = vmatprep.subr.bf16.mxu0 0
        %4028 = vmatpush1.bf16.msra.mxu0 0
        %4029 = vmatprep.subr.bf16.mxu0 0
        %4030 = vmatpush1.bf16.msra.mxu0 0
        %4031 = vmatprep.subr.bf16.mxu0 0
        %4032 = vmatpush1.bf16.msra.mxu0 0
        %4033 = vmatprep.subr.bf16.mxu0 0
        %4034 = vmatpush1.bf16.msra.mxu0 %v4017
        %4035 = vmatprep.subr.bf16.mxu0 0
        %4036 = vmatpush2.bf16.msra.mxu0 0
        %4037 = vmatprep.subr.bf16.mxu0 0
        %4038 = vmatpush2.bf16.msra.mxu0 0
        %4039 = vmatprep.subr.bf16.mxu0 0
        %4040 = vmatpush2.bf16.msra.mxu0 0
        %4041 = vmatprep.subr.bf16.mxu0 0
        %4042 = vmatpush2.bf16.msra.mxu0 0
        %4043 = vmatprep.subr.bf16.mxu0 0
        %4044 = vmatpush2.bf16.msra.mxu0 0
        %4045 = vmatprep.subr.bf16.mxu0 0
        %4046 = vmatpush2.bf16.msra.mxu0 0
        %4047 = vmatprep.subr.bf16.mxu0 0
        %4048 = vmatpush2.bf16.msra.mxu0 0
        %4049 = vmatprep.subr.bf16.mxu0 0
        %4050 = vmatpush2.bf16.msra.mxu0 0
        %4051 = vmatprep.mubr.bf16.mxu0 0
        %4052 = vmatmul.mubr.bf16.gmra.mxu0 %v4014
        %v4053 = vpop.f32.mrf.mxu0
        %v4054 = vadd.f32 0.0, %v4053
        %v4055 = vpop.f32.mrf.mxu0
        %v4056 = vpop.f32.mrf.mxu0
        %v4057 = vpop.f32.mrf.mxu0
        %4058 = vdwg.mxu0
        %v4059 = vpack.c.bf16 %v4054, %v4054
        %v4068 = vunpack.c.l.b16 %v3830
        %v4069 = vunpack.c.l.b16 %v3831
        %v4070 = vunpack.c.l.b16 %v3832
        %v4071 = vunpack.c.l.b16 %v3833
        %v4072 = vunpack.c.l.b16 %v3834
        %v4073 = vunpack.c.l.b16 %v3835
        %v4074 = vunpack.c.l.b16 %v3836
        %v4075 = vunpack.c.l.b16 %v3837
        %v4076 = vpack.c.b16 %v4069, %v4068
        %v4077 = vpack.c.b16 %v4071, %v4070
        %v4078 = vpack.c.b16 %v4073, %v4072
        %v4079 = vpack.c.b16 %v4075, %v4074
        %v4085 = vsel %vm1133, %v4059, 0
        %4087 = vmatprep.subr.bf16.mxu0 0
        %4088 = vmatpush1.bf16.msra.mxu0 0
        %4089 = vmatprep.subr.bf16.mxu0 0
        %4090 = vmatpush1.bf16.msra.mxu0 0
        %4091 = vmatprep.subr.bf16.mxu0 0
        %4092 = vmatpush1.bf16.msra.mxu0 0
        %4093 = vmatprep.subr.bf16.mxu0 0
        %4094 = vmatpush1.bf16.msra.mxu0 0
        %4095 = vmatprep.subr.bf16.mxu0 0
        %4096 = vmatpush1.bf16.msra.mxu0 %v4079
        %4097 = vmatprep.subr.bf16.mxu0 0
        %4098 = vmatpush1.bf16.msra.mxu0 %v4078
        %4099 = vmatprep.subr.bf16.mxu0 0
        %4100 = vmatpush1.bf16.msra.mxu0 %v4077
        %4101 = vmatprep.subr.bf16.mxu0 0
        %4102 = vmatpush1.bf16.msra.mxu0 %v4076
        %4103 = vmatprep.subr.bf16.mxu0 0
        %4104 = vmatpush2.bf16.msra.mxu0 0
        %4105 = vmatprep.subr.bf16.mxu0 0
        %4106 = vmatpush2.bf16.msra.mxu0 0
        %4107 = vmatprep.subr.bf16.mxu0 0
        %4108 = vmatpush2.bf16.msra.mxu0 0
        %4109 = vmatprep.subr.bf16.mxu0 0
        %4110 = vmatpush2.bf16.msra.mxu0 0
        %4111 = vmatprep.subr.bf16.mxu0 0
        %4112 = vmatpush2.bf16.msra.mxu0 0
        %4113 = vmatprep.subr.bf16.mxu0 0
        %4114 = vmatpush2.bf16.msra.mxu0 0
        %4115 = vmatprep.subr.bf16.mxu0 0
        %4116 = vmatpush2.bf16.msra.mxu0 0
        %4117 = vmatprep.subr.bf16.mxu0 0
        %4118 = vmatpush2.bf16.msra.mxu0 0
        %4119 = vmatprep.mubr.bf16.mxu0 0
        %4120 = vmatmul.mubr.bf16.gmra.mxu0 %v4085
        %v4121 = vpop.f32.mrf.mxu0
        %v4122 = vadd.f32 0.0, %v4121
        %v4123 = vpop.f32.mrf.mxu0
        %v4124 = vpop.f32.mrf.mxu0
        %v4125 = vpop.f32.mrf.mxu0
        %4126 = vdwg.mxu0
        %v4135 = vunpack.c.l.b16 %v3822
        %v4136 = vunpack.c.l.b16 %v3823
        %v4137 = vunpack.c.l.b16 %v3824
        %v4138 = vunpack.c.l.b16 %v3825
        %v4139 = vunpack.c.l.b16 %v3826
        %v4140 = vunpack.c.l.b16 %v3827
        %v4141 = vunpack.c.l.b16 %v3828
        %v4142 = vunpack.c.l.b16 %v3829
        %v4143 = vpack.c.b16 %v4136, %v4135
        %v4144 = vpack.c.b16 %v4138, %v4137
        %v4145 = vpack.c.b16 %v4140, %v4139
        %v4146 = vpack.c.b16 %v4142, %v4141
        %v4152 = vsel %vm1133, %v3945, 0
        %4154 = vmatprep.subr.bf16.mxu0 0
        %4155 = vmatpush1.bf16.msra.mxu0 0
        %4156 = vmatprep.subr.bf16.mxu0 0
        %4157 = vmatpush1.bf16.msra.mxu0 0
        %4158 = vmatprep.subr.bf16.mxu0 0
        %4159 = vmatpush1.bf16.msra.mxu0 0
        %4160 = vmatprep.subr.bf16.mxu0 0
        %4161 = vmatpush1.bf16.msra.mxu0 0
        %4162 = vmatprep.subr.bf16.mxu0 0
        %4163 = vmatpush1.bf16.msra.mxu0 %v4146
        %4164 = vmatprep.subr.bf16.mxu0 0
        %4165 = vmatpush1.bf16.msra.mxu0 %v4145
        %4166 = vmatprep.subr.bf16.mxu0 0
        %4167 = vmatpush1.bf16.msra.mxu0 %v4144
        %4168 = vmatprep.subr.bf16.mxu0 0
        %4169 = vmatpush1.bf16.msra.mxu0 %v4143
        %4170 = vmatprep.subr.bf16.mxu0 0
        %4171 = vmatpush2.bf16.msra.mxu0 0
        %4172 = vmatprep.subr.bf16.mxu0 0
        %4173 = vmatpush2.bf16.msra.mxu0 0
        %4174 = vmatprep.subr.bf16.mxu0 0
        %4175 = vmatpush2.bf16.msra.mxu0 0
        %4176 = vmatprep.subr.bf16.mxu0 0
        %4177 = vmatpush2.bf16.msra.mxu0 0
        %4178 = vmatprep.subr.bf16.mxu0 0
        %4179 = vmatpush2.bf16.msra.mxu0 0
        %4180 = vmatprep.subr.bf16.mxu0 0
        %4181 = vmatpush2.bf16.msra.mxu0 0
        %4182 = vmatprep.subr.bf16.mxu0 0
        %4183 = vmatpush2.bf16.msra.mxu0 0
        %4184 = vmatprep.subr.bf16.mxu0 0
        %4185 = vmatpush2.bf16.msra.mxu0 0
        %4186 = vmatprep.mubr.bf16.mxu0 0
        %4187 = vmatmul.mubr.bf16.gmra.mxu0 %v4152
        %v4188 = vpop.f32.mrf.mxu0
        %v4189 = vadd.f32 %v4122, %v4188
        %v4190 = vpop.f32.mrf.mxu0
        %v4191 = vpop.f32.mrf.mxu0
        %v4192 = vpop.f32.mrf.mxu0
        %4193 = vdwg.mxu0
        %s4194 = scalar_lea.vmem %s8, 2
        %v4195 = vld [vmem:[%s4194] sm:$0x1]
        %v4197 = vlaneseq
        %v4198 = vshrl.u32 %v4197, 7
        %v4199 = vsub.s32 0, %v4198
        %v4200 = vrot.slane %v4195, %v4199
        %v4202 = vadd.f32 %v4189, %v4200
        %v4203 = vadd.f32 %v3558, %v4202
        %s4204 = scalar_lea.vmem [#allocation16], 2
        %v4205 = vld [vmem:[%s4204] sm:$0x1]
        %s4206 = scalar_lea.vmem [#allocation18], 2
        %v4207 = vld [vmem:[%s4206] sm:$0x1]
        %4208 = vadd.xlane.f32.xlu0 %v4203
        %v4209 = vpop.xlane.xlu0 %4208
        %v4210 = vmul.f32 %v4209, %v1503
        %v4211 = vsub.f32 %v4203, %v4210
        %v4212 = vmul.f32 %v4211, %v4211
        %4213 = vadd.xlane.f32.xlu0 %v4212
        %v4214 = vpop.xlane.xlu0 %4213
        %v4215 = vmul.f32 %v4214, %v1503
        %v4216 = vadd.f32 %v4215, 1e-06
        %v4217 = vrsqrt.pop %v4216
        %v4218 = vmul.f32 %v4211, %v4217
        %v4220 = vlaneseq
        %v4221 = vshrl.u32 %v4220, 7
        %v4222 = vsub.s32 0, %v4221
        %v4223 = vrot.slane %v4205, %v4222
        %v4225 = vmul.f32 %v4218, %v4223
        %v4227 = vlaneseq
        %v4228 = vshrl.u32 %v4227, 7
        %v4229 = vsub.s32 0, %v4228
        %v4230 = vrot.slane %v4207, %v4229
        %v4232 = vadd.f32 %v4225, %v4230
        %s4233 = scalar_lea.vmem [#allocation12], 512
        %v4234 = vld [vmem:[%s4233] sm:$0xff]
        %v4235 = vld [vmem:[%s4233 + $0x8] sm:$0xff]
        %v4236 = vld [vmem:[%s4233 + $0x10] sm:$0xff]
        %v4237 = vld [vmem:[%s4233 + $0x18] sm:$0xff]
        %v4238 = vld [vmem:[%s4233 + $0x20] sm:$0xff]
        %v4239 = vld [vmem:[%s4233 + $0x28] sm:$0xff]
        %v4240 = vld [vmem:[%s4233 + $0x30] sm:$0xff]
        %v4241 = vld [vmem:[%s4233 + $0x38] sm:$0xff]
        %v4242 = vld [vmem:[%s4233 + $0x40] sm:$0xff]
        %v4243 = vld [vmem:[%s4233 + $0x48] sm:$0xff]
        %v4244 = vld [vmem:[%s4233 + $0x50] sm:$0xff]
        %v4245 = vld [vmem:[%s4233 + $0x58] sm:$0xff]
        %v4246 = vld [vmem:[%s4233 + $0x60] sm:$0xff]
        %v4247 = vld [vmem:[%s4233 + $0x68] sm:$0xff]
        %v4248 = vld [vmem:[%s4233 + $0x70] sm:$0xff]
        %v4249 = vld [vmem:[%s4233 + $0x78] sm:$0xff]
        %v4250 = vld [vmem:[%s4233 + $0x80] sm:$0xff]
        %v4251 = vld [vmem:[%s4233 + $0x88] sm:$0xff]
        %v4252 = vld [vmem:[%s4233 + $0x90] sm:$0xff]
        %v4253 = vld [vmem:[%s4233 + $0x98] sm:$0xff]
        %v4254 = vld [vmem:[%s4233 + $0xa0] sm:$0xff]
        %v4255 = vld [vmem:[%s4233 + $0xa8] sm:$0xff]
        %v4256 = vld [vmem:[%s4233 + $0xb0] sm:$0xff]
        %v4257 = vld [vmem:[%s4233 + $0xb8] sm:$0xff]
        %v4258 = vld [vmem:[%s4233 + $0xc0] sm:$0xff]
        %v4259 = vld [vmem:[%s4233 + $0xc8] sm:$0xff]
        %v4260 = vld [vmem:[%s4233 + $0xd0] sm:$0xff]
        %v4261 = vld [vmem:[%s4233 + $0xd8] sm:$0xff]
        %v4262 = vld [vmem:[%s4233 + $0xe0] sm:$0xff]
        %v4263 = vld [vmem:[%s4233 + $0xe8] sm:$0xff]
        %v4264 = vld [vmem:[%s4233 + $0xf0] sm:$0xff]
        %v4265 = vld [vmem:[%s4233 + $0xf8] sm:$0xff]
        %v4266 = vpack.c.bf16 %v4232, %v4232
        %s4267 = scalar_lea.vmem %s10, 8
        %v4268 = vld [vmem:[%s4267] sm:$0xf]
        %v4270 = vlaneseq
        %v4271 = vshrl.u32 %v4270, 7
        %v4272 = vsub.s32 0, %v4271
        %v4273 = vrot.slane %v4268, %v4272
        %v4274 = vlaneseq
        %v4275 = vshrl.u32 %v4274, 7
        %v4276 = vsub.s32 1, %v4275
        %v4277 = vrot.slane %v4268, %v4276
        %v4278 = vlaneseq
        %v4279 = vshrl.u32 %v4278, 7
        %v4280 = vsub.s32 2, %v4279
        %v4281 = vrot.slane %v4268, %v4280
        %v4282 = vlaneseq
        %v4283 = vshrl.u32 %v4282, 7
        %v4284 = vsub.s32 3, %v4283
        %v4285 = vrot.slane %v4268, %v4284
        %v4322 = vunpack.c.l.b16 %v4234
        %v4323 = vunpack.c.h.b16 %v4234
        %v4324 = vunpack.c.l.b16 %v4235
        %v4325 = vunpack.c.h.b16 %v4235
        %v4326 = vunpack.c.l.b16 %v4236
        %v4327 = vunpack.c.h.b16 %v4236
        %v4328 = vunpack.c.l.b16 %v4237
        %v4329 = vunpack.c.h.b16 %v4237
        %v4330 = vunpack.c.l.b16 %v4238
        %v4331 = vunpack.c.h.b16 %v4238
        %v4332 = vunpack.c.l.b16 %v4239
        %v4333 = vunpack.c.h.b16 %v4239
        %v4334 = vunpack.c.l.b16 %v4240
        %v4335 = vunpack.c.h.b16 %v4240
        %v4336 = vunpack.c.l.b16 %v4241
        %v4337 = vunpack.c.h.b16 %v4241
        %v4338 = vunpack.c.l.b16 %v4242
        %v4339 = vunpack.c.h.b16 %v4242
        %v4340 = vunpack.c.l.b16 %v4243
        %v4341 = vunpack.c.h.b16 %v4243
        %v4342 = vunpack.c.l.b16 %v4244
        %v4343 = vunpack.c.h.b16 %v4244
        %v4344 = vunpack.c.l.b16 %v4245
        %v4345 = vunpack.c.h.b16 %v4245
        %v4346 = vunpack.c.l.b16 %v4246
        %v4347 = vunpack.c.h.b16 %v4246
        %v4348 = vunpack.c.l.b16 %v4247
        %v4349 = vunpack.c.h.b16 %v4247
        %v4350 = vunpack.c.l.b16 %v4248
        %v4351 = vunpack.c.h.b16 %v4248
        %v4352 = vunpack.c.l.b16 %v4249
        %v4353 = vunpack.c.h.b16 %v4249
        %v4354 = vunpack.c.l.b16 %v4250
        %v4355 = vunpack.c.h.b16 %v4250
        %v4356 = vunpack.c.l.b16 %v4251
        %v4357 = vunpack.c.h.b16 %v4251
        %v4358 = vunpack.c.l.b16 %v4252
        %v4359 = vunpack.c.h.b16 %v4252
        %v4360 = vunpack.c.l.b16 %v4253
        %v4361 = vunpack.c.h.b16 %v4253
        %v4362 = vunpack.c.l.b16 %v4254
        %v4363 = vunpack.c.h.b16 %v4254
        %v4364 = vunpack.c.l.b16 %v4255
        %v4365 = vunpack.c.h.b16 %v4255
        %v4366 = vunpack.c.l.b16 %v4256
        %v4367 = vunpack.c.h.b16 %v4256
        %v4368 = vunpack.c.l.b16 %v4257
        %v4369 = vunpack.c.h.b16 %v4257
        %v4370 = vunpack.c.l.b16 %v4258
        %v4371 = vunpack.c.h.b16 %v4258
        %v4372 = vunpack.c.l.b16 %v4259
        %v4373 = vunpack.c.h.b16 %v4259
        %v4374 = vunpack.c.l.b16 %v4260
        %v4375 = vunpack.c.h.b16 %v4260
        %v4376 = vunpack.c.l.b16 %v4261
        %v4377 = vunpack.c.h.b16 %v4261
        %v4378 = vunpack.c.l.b16 %v4262
        %v4379 = vunpack.c.h.b16 %v4262
        %v4380 = vunpack.c.l.b16 %v4263
        %v4381 = vunpack.c.h.b16 %v4263
        %v4382 = vunpack.c.l.b16 %v4264
        %v4383 = vunpack.c.h.b16 %v4264
        %v4384 = vunpack.c.l.b16 %v4265
        %v4385 = vunpack.c.h.b16 %v4265
        %v4386 = vpack.c.b16 %v4326, %v4322
        %v4387 = vpack.c.b16 %v4327, %v4323
        %v4388 = vpack.c.b16 %v4328, %v4324
        %v4389 = vpack.c.b16 %v4329, %v4325
        %v4390 = vpack.c.b16 %v4334, %v4330
        %v4391 = vpack.c.b16 %v4335, %v4331
        %v4392 = vpack.c.b16 %v4336, %v4332
        %v4393 = vpack.c.b16 %v4337, %v4333
        %v4394 = vpack.c.b16 %v4342, %v4338
        %v4395 = vpack.c.b16 %v4343, %v4339
        %v4396 = vpack.c.b16 %v4344, %v4340
        %v4397 = vpack.c.b16 %v4345, %v4341
        %v4398 = vpack.c.b16 %v4350, %v4346
        %v4399 = vpack.c.b16 %v4351, %v4347
        %v4400 = vpack.c.b16 %v4352, %v4348
        %v4401 = vpack.c.b16 %v4353, %v4349
        %v4402 = vpack.c.b16 %v4358, %v4354
        %v4403 = vpack.c.b16 %v4359, %v4355
        %v4404 = vpack.c.b16 %v4360, %v4356
        %v4405 = vpack.c.b16 %v4361, %v4357
        %v4406 = vpack.c.b16 %v4366, %v4362
        %v4407 = vpack.c.b16 %v4367, %v4363
        %v4408 = vpack.c.b16 %v4368, %v4364
        %v4409 = vpack.c.b16 %v4369, %v4365
        %v4410 = vpack.c.b16 %v4374, %v4370
        %v4411 = vpack.c.b16 %v4375, %v4371
        %v4412 = vpack.c.b16 %v4376, %v4372
        %v4413 = vpack.c.b16 %v4377, %v4373
        %v4414 = vpack.c.b16 %v4382, %v4378
        %v4415 = vpack.c.b16 %v4383, %v4379
        %v4416 = vpack.c.b16 %v4384, %v4380
        %v4417 = vpack.c.b16 %v4385, %v4381
        %4450 = vmatprep.subr.bf16.mxu0 %v4415
        %4451 = vmatpush1.bf16.msra.mxu0 %v4414
        %4452 = vmatprep.subr.bf16.mxu0 %v4411
        %4453 = vmatpush1.bf16.msra.mxu0 %v4410
        %4454 = vmatprep.subr.bf16.mxu0 %v4407
        %4455 = vmatpush1.bf16.msra.mxu0 %v4406
        %4456 = vmatprep.subr.bf16.mxu0 %v4403
        %4457 = vmatpush1.bf16.msra.mxu0 %v4402
        %4458 = vmatprep.subr.bf16.mxu0 %v4399
        %4459 = vmatpush1.bf16.msra.mxu0 %v4398
        %4460 = vmatprep.subr.bf16.mxu0 %v4395
        %4461 = vmatpush1.bf16.msra.mxu0 %v4394
        %4462 = vmatprep.subr.bf16.mxu0 %v4391
        %4463 = vmatpush1.bf16.msra.mxu0 %v4390
        %4464 = vmatprep.subr.bf16.mxu0 %v4387
        %4465 = vmatpush1.bf16.msra.mxu0 %v4386
        %4466 = vmatprep.subr.bf16.mxu0 0
        %4467 = vmatpush2.bf16.msra.mxu0 0
        %4468 = vmatprep.subr.bf16.mxu0 0
        %4469 = vmatpush2.bf16.msra.mxu0 0
        %4470 = vmatprep.subr.bf16.mxu0 0
        %4471 = vmatpush2.bf16.msra.mxu0 0
        %4472 = vmatprep.subr.bf16.mxu0 0
        %4473 = vmatpush2.bf16.msra.mxu0 0
        %4474 = vmatprep.subr.bf16.mxu0 0
        %4475 = vmatpush2.bf16.msra.mxu0 0
        %4476 = vmatprep.subr.bf16.mxu0 0
        %4477 = vmatpush2.bf16.msra.mxu0 0
        %4478 = vmatprep.subr.bf16.mxu0 0
        %4479 = vmatpush2.bf16.msra.mxu0 0
        %4480 = vmatprep.subr.bf16.mxu0 0
        %4481 = vmatpush2.bf16.msra.mxu0 0
        %4482 = vmatprep.mubr.bf16.mxu0 0
        %4483 = vmatmul.mubr.bf16.gmra.mxu0 %v4266
        %v4484 = vpop.f32.mrf.mxu0
        %v4485 = vadd.f32 %v4273, %v4484
        %v4486 = vpop.f32.mrf.mxu0
        %v4487 = vadd.f32 %v4277, %v4486
        %v4488 = vpop.f32.mrf.mxu0
        %v4489 = vpop.f32.mrf.mxu0
        %4490 = vdwg.mxu0
        %4491 = vmatprep.subr.bf16.mxu0 %v4417
        %4492 = vmatpush1.bf16.msra.mxu0 %v4416
        %4493 = vmatprep.subr.bf16.mxu0 %v4413
        %4494 = vmatpush1.bf16.msra.mxu0 %v4412
        %4495 = vmatprep.subr.bf16.mxu0 %v4409
        %4496 = vmatpush1.bf16.msra.mxu0 %v4408
        %4497 = vmatprep.subr.bf16.mxu0 %v4405
        %4498 = vmatpush1.bf16.msra.mxu0 %v4404
        %4499 = vmatprep.subr.bf16.mxu0 %v4401
        %4500 = vmatpush1.bf16.msra.mxu0 %v4400
        %4501 = vmatprep.subr.bf16.mxu0 %v4397
        %4502 = vmatpush1.bf16.msra.mxu0 %v4396
        %4503 = vmatprep.subr.bf16.mxu0 %v4393
        %4504 = vmatpush1.bf16.msra.mxu0 %v4392
        %4505 = vmatprep.subr.bf16.mxu0 %v4389
        %4506 = vmatpush1.bf16.msra.mxu0 %v4388
        %4507 = vmatprep.subr.bf16.mxu0 0
        %4508 = vmatpush2.bf16.msra.mxu0 0
        %4509 = vmatprep.subr.bf16.mxu0 0
        %4510 = vmatpush2.bf16.msra.mxu0 0
        %4511 = vmatprep.subr.bf16.mxu0 0
        %4512 = vmatpush2.bf16.msra.mxu0 0
        %4513 = vmatprep.subr.bf16.mxu0 0
        %4514 = vmatpush2.bf16.msra.mxu0 0
        %4515 = vmatprep.subr.bf16.mxu0 0
        %4516 = vmatpush2.bf16.msra.mxu0 0
        %4517 = vmatprep.subr.bf16.mxu0 0
        %4518 = vmatpush2.bf16.msra.mxu0 0
        %4519 = vmatprep.subr.bf16.mxu0 0
        %4520 = vmatpush2.bf16.msra.mxu0 0
        %4521 = vmatprep.subr.bf16.mxu0 0
        %4522 = vmatpush2.bf16.msra.mxu0 0
        %4523 = vmatprep.mubr.bf16.mxu0 0
        %4524 = vmatmul.mubr.bf16.gmra.mxu0 %v4266
        %v4525 = vpop.f32.mrf.mxu0
        %v4526 = vadd.f32 %v4281, %v4525
        %v4527 = vpop.f32.mrf.mxu0
        %v4528 = vadd.f32 %v4285, %v4527
        %v4529 = vpop.f32.mrf.mxu0
        %v4530 = vpop.f32.mrf.mxu0
        %4531 = vdwg.mxu0
        %v4532 = vmax.f32 %v4485, 0.0
        %v4533 = vmax.f32 %v4487, 0.0
        %v4534 = vmax.f32 %v4526, 0.0
        %v4535 = vmax.f32 %v4528, 0.0
        %s4536 = scalar_lea.vmem [#allocation13], 512
        %v4537 = vld [vmem:[%s4536] sm:$0xf]
        %v4538 = vld [vmem:[%s4536 + $0x4] sm:$0xf]
        %v4539 = vld [vmem:[%s4536 + $0x8] sm:$0xf]
        %v4540 = vld [vmem:[%s4536 + $0xc] sm:$0xf]
        %v4541 = vld [vmem:[%s4536 + $0x10] sm:$0xf]
        %v4542 = vld [vmem:[%s4536 + $0x14] sm:$0xf]
        %v4543 = vld [vmem:[%s4536 + $0x18] sm:$0xf]
        %v4544 = vld [vmem:[%s4536 + $0x1c] sm:$0xf]
        %v4545 = vld [vmem:[%s4536 + $0x20] sm:$0xf]
        %v4546 = vld [vmem:[%s4536 + $0x24] sm:$0xf]
        %v4547 = vld [vmem:[%s4536 + $0x28] sm:$0xf]
        %v4548 = vld [vmem:[%s4536 + $0x2c] sm:$0xf]
        %v4549 = vld [vmem:[%s4536 + $0x30] sm:$0xf]
        %v4550 = vld [vmem:[%s4536 + $0x34] sm:$0xf]
        %v4551 = vld [vmem:[%s4536 + $0x38] sm:$0xf]
        %v4552 = vld [vmem:[%s4536 + $0x3c] sm:$0xf]
        %v4553 = vld [vmem:[%s4536 + $0x40] sm:$0xf]
        %v4554 = vld [vmem:[%s4536 + $0x44] sm:$0xf]
        %v4555 = vld [vmem:[%s4536 + $0x48] sm:$0xf]
        %v4556 = vld [vmem:[%s4536 + $0x4c] sm:$0xf]
        %v4557 = vld [vmem:[%s4536 + $0x50] sm:$0xf]
        %v4558 = vld [vmem:[%s4536 + $0x54] sm:$0xf]
        %v4559 = vld [vmem:[%s4536 + $0x58] sm:$0xf]
        %v4560 = vld [vmem:[%s4536 + $0x5c] sm:$0xf]
        %v4561 = vld [vmem:[%s4536 + $0x60] sm:$0xf]
        %v4562 = vld [vmem:[%s4536 + $0x64] sm:$0xf]
        %v4563 = vld [vmem:[%s4536 + $0x68] sm:$0xf]
        %v4564 = vld [vmem:[%s4536 + $0x6c] sm:$0xf]
        %v4565 = vld [vmem:[%s4536 + $0x70] sm:$0xf]
        %v4566 = vld [vmem:[%s4536 + $0x74] sm:$0xf]
        %v4567 = vld [vmem:[%s4536 + $0x78] sm:$0xf]
        %v4568 = vld [vmem:[%s4536 + $0x7c] sm:$0xf]
        %v4569 = vld [vmem:[%s4536 + $0x80] sm:$0xf]
        %v4570 = vld [vmem:[%s4536 + $0x84] sm:$0xf]
        %v4571 = vld [vmem:[%s4536 + $0x88] sm:$0xf]
        %v4572 = vld [vmem:[%s4536 + $0x8c] sm:$0xf]
        %v4573 = vld [vmem:[%s4536 + $0x90] sm:$0xf]
        %v4574 = vld [vmem:[%s4536 + $0x94] sm:$0xf]
        %v4575 = vld [vmem:[%s4536 + $0x98] sm:$0xf]
        %v4576 = vld [vmem:[%s4536 + $0x9c] sm:$0xf]
        %v4577 = vld [vmem:[%s4536 + $0xa0] sm:$0xf]
        %v4578 = vld [vmem:[%s4536 + $0xa4] sm:$0xf]
        %v4579 = vld [vmem:[%s4536 + $0xa8] sm:$0xf]
        %v4580 = vld [vmem:[%s4536 + $0xac] sm:$0xf]
        %v4581 = vld [vmem:[%s4536 + $0xb0] sm:$0xf]
        %v4582 = vld [vmem:[%s4536 + $0xb4] sm:$0xf]
        %v4583 = vld [vmem:[%s4536 + $0xb8] sm:$0xf]
        %v4584 = vld [vmem:[%s4536 + $0xbc] sm:$0xf]
        %v4585 = vld [vmem:[%s4536 + $0xc0] sm:$0xf]
        %v4586 = vld [vmem:[%s4536 + $0xc4] sm:$0xf]
        %v4587 = vld [vmem:[%s4536 + $0xc8] sm:$0xf]
        %v4588 = vld [vmem:[%s4536 + $0xcc] sm:$0xf]
        %v4589 = vld [vmem:[%s4536 + $0xd0] sm:$0xf]
        %v4590 = vld [vmem:[%s4536 + $0xd4] sm:$0xf]
        %v4591 = vld [vmem:[%s4536 + $0xd8] sm:$0xf]
        %v4592 = vld [vmem:[%s4536 + $0xdc] sm:$0xf]
        %v4593 = vld [vmem:[%s4536 + $0xe0] sm:$0xf]
        %v4594 = vld [vmem:[%s4536 + $0xe4] sm:$0xf]
        %v4595 = vld [vmem:[%s4536 + $0xe8] sm:$0xf]
        %v4596 = vld [vmem:[%s4536 + $0xec] sm:$0xf]
        %v4597 = vld [vmem:[%s4536 + $0xf0] sm:$0xf]
        %v4598 = vld [vmem:[%s4536 + $0xf4] sm:$0xf]
        %v4599 = vld [vmem:[%s4536 + $0xf8] sm:$0xf]
        %v4600 = vld [vmem:[%s4536 + $0xfc] sm:$0xf]
        %v4601 = vpack.c.bf16 %v4532, %v4532
        %v4602 = vpack.c.bf16 %v4533, %v4533
        %v4603 = vpack.c.bf16 %v4534, %v4534
        %v4604 = vpack.c.bf16 %v4535, %v4535
        %s4605 = scalar_lea.vmem [#allocation15], 2
        %v4606 = vld [vmem:[%s4605] sm:$0x1]
        %v4608 = vlaneseq
        %v4609 = vshrl.u32 %v4608, 7
        %v4610 = vsub.s32 0, %v4609
        %v4611 = vrot.slane %v4606, %v4610
        %v4677 = vunpack.c.l.b16 %v4537
        %v4678 = vunpack.c.l.b16 %v4538
        %v4679 = vunpack.c.l.b16 %v4539
        %v4680 = vunpack.c.l.b16 %v4540
        %v4681 = vunpack.c.l.b16 %v4541
        %v4682 = vunpack.c.l.b16 %v4542
        %v4683 = vunpack.c.l.b16 %v4543
        %v4684 = vunpack.c.l.b16 %v4544
        %v4685 = vunpack.c.l.b16 %v4545
        %v4686 = vunpack.c.l.b16 %v4546
        %v4687 = vunpack.c.l.b16 %v4547
        %v4688 = vunpack.c.l.b16 %v4548
        %v4689 = vunpack.c.l.b16 %v4549
        %v4690 = vunpack.c.l.b16 %v4550
        %v4691 = vunpack.c.l.b16 %v4551
        %v4692 = vunpack.c.l.b16 %v4552
        %v4693 = vunpack.c.l.b16 %v4553
        %v4694 = vunpack.c.l.b16 %v4554
        %v4695 = vunpack.c.l.b16 %v4555
        %v4696 = vunpack.c.l.b16 %v4556
        %v4697 = vunpack.c.l.b16 %v4557
        %v4698 = vunpack.c.l.b16 %v4558
        %v4699 = vunpack.c.l.b16 %v4559
        %v4700 = vunpack.c.l.b16 %v4560
        %v4701 = vunpack.c.l.b16 %v4561
        %v4702 = vunpack.c.l.b16 %v4562
        %v4703 = vunpack.c.l.b16 %v4563
        %v4704 = vunpack.c.l.b16 %v4564
        %v4705 = vunpack.c.l.b16 %v4565
        %v4706 = vunpack.c.l.b16 %v4566
        %v4707 = vunpack.c.l.b16 %v4567
        %v4708 = vunpack.c.l.b16 %v4568
        %v4709 = vunpack.c.l.b16 %v4569
        %v4710 = vunpack.c.l.b16 %v4570
        %v4711 = vunpack.c.l.b16 %v4571
        %v4712 = vunpack.c.l.b16 %v4572
        %v4713 = vunpack.c.l.b16 %v4573
        %v4714 = vunpack.c.l.b16 %v4574
        %v4715 = vunpack.c.l.b16 %v4575
        %v4716 = vunpack.c.l.b16 %v4576
        %v4717 = vunpack.c.l.b16 %v4577
        %v4718 = vunpack.c.l.b16 %v4578
        %v4719 = vunpack.c.l.b16 %v4579
        %v4720 = vunpack.c.l.b16 %v4580
        %v4721 = vunpack.c.l.b16 %v4581
        %v4722 = vunpack.c.l.b16 %v4582
        %v4723 = vunpack.c.l.b16 %v4583
        %v4724 = vunpack.c.l.b16 %v4584
        %v4725 = vunpack.c.l.b16 %v4585
        %v4726 = vunpack.c.l.b16 %v4586
        %v4727 = vunpack.c.l.b16 %v4587
        %v4728 = vunpack.c.l.b16 %v4588
        %v4729 = vunpack.c.l.b16 %v4589
        %v4730 = vunpack.c.l.b16 %v4590
        %v4731 = vunpack.c.l.b16 %v4591
        %v4732 = vunpack.c.l.b16 %v4592
        %v4733 = vunpack.c.l.b16 %v4593
        %v4734 = vunpack.c.l.b16 %v4594
        %v4735 = vunpack.c.l.b16 %v4595
        %v4736 = vunpack.c.l.b16 %v4596
        %v4737 = vunpack.c.l.b16 %v4597
        %v4738 = vunpack.c.l.b16 %v4598
        %v4739 = vunpack.c.l.b16 %v4599
        %v4740 = vunpack.c.l.b16 %v4600
        %v4741 = vpack.c.b16 %v4678, %v4677
        %v4742 = vpack.c.b16 %v4680, %v4679
        %v4743 = vpack.c.b16 %v4682, %v4681
        %v4744 = vpack.c.b16 %v4684, %v4683
        %v4745 = vpack.c.b16 %v4686, %v4685
        %v4746 = vpack.c.b16 %v4688, %v4687
        %v4747 = vpack.c.b16 %v4690, %v4689
        %v4748 = vpack.c.b16 %v4692, %v4691
        %v4749 = vpack.c.b16 %v4694, %v4693
        %v4750 = vpack.c.b16 %v4696, %v4695
        %v4751 = vpack.c.b16 %v4698, %v4697
        %v4752 = vpack.c.b16 %v4700, %v4699
        %v4753 = vpack.c.b16 %v4702, %v4701
        %v4754 = vpack.c.b16 %v4704, %v4703
        %v4755 = vpack.c.b16 %v4706, %v4705
        %v4756 = vpack.c.b16 %v4708, %v4707
        %v4757 = vpack.c.b16 %v4710, %v4709
        %v4758 = vpack.c.b16 %v4712, %v4711
        %v4759 = vpack.c.b16 %v4714, %v4713
        %v4760 = vpack.c.b16 %v4716, %v4715
        %v4761 = vpack.c.b16 %v4718, %v4717
        %v4762 = vpack.c.b16 %v4720, %v4719
        %v4763 = vpack.c.b16 %v4722, %v4721
        %v4764 = vpack.c.b16 %v4724, %v4723
        %v4765 = vpack.c.b16 %v4726, %v4725
        %v4766 = vpack.c.b16 %v4728, %v4727
        %v4767 = vpack.c.b16 %v4730, %v4729
        %v4768 = vpack.c.b16 %v4732, %v4731
        %v4769 = vpack.c.b16 %v4734, %v4733
        %v4770 = vpack.c.b16 %v4736, %v4735
        %v4771 = vpack.c.b16 %v4738, %v4737
        %v4772 = vpack.c.b16 %v4740, %v4739
        %4805 = vmatprep.subr.bf16.mxu0 0
        %4806 = vmatpush1.bf16.msra.mxu0 %v4748
        %4807 = vmatprep.subr.bf16.mxu0 0
        %4808 = vmatpush1.bf16.msra.mxu0 %v4747
        %4809 = vmatprep.subr.bf16.mxu0 0
        %4810 = vmatpush1.bf16.msra.mxu0 %v4746
        %4811 = vmatprep.subr.bf16.mxu0 0
        %4812 = vmatpush1.bf16.msra.mxu0 %v4745
        %4813 = vmatprep.subr.bf16.mxu0 0
        %4814 = vmatpush1.bf16.msra.mxu0 %v4744
        %4815 = vmatprep.subr.bf16.mxu0 0
        %4816 = vmatpush1.bf16.msra.mxu0 %v4743
        %4817 = vmatprep.subr.bf16.mxu0 0
        %4818 = vmatpush1.bf16.msra.mxu0 %v4742
        %4819 = vmatprep.subr.bf16.mxu0 0
        %4820 = vmatpush1.bf16.msra.mxu0 %v4741
        %4821 = vmatprep.subr.bf16.mxu0 0
        %4822 = vmatpush2.bf16.msra.mxu0 %v4756
        %4823 = vmatprep.subr.bf16.mxu0 0
        %4824 = vmatpush2.bf16.msra.mxu0 %v4755
        %4825 = vmatprep.subr.bf16.mxu0 0
        %4826 = vmatpush2.bf16.msra.mxu0 %v4754
        %4827 = vmatprep.subr.bf16.mxu0 0
        %4828 = vmatpush2.bf16.msra.mxu0 %v4753
        %4829 = vmatprep.subr.bf16.mxu0 0
        %4830 = vmatpush2.bf16.msra.mxu0 %v4752
        %4831 = vmatprep.subr.bf16.mxu0 0
        %4832 = vmatpush2.bf16.msra.mxu0 %v4751
        %4833 = vmatprep.subr.bf16.mxu0 0
        %4834 = vmatpush2.bf16.msra.mxu0 %v4750
        %4835 = vmatprep.subr.bf16.mxu0 0
        %4836 = vmatpush2.bf16.msra.mxu0 %v4749
        %4837 = vmatprep.mubr.bf16.mxu0 %v4602
        %4838 = vmatmul.mubr.bf16.gmra.mxu0 %v4601
        %v4839 = vpop.f32.mrf.mxu0
        %v4840 = vadd.f32 %v4611, %v4839
        %v4841 = vpop.f32.mrf.mxu0
        %v4842 = vpop.f32.mrf.mxu0
        %v4843 = vpop.f32.mrf.mxu0
        %4844 = vdwg.mxu0
        %4845 = vmatprep.subr.bf16.mxu0 0
        %4846 = vmatpush1.bf16.msra.mxu0 %v4764
        %4847 = vmatprep.subr.bf16.mxu0 0
        %4848 = vmatpush1.bf16.msra.mxu0 %v4763
        %4849 = vmatprep.subr.bf16.mxu0 0
        %4850 = vmatpush1.bf16.msra.mxu0 %v4762
        %4851 = vmatprep.subr.bf16.mxu0 0
        %4852 = vmatpush1.bf16.msra.mxu0 %v4761
        %4853 = vmatprep.subr.bf16.mxu0 0
        %4854 = vmatpush1.bf16.msra.mxu0 %v4760
        %4855 = vmatprep.subr.bf16.mxu0 0
        %4856 = vmatpush1.bf16.msra.mxu0 %v4759
        %4857 = vmatprep.subr.bf16.mxu0 0
        %4858 = vmatpush1.bf16.msra.mxu0 %v4758
        %4859 = vmatprep.subr.bf16.mxu0 0
        %4860 = vmatpush1.bf16.msra.mxu0 %v4757
        %4861 = vmatprep.subr.bf16.mxu0 0
        %4862 = vmatpush2.bf16.msra.mxu0 %v4772
        %4863 = vmatprep.subr.bf16.mxu0 0
        %4864 = vmatpush2.bf16.msra.mxu0 %v4771
        %4865 = vmatprep.subr.bf16.mxu0 0
        %4866 = vmatpush2.bf16.msra.mxu0 %v4770
        %4867 = vmatprep.subr.bf16.mxu0 0
        %4868 = vmatpush2.bf16.msra.mxu0 %v4769
        %4869 = vmatprep.subr.bf16.mxu0 0
        %4870 = vmatpush2.bf16.msra.mxu0 %v4768
        %4871 = vmatprep.subr.bf16.mxu0 0
        %4872 = vmatpush2.bf16.msra.mxu0 %v4767
        %4873 = vmatprep.subr.bf16.mxu0 0
        %4874 = vmatpush2.bf16.msra.mxu0 %v4766
        %4875 = vmatprep.subr.bf16.mxu0 0
        %4876 = vmatpush2.bf16.msra.mxu0 %v4765
        %4877 = vmatprep.mubr.bf16.mxu0 %v4604
        %4878 = vmatmul.mubr.bf16.gmra.mxu0 %v4603
        %v4879 = vpop.f32.mrf.mxu0
        %v4880 = vadd.f32 %v4840, %v4879
        %v4881 = vpop.f32.mrf.mxu0
        %v4882 = vpop.f32.mrf.mxu0
        %v4883 = vpop.f32.mrf.mxu0
        %4884 = vdwg.mxu0
        %v4885 = vadd.f32 %v4232, %v4880
        %s4886 = scalar_lea.vmem [#allocation19], 2
        %v4887 = vld [vmem:[%s4886] sm:$0x1]
        %s4888 = scalar_lea.vmem [#allocation21], 2
        %v4889 = vld [vmem:[%s4888] sm:$0x1]
        %4890 = vadd.xlane.f32.xlu0 %v4885
        %v4891 = vpop.xlane.xlu0 %4890
        %v4892 = vmul.f32 %v4891, %v1503
        %v4893 = vsub.f32 %v4885, %v4892
        %v4894 = vmul.f32 %v4893, %v4893
        %4895 = vadd.xlane.f32.xlu0 %v4894
        %v4896 = vpop.xlane.xlu0 %4895
        %v4897 = vmul.f32 %v4896, %v1503
        %v4898 = vadd.f32 %v4897, 1e-06
        %v4899 = vrsqrt.pop %v4898
        %v4900 = vmul.f32 %v4893, %v4899
        %v4902 = vlaneseq
        %v4903 = vshrl.u32 %v4902, 7
        %v4904 = vsub.s32 0, %v4903
        %v4905 = vrot.slane %v4887, %v4904
        %v4907 = vmul.f32 %v4900, %v4905
        %v4909 = vlaneseq
        %v4910 = vshrl.u32 %v4909, 7
        %v4911 = vsub.s32 0, %v4910
        %v4912 = vrot.slane %v4889, %v4911
        %v4914 = vadd.f32 %v4907, %v4912
        %v4915 = vmax.f32 %v4914, 0.0
        %v4916 = vld [vmem:[#allocation22] sm:$0xf]
        %v4917 = vld [vmem:[#allocation22 + $0x4] sm:$0xf]
        %v4918 = vld [vmem:[#allocation22 + $0x8] sm:$0xf]
        %v4919 = vld [vmem:[#allocation22 + $0xc] sm:$0xf]
        %v4920 = vld [vmem:[#allocation22 + $0x10] sm:$0xf]
        %v4921 = vld [vmem:[#allocation22 + $0x14] sm:$0xf]
        %v4922 = vld [vmem:[#allocation22 + $0x18] sm:$0xf]
        %v4923 = vld [vmem:[#allocation22 + $0x1c] sm:$0xf]
        %v4924 = vld [vmem:[#allocation22 + $0x20] sm:$0xf]
        %v4925 = vld [vmem:[#allocation22 + $0x24] sm:$0xf]
        %v4926 = vld [vmem:[#allocation22 + $0x28] sm:$0xf]
        %v4927 = vld [vmem:[#allocation22 + $0x2c] sm:$0xf]
        %v4928 = vld [vmem:[#allocation22 + $0x30] sm:$0xf]
        %v4929 = vld [vmem:[#allocation22 + $0x34] sm:$0xf]
        %v4930 = vld [vmem:[#allocation22 + $0x38] sm:$0xf]
        %v4931 = vld [vmem:[#allocation22 + $0x3c] sm:$0xf]
        %v4932 = vpack.c.bf16 %v4915, %v4915
        %v4933 = vld [vmem:[#allocation24] sm:$0x1]
        %v4935 = vlaneseq
        %v4936 = vshrl.u32 %v4935, 7
        %v4937 = vsub.s32 0, %v4936
        %v4938 = vrot.slane %v4933, %v4937
        %v4956 = vunpack.c.l.b16 %v4916
        %v4957 = vunpack.c.l.b16 %v4917
        %v4958 = vunpack.c.l.b16 %v4918
        %v4959 = vunpack.c.l.b16 %v4919
        %v4960 = vunpack.c.l.b16 %v4920
        %v4961 = vunpack.c.l.b16 %v4921
        %v4962 = vunpack.c.l.b16 %v4922
        %v4963 = vunpack.c.l.b16 %v4923
        %v4964 = vunpack.c.l.b16 %v4924
        %v4965 = vunpack.c.l.b16 %v4925
        %v4966 = vunpack.c.l.b16 %v4926
        %v4967 = vunpack.c.l.b16 %v4927
        %v4968 = vunpack.c.l.b16 %v4928
        %v4969 = vunpack.c.l.b16 %v4929
        %v4970 = vunpack.c.l.b16 %v4930
        %v4971 = vunpack.c.l.b16 %v4931
        %v4972 = vpack.c.b16 %v4957, %v4956
        %v4973 = vpack.c.b16 %v4959, %v4958
        %v4974 = vpack.c.b16 %v4961, %v4960
        %v4975 = vpack.c.b16 %v4963, %v4962
        %v4976 = vpack.c.b16 %v4965, %v4964
        %v4977 = vpack.c.b16 %v4967, %v4966
        %v4978 = vpack.c.b16 %v4969, %v4968
        %v4979 = vpack.c.b16 %v4971, %v4970
        %4988 = vmatprep.subr.bf16.mxu0 0
        %4989 = vmatpush1.bf16.msra.mxu0 %v4979
        %4990 = vmatprep.subr.bf16.mxu0 0
        %4991 = vmatpush1.bf16.msra.mxu0 %v4978
        %4992 = vmatprep.subr.bf16.mxu0 0
        %4993 = vmatpush1.bf16.msra.mxu0 %v4977
        %4994 = vmatprep.subr.bf16.mxu0 0
        %4995 = vmatpush1.bf16.msra.mxu0 %v4976
        %4996 = vmatprep.subr.bf16.mxu0 0
        %4997 = vmatpush1.bf16.msra.mxu0 %v4975
        %4998 = vmatprep.subr.bf16.mxu0 0
        %4999 = vmatpush1.bf16.msra.mxu0 %v4974
        %5000 = vmatprep.subr.bf16.mxu0 0
        %5001 = vmatpush1.bf16.msra.mxu0 %v4973
        %5002 = vmatprep.subr.bf16.mxu0 0
        %5003 = vmatpush1.bf16.msra.mxu0 %v4972
        %5004 = vmatprep.subr.bf16.mxu0 0
        %5005 = vmatpush2.bf16.msra.mxu0 0
        %5006 = vmatprep.subr.bf16.mxu0 0
        %5007 = vmatpush2.bf16.msra.mxu0 0
        %5008 = vmatprep.subr.bf16.mxu0 0
        %5009 = vmatpush2.bf16.msra.mxu0 0
        %5010 = vmatprep.subr.bf16.mxu0 0
        %5011 = vmatpush2.bf16.msra.mxu0 0
        %5012 = vmatprep.subr.bf16.mxu0 0
        %5013 = vmatpush2.bf16.msra.mxu0 0
        %5014 = vmatprep.subr.bf16.mxu0 0
        %5015 = vmatpush2.bf16.msra.mxu0 0
        %5016 = vmatprep.subr.bf16.mxu0 0
        %5017 = vmatpush2.bf16.msra.mxu0 0
        %5018 = vmatprep.subr.bf16.mxu0 0
        %5019 = vmatpush2.bf16.msra.mxu0 0
        %5020 = vmatprep.mubr.bf16.mxu0 0
        %5021 = vmatmul.mubr.bf16.gmra.mxu0 %v4932
        %v5022 = vpop.f32.mrf.mxu0
        %v5023 = vadd.f32 %v4938, %v5022
        %v5024 = vpop.f32.mrf.mxu0
        %v5025 = vpop.f32.mrf.mxu0
        %v5026 = vpop.f32.mrf.mxu0
        %5027 = vdwg.mxu0
        %v5028 = vmax.f32 %v5023, 0.0
        %v5029 = vmul.f32 %v5028, %v791
        %5030 = vst [vmem:[%s771] sm:$0xff] %v5029
        %s5031 = sand.u32 %s442, 1
        %s5032 = scalar_lea.sflag [#allocation6], %s5031
        %s5033 = sand.u32 %s442, 1
        %s5034 = smul.addr %s5033, 8
        %s5035 = scalar_lea.vmem [#allocation25], %s5034
        // Predicated region
        $region145: #{entity_encoder_forward.1} parent=91 // pred_check
          %p5036 = pneg %p452
        $region146: #{entity_encoder_forward.1} parent=91 // pred_check_branch
          %5038 = sbr.rel (%p5036) target = $region148
        $region147: #{entity_encoder_forward.1} parent=91 // pred_region
          %s5040 = ssub.s32 128, 128
          %5041 = vsyncadd %s5032, %s5040
          %s5042 = smul.addr %s46, 128
          %s5043 = scalar_lea.hbm %s19, %s5042
          %s5045 = sshll.u32 %s5035, 4
          %s5046 = int_to_ptr.vmem [resolvable:$true] %s5045
          %5048 = dma.vmem_to_hbm [thread:$0]  %s5046, 128, %s5043, %s5032
        $region148: #{entity_encoder_forward.1} parent=91 // pred_fallthru
          _
      $region92: #{entity_encoder_forward.1} parent=5 // pred_fallthru
        _
      %p5049 = scmp.le.s32.totalorder 2, %s41
      // Predicated region
      $region149: #{entity_encoder_forward.1} parent=5 // pred_check
        %p5050 = pneg %p5049
      $region150: #{entity_encoder_forward.1} parent=5 // pred_check_branch
        %5052 = sbr.rel (%p5050) target = $region152
      $region151: #{entity_encoder_forward.1} parent=5 // pred_region
        %s5053 = ssub.s32 %s41, 2
        // Predicated region
        $region153: #{entity_encoder_forward.1} parent=151 // pred_check
          %p5054 = pneg %p458
        $region154: #{entity_encoder_forward.1} parent=151 // pred_check_branch
          %5056 = sbr.rel (%p5054) target = $region156
        $region155: #{entity_encoder_forward.1} parent=151 // pred_region
          %s5057 = sand.u32 %s443, 1
          %s5058 = scalar_lea.sflag [#allocation6], %s5057
          %s5059 = sand.u32 %s443, 1
          %s5060 = smul.addr %s5059, 8
          %s5061 = scalar_lea.vmem [#allocation25], %s5060
          %5062 = dma.done %s5058, 128
        $region156: #{entity_encoder_forward.1} parent=151 // pred_fallthru
          _
      $region152: #{entity_encoder_forward.1} parent=5 // pred_fallthru
        _
    $region6: #{entity_encoder_forward.1} parent=1 // loop_footer
      %s45 = sadd.s32 1, %s41
    $region7: #{entity_encoder_forward.1} parent=1 // loop_footer_branch
      %40 = sbr.rel target = $region3
    $region8: #{entity_encoder_forward.1} parent=1 // loop_exit
      _
    %5063 = vsyncpa [#allocation5], 1
    %s5064 = scalar_lea.sflag [#allocation5], 1
    %5065 = vsyncpa %s5064, 1
    %5066 = vsyncpa [#allocation8], 1
    %5067 = vsyncpa [#allocation11], 1
    %5068 = vsyncpa [#allocation14], 1
    %5069 = vsyncpa [#allocation17], 1
    %5070 = vsyncpa [#allocation20], 1
    %5071 = vsyncpa [#allocation23], 1
    %5072 = vsyncpa [#allocation6], 1
    %s5073 = scalar_lea.sflag [#allocation6], 1
    %5074 = vsyncpa %s5073, 1

</llo_original>
